<compile_context>
chip_gen: v5e
topology: v5e:2x2
jax: 0.10.0
libtpu: 0.0.40
codegen_flags: <defaults>
</compile_context>

<pallas_src>
import functools

import jax
import jax.numpy as jnp
from jax.experimental import pallas as pl
from jax.experimental.pallas import tpu as pltpu


def _decoder_block_kernel(xm_ref, xt_ref, xb_ref, sm_ref, st_ref, sb_ref,
                          w1_ref, b1_ref, w2_ref, b2_ref,
                          o_ref, xsh_ref, ysh_ref):
    """One (batch, row-tile) grid step.

    xm/xt/xb: (1, TH/2 | 1 | 1, W, Cin) bf16  x rows (pre-H-upsample): main / top / bottom halo
    sm/st/sb: (1, TH  | 2 | 2, W, Csk)  bf16  skip rows: main / top / bottom halo
    w*_ref:   (3, 3*C, Cout) bf16             conv weights, BN scale folded, [dy, dx*C + c, o]
    b*_ref:   (1, Cout) f32                   folded BatchNorm bias
    o_ref:    (1, TH, W, Cout) f32            output row tile
    xsh_ref:  (TH+4, W, 3*Cc) bf16            dx-shifted slabs of padded concat(up(x), skip)
    ysh_ref:  (TH+2, W, 3*Co) bf16            dx-shifted slabs of padded conv1 activation
    """
    TH, W, Co = o_ref.shape[1], o_ref.shape[2], o_ref.shape[3]
    Cin, Csk = xm_ref.shape[3], sm_ref.shape[3]
    Cc = Cin + Csk
    r, nr = pl.program_id(1), pl.num_programs(1)
    f32 = jnp.float32

    # ---- stage 0: assemble TH+4 input rows (2-row halo each side) and scatter them
    # into the three dx-shifted slab positions (3x copies instead of 9x im2col).
    xrows = jnp.concatenate([xt_ref[0], xm_ref[0], xb_ref[0]], axis=0)   # (TH//2+2, W, Cin)
    # nearest H-doubling: interleave each row twice (leading-dim only, layout-free)
    xu = jnp.concatenate([xrows[:, None], xrows[:, None]],
                         axis=1).reshape(TH + 4, W, Cin)                  # (TH+4, W, Cin)
    sk = jnp.concatenate([st_ref[0], sm_ref[0], sb_ref[0]], axis=0)       # (TH+4, W, Csk)

    # dx=1 (centre) slab -> channels [Cc, 2Cc); x and skip at their own channel
    # offsets (no concatenated intermediate).
    xsh_ref[:, :, Cc:Cc + Cin] = xu
    xsh_ref[:, :, Cc + Cin:2 * Cc] = sk
    # dx=0 slab (input shifted right one column) -> channels [0, Cc)
    xsh_ref[:, 1:W, 0:Cin] = xu[:, 0:W - 1, :]
    xsh_ref[:, 1:W, Cin:Cc] = sk[:, 0:W - 1, :]
    # dx=2 slab (input shifted left one column) -> channels [2Cc, 3Cc)
    xsh_ref[:, 0:W - 1, 2 * Cc:2 * Cc + Cin] = xu[:, 1:W, :]
    xsh_ref[:, 0:W - 1, 2 * Cc + Cin:3 * Cc] = sk[:, 1:W, :]
    # Zero-pad only the thin column strips the shifted stores never touch (no full
    # scratch memset).  Done every step so it stays correct under "parallel"
    # megacore sharding (a program_id==0-only init would not run on core 1).
    xsh_ref[:, 0:1, 0:Cc] = jnp.zeros((TH + 4, 1, Cc), xsh_ref.dtype)
    xsh_ref[:, W - 1:W, 2 * Cc:3 * Cc] = jnp.zeros((TH + 4, 1, Cc), xsh_ref.dtype)

    # Rows outside the image: the clamped halo DMAs fetched in-bounds rows, but they
    # must read as zero padding.
    @pl.when(r == 0)
    def _():
        xsh_ref[0:2, :, :] = jnp.zeros((2, W, 3 * Cc), xsh_ref.dtype)

    @pl.when(r == nr - 1)
    def _():
        xsh_ref[TH + 2:TH + 4, :, :] = jnp.zeros((2, W, 3 * Cc), xsh_ref.dtype)

    # ---- conv1 (BN scale folded into w1) + bias + ReLU over TH+2 rows (1-row halo
    # recompute so conv2's row halo never leaves VMEM).  One MXU dot per dy with
    # K = 3*Cc; the dy shifts are free leading-dim slices.
    a1 = jnp.dot(xsh_ref[0:TH + 2, :, :], w1_ref[0], preferred_element_type=f32)
    a1 = a1 + jnp.dot(xsh_ref[1:TH + 3, :, :], w1_ref[1], preferred_element_type=f32)
    a1 = a1 + jnp.dot(xsh_ref[2:TH + 4, :, :], w1_ref[2], preferred_element_type=f32)
    y1 = jnp.maximum(a1 + b1_ref[...], 0.0).astype(jnp.bfloat16)          # (TH+2, W, Co)

    # ---- stage the conv1 activation as dx-shifted slabs for conv2 (never hits HBM).
    ysh_ref[:, :, Co:2 * Co] = y1
    ysh_ref[:, 1:W, 0:Co] = y1[:, 0:W - 1, :]
    ysh_ref[:, 0:W - 1, 2 * Co:3 * Co] = y1[:, 1:W, :]
    ysh_ref[:, 0:1, 0:Co] = jnp.zeros((TH + 2, 1, Co), ysh_ref.dtype)
    ysh_ref[:, W - 1:W, 2 * Co:3 * Co] = jnp.zeros((TH + 2, 1, Co), ysh_ref.dtype)

    @pl.when(r == 0)
    def _():
        ysh_ref[0:1, :, :] = jnp.zeros((1, W, 3 * Co), ysh_ref.dtype)

    @pl.when(r == nr - 1)
    def _():
        ysh_ref[TH + 1:TH + 2, :, :] = jnp.zeros((1, W, 3 * Co), ysh_ref.dtype)

    # ---- conv2 + bias + ReLU -> output row tile.
    a2 = jnp.dot(ysh_ref[0:TH, :, :], w2_ref[0], preferred_element_type=f32)
    a2 = a2 + jnp.dot(ysh_ref[1:TH + 1, :, :], w2_ref[1], preferred_element_type=f32)
    a2 = a2 + jnp.dot(ysh_ref[2:TH + 2, :, :], w2_ref[2], preferred_element_type=f32)
    o_ref[0] = jnp.maximum(a2 + b2_ref[...], 0.0).astype(o_ref.dtype)


def fold_bn(gamma, beta, running_mean, running_var, eps=1e-5):
    scale = gamma / jnp.sqrt(running_var + eps)
    return scale, beta - running_mean * scale


def prep_params(w1_oihw, bn1, w2_oihw, bn2):
    """Fold eval-mode BatchNorm into the convs.  The scale is folded INTO the bf16
    weights (kernel epilogue = bias + ReLU only); weights are laid out as
    (3, 3*I, O) = [dy, dx*I + c, o] so each dy row is one K=3*I matmul."""
    def prep_w(w_oihw, scale):
        o, i, kh, kw = w_oihw.shape
        w = w_oihw * scale[:, None, None, None]                        # fold BN scale (f32)
        w = jnp.transpose(w, (2, 3, 1, 0)).reshape(kh, kw * i, o)       # [dy, dx*I + c, o]
        return w.astype(jnp.bfloat16)

    cout = w1_oihw.shape[0]
    s1, b1 = fold_bn(*bn1)
    s2, b2 = fold_bn(*bn2)
    return dict(
        w1=prep_w(w1_oihw, s1), b1=b1.reshape(1, cout).astype(jnp.float32),
        w2=prep_w(w2_oihw, s2), b2=b2.reshape(1, cout).astype(jnp.float32),
    )


@functools.partial(jax.jit, static_argnames=("row_tile",))
def decoder_block_forward(x_nchw, skip_nchw, params, row_tile=8):
    """DecoderBlock forward (eval mode, dropout p=0).  NCHW in / NCHW out."""
    N, Cin, Hx, Wx = x_nchw.shape
    Csk = skip_nchw.shape[1]
    Co = params["b1"].shape[-1]
    H, W = 2 * Hx, 2 * Wx
    Cc = Cin + Csk

    TH = min(row_tile, H)
    assert TH % 2 == 0 and H % TH == 0, (H, TH)
    R = H // TH
    hxt = TH // 2                                      # x rows (pre-upsample) per tile

    # NCHW -> NHWC + bf16 cast (halves input DMA bytes), fused into one small XLA
    # pass.  Only the W doubling of x is done here; the H doubling is in-kernel.
    # TODO(synk): keep the model NHWC end-to-end and move the W doubling in-kernel
    #   too (cuts x's HBM read traffic another 2x).
    xw = jnp.repeat(jnp.transpose(x_nchw, (0, 2, 3, 1)).astype(jnp.bfloat16), 2, axis=2)
    sk = jnp.transpose(skip_nchw, (0, 2, 3, 1)).astype(jnp.bfloat16)

    # Row-tile index maps.  The halo blocks clamp to stay in-bounds; the out-of-image
    # rows they fetch on the first / last tile are overwritten with zeros in-kernel.
    x_main = pl.BlockSpec((1, hxt, W, Cin), lambda n, r: (n, r, 0, 0))
    x_top = pl.BlockSpec((1, 1, W, Cin),
                         lambda n, r: (n, jnp.maximum(r * hxt - 1, 0), 0, 0))
    x_bot = pl.BlockSpec((1, 1, W, Cin),
                         lambda n, r: (n, jnp.minimum((r + 1) * hxt, Hx - 1), 0, 0))
    s_main = pl.BlockSpec((1, TH, W, Csk), lambda n, r: (n, r, 0, 0))
    s_top = pl.BlockSpec((1, 2, W, Csk),
                         lambda n, r: (n, jnp.maximum(r * hxt - 1, 0), 0, 0))
    s_bot = pl.BlockSpec((1, 2, W, Csk),
                         lambda n, r: (n, jnp.minimum((r + 1) * hxt, H // 2 - 1), 0, 0))
    w1_spec = pl.BlockSpec((3, 3 * Cc, Co), lambda n, r: (0, 0, 0))
    w2_spec = pl.BlockSpec((3, 3 * Co, Co), lambda n, r: (0, 0, 0))
    b1_spec = pl.BlockSpec((1, Co), lambda n, r: (0, 0))
    b2_spec = pl.BlockSpec((1, Co), lambda n, r: (0, 0))

    # VMEM plan: double-buffered in/out blocks + the two slab scratches, capped at
    # ~75% of physical VMEM (~48 MiB plan on v7x, up to 96 MiB on v5e/v6e).
    bf2, f4 = 2, 4
    blk = ((hxt + 2) * W * Cin * bf2 + (TH + 4) * W * Csk * bf2
           + 9 * Cc * Co * bf2 + 9 * Co * Co * bf2 + 2 * Co * f4
           + TH * W * Co * f4)
    scratch = (TH + 4) * W * 3 * Cc * bf2 + (TH + 2) * W * 3 * Co * bf2
    try:
        phys = pltpu.get_tpu_info().vmem_capacity_bytes
    except Exception:
        phys = 64 * 1024 * 1024
    vmem_limit = int(min(max(2 * blk + scratch + (8 << 20), 32 << 20), int(0.75 * phys)))

    out_nhwc = pl.pallas_call(
        _decoder_block_kernel,
        out_shape=jax.ShapeDtypeStruct((N, H, W, Co), jnp.float32),
        grid=(N, R),
        in_specs=[x_main, x_top, x_bot, s_main, s_top, s_bot,
                  w1_spec, b1_spec, w2_spec, b2_spec],
        out_specs=pl.BlockSpec((1, TH, W, Co), lambda n, r: (n, r, 0, 0)),
        scratch_shapes=[pltpu.VMEM((TH + 4, W, 3 * Cc), jnp.bfloat16),
                        pltpu.VMEM((TH + 2, W, 3 * Co), jnp.bfloat16)],
        compiler_params=pltpu.CompilerParams(
            dimension_semantics=("parallel", "parallel"),
            vmem_limit_bytes=vmem_limit),
    )(xw, xw, xw, sk, sk, sk,
      params["w1"], params["b1"], params["w2"], params["b2"])

    # TODO(synk): return bf16 NHWC directly if the next decoder stage accepts it.
    return jnp.transpose(out_nhwc, (0, 3, 1, 2))


# ---------------- reference (pure JAX / XLA conv), precision-matched ----------------
def _ref_forward(x_nchw, skip_nchw, w1_oihw, s1, b1, w2_oihw, s2, b2):
    x = jnp.repeat(jnp.repeat(x_nchw, 2, axis=2), 2, axis=3)
    x = jnp.concatenate([x, skip_nchw], axis=1)

    def conv_bn_relu(x, w, s, b):
        wf = (w * s[:, None, None, None]).astype(jnp.bfloat16)   # same folded bf16 weights
        y = jax.lax.conv_general_dilated(
            x.astype(jnp.bfloat16), wf, (1, 1), "SAME",
            dimension_numbers=("NCHW", "OIHW", "NCHW"),
            preferred_element_type=jnp.float32)
        return jnp.maximum(y + b[None, :, None, None], 0.0)

    y = conv_bn_relu(x, w1_oihw, s1, b1)
    y = y.astype(jnp.bfloat16).astype(jnp.float32)   # kernel stages conv1 out in bf16
    return conv_bn_relu(y, w2_oihw, s2, b2)


if __name__ == "__main__":
    key = jax.random.PRNGKey(0)
    ks = jax.random.split(key, 12)

    # DecoderBlock(in_channels=4, skip_channels=4, out_channels=8), eval mode.
    N, Cin, Csk, Co = 2, 4, 4, 8
    Hx, Wx = 8, 8                        # x spatial; skip / output spatial = 16x16
    Cc = Cin + Csk

    x = jax.random.normal(ks[0], (N, Cin, Hx, Wx), jnp.float32)
    skip = jax.random.normal(ks[1], (N, Csk, 2 * Hx, 2 * Wx), jnp.float32)

    # conv weights (no bias, use_batchnorm=True) and eval-mode BatchNorm stats
    w1_oihw = 0.1 * jax.random.normal(ks[2], (Co, Cc, 3, 3), jnp.float32)
    w2_oihw = 0.1 * jax.random.normal(ks[3], (Co, Co, 3, 3), jnp.float32)
    g1 = 1.0 + 0.1 * jax.random.normal(ks[4], (Co,), jnp.float32)
    be1 = 0.1 * jax.random.normal(ks[5], (Co,), jnp.float32)
    m1 = 0.1 * jax.random.normal(ks[6], (Co,), jnp.float32)
    v1 = jnp.abs(jax.random.normal(ks[7], (Co,), jnp.float32)) + 0.5
    g2 = 1.0 + 0.1 * jax.random.normal(ks[8], (Co,), jnp.float32)
    be2 = 0.1 * jax.random.normal(ks[9], (Co,), jnp.float32)
    m2 = 0.1 * jax.random.normal(ks[10], (Co,), jnp.float32)
    v2 = jnp.abs(jax.random.normal(ks[11], (Co,), jnp.float32)) + 0.5

    params = prep_params(w1_oihw, (g1, be1, m1, v1), w2_oihw, (g2, be2, m2, v2))

    # row_tile=8 -> 2 row tiles of the 16-row output: exercises both halo boundaries.
    out = jax.block_until_ready(decoder_block_forward(x, skip, params, row_tile=8))
    assert out.shape == (N, Co, 2 * Hx, 2 * Wx), out.shape

    s1, b1 = fold_bn(g1, be1, m1, v1)
    s2, b2 = fold_bn(g2, be2, m2, v2)
    ref = jax.block_until_ready(
        _ref_forward(x, skip, w1_oihw, s1, b1, w2_oihw, s2, b2))
    err = float(jnp.max(jnp.abs(out - ref)))
    assert err < 2e-2, err

    print("KERNEL_OK")
</pallas_src>

<mosaic_0001>
module attributes {stable_mosaic.version = 11 : i64} {
  func.func @_decoder_block_kernel(%arg0: i32, %arg1: i32, %arg2: memref<1x4x16x4xbf16, #tpu.memory_space<vmem>>, %arg3: memref<1x1x16x4xbf16, #tpu.memory_space<vmem>>, %arg4: memref<1x1x16x4xbf16, #tpu.memory_space<vmem>>, %arg5: memref<1x8x16x4xbf16, #tpu.memory_space<vmem>>, %arg6: memref<1x2x16x4xbf16, #tpu.memory_space<vmem>>, %arg7: memref<1x2x16x4xbf16, #tpu.memory_space<vmem>>, %arg8: memref<3x24x8xbf16, #tpu.memory_space<vmem>>, %arg9: memref<1x8xf32, #tpu.memory_space<vmem>>, %arg10: memref<3x24x8xbf16, #tpu.memory_space<vmem>>, %arg11: memref<1x8xf32, #tpu.memory_space<vmem>>, %arg12: memref<1x8x16x8xf32, #tpu.memory_space<vmem>>, %arg13: memref<12x16x24xbf16, #tpu.memory_space<vmem>>, %arg14: memref<10x16x24xbf16, #tpu.memory_space<vmem>>) attributes {dimension_semantics = [#tpu.dimension_semantics<parallel>, #tpu.dimension_semantics<parallel>], iteration_bounds = array<i64: 2, 2>, scalar_prefetch = 0 : i64, scratch_operands = 2 : i64, tpu.core_type = #tpu.core_type<tc>, window_params = [{transform_indices = @transform_0, window_bounds = array<i64: 1, 4, 16, 4>}, {transform_indices = @transform_1, window_bounds = array<i64: 1, 1, 16, 4>}, {transform_indices = @transform_2, window_bounds = array<i64: 1, 1, 16, 4>}, {transform_indices = @transform_3, window_bounds = array<i64: 1, 8, 16, 4>}, {transform_indices = @transform_4, window_bounds = array<i64: 1, 2, 16, 4>}, {transform_indices = @transform_5, window_bounds = array<i64: 1, 2, 16, 4>}, {pipeline_mode = #tpu.pipeline_mode<synchronous>, transform_indices = @transform_6, window_bounds = array<i64: 3, 24, 8>}, {pipeline_mode = #tpu.pipeline_mode<synchronous>, transform_indices = @transform_7, window_bounds = array<i64: 1, 8>}, {pipeline_mode = #tpu.pipeline_mode<synchronous>, transform_indices = @transform_8, window_bounds = array<i64: 3, 24, 8>}, {pipeline_mode = #tpu.pipeline_mode<synchronous>, transform_indices = @transform_9, window_bounds = array<i64: 1, 8>}, {transform_indices = @transform_10, window_bounds = array<i64: 1, 8, 16, 8>}]} {
    %c0 = arith.constant 0 : index
    %c0_0 = arith.constant 0 : index
    %c0_1 = arith.constant 0 : index
    %c0_2 = arith.constant 0 : index
    %0 = vector.load %arg3[%c0, %c0_0, %c0_1, %c0_2] : memref<1x1x16x4xbf16, #tpu.memory_space<vmem>>, vector<1x1x16x4xbf16>
    %1 = vector.shape_cast %0 : vector<1x1x16x4xbf16> to vector<1x16x4xbf16>
    %c0_3 = arith.constant 0 : index
    %c0_4 = arith.constant 0 : index
    %c0_5 = arith.constant 0 : index
    %c0_6 = arith.constant 0 : index
    %2 = vector.load %arg2[%c0_3, %c0_4, %c0_5, %c0_6] : memref<1x4x16x4xbf16, #tpu.memory_space<vmem>>, vector<1x4x16x4xbf16>
    %3 = vector.shape_cast %2 : vector<1x4x16x4xbf16> to vector<4x16x4xbf16>
    %c0_7 = arith.constant 0 : index
    %c0_8 = arith.constant 0 : index
    %c0_9 = arith.constant 0 : index
    %c0_10 = arith.constant 0 : index
    %4 = vector.load %arg4[%c0_7, %c0_8, %c0_9, %c0_10] : memref<1x1x16x4xbf16, #tpu.memory_space<vmem>>, vector<1x1x16x4xbf16>
    %5 = vector.shape_cast %4 : vector<1x1x16x4xbf16> to vector<1x16x4xbf16>
    %6 = tpu.concatenate %1, %3, %5 in 0 : vector<1x16x4xbf16>, vector<4x16x4xbf16>, vector<1x16x4xbf16> -> vector<6x16x4xbf16>
    %7 = vector.shape_cast %6 : vector<6x16x4xbf16> to vector<6x1x16x4xbf16>
    %8 = vector.shape_cast %6 : vector<6x16x4xbf16> to vector<6x1x16x4xbf16>
    %9 = tpu.concatenate %7, %8 in 1 : vector<6x1x16x4xbf16>, vector<6x1x16x4xbf16> -> vector<6x2x16x4xbf16>
    %10 = vector.shape_cast %9 : vector<6x2x16x4xbf16> to vector<12x16x4xbf16>
    %c0_11 = arith.constant 0 : index
    %c0_12 = arith.constant 0 : index
    %c0_13 = arith.constant 0 : index
    %c0_14 = arith.constant 0 : index
    %11 = vector.load %arg6[%c0_11, %c0_12, %c0_13, %c0_14] : memref<1x2x16x4xbf16, #tpu.memory_space<vmem>>, vector<1x2x16x4xbf16>
    %12 = vector.shape_cast %11 : vector<1x2x16x4xbf16> to vector<2x16x4xbf16>
    %c0_15 = arith.constant 0 : index
    %c0_16 = arith.constant 0 : index
    %c0_17 = arith.constant 0 : index
    %c0_18 = arith.constant 0 : index
    %13 = vector.load %arg5[%c0_15, %c0_16, %c0_17, %c0_18] : memref<1x8x16x4xbf16, #tpu.memory_space<vmem>>, vector<1x8x16x4xbf16>
    %14 = vector.shape_cast %13 : vector<1x8x16x4xbf16> to vector<8x16x4xbf16>
    %c0_19 = arith.constant 0 : index
    %c0_20 = arith.constant 0 : index
    %c0_21 = arith.constant 0 : index
    %c0_22 = arith.constant 0 : index
    %15 = vector.load %arg7[%c0_19, %c0_20, %c0_21, %c0_22] : memref<1x2x16x4xbf16, #tpu.memory_space<vmem>>, vector<1x2x16x4xbf16>
    %16 = vector.shape_cast %15 : vector<1x2x16x4xbf16> to vector<2x16x4xbf16>
    %17 = tpu.concatenate %12, %14, %16 in 0 : vector<2x16x4xbf16>, vector<8x16x4xbf16>, vector<2x16x4xbf16> -> vector<12x16x4xbf16>
    %c0_23 = arith.constant 0 : index
    %c0_24 = arith.constant 0 : index
    %c8 = arith.constant 8 : index
    %18 = vector.load %arg13[%c0_23, %c0_24, %c8] : memref<12x16x24xbf16, #tpu.memory_space<vmem>>, vector<12x16x4xbf16>
    tpu.vector_store %arg13[%c0_23, %c0_24, %c8], %10 {strides = array<i32>} : memref<12x16x24xbf16, #tpu.memory_space<vmem>>, vector<12x16x4xbf16>,
    %c0_25 = arith.constant 0 : index
    %c0_26 = arith.constant 0 : index
    %c12 = arith.constant 12 : index
    %19 = vector.load %arg13[%c0_25, %c0_26, %c12] : memref<12x16x24xbf16, #tpu.memory_space<vmem>>, vector<12x16x4xbf16>
    tpu.vector_store %arg13[%c0_25, %c0_26, %c12], %17 {strides = array<i32>} : memref<12x16x24xbf16, #tpu.memory_space<vmem>>, vector<12x16x4xbf16>,
    %20 = vector.extract_strided_slice %10 {offsets = [0, 0, 0], sizes = [12, 15, 4], strides = [1, 1, 1]} : vector<12x16x4xbf16> to vector<12x15x4xbf16>
    %c0_27 = arith.constant 0 : index
    %c1 = arith.constant 1 : index
    %c0_28 = arith.constant 0 : index
    %21 = vector.load %arg13[%c0_27, %c1, %c0_28] : memref<12x16x24xbf16, #tpu.memory_space<vmem>>, vector<12x15x4xbf16>
    tpu.vector_store %arg13[%c0_27, %c1, %c0_28], %20 {strides = array<i32>} : memref<12x16x24xbf16, #tpu.memory_space<vmem>>, vector<12x15x4xbf16>,
    %22 = vector.extract_strided_slice %17 {offsets = [0, 0, 0], sizes = [12, 15, 4], strides = [1, 1, 1]} : vector<12x16x4xbf16> to vector<12x15x4xbf16>
    %c0_29 = arith.constant 0 : index
    %c1_30 = arith.constant 1 : index
    %c4 = arith.constant 4 : index
    %23 = vector.load %arg13[%c0_29, %c1_30, %c4] : memref<12x16x24xbf16, #tpu.memory_space<vmem>>, vector<12x15x4xbf16>
    tpu.vector_store %arg13[%c0_29, %c1_30, %c4], %22 {strides = array<i32>} : memref<12x16x24xbf16, #tpu.memory_space<vmem>>, vector<12x15x4xbf16>,
    %24 = vector.extract_strided_slice %10 {offsets = [0, 1, 0], sizes = [12, 15, 4], strides = [1, 1, 1]} : vector<12x16x4xbf16> to vector<12x15x4xbf16>
    %c0_31 = arith.constant 0 : index
    %c0_32 = arith.constant 0 : index
    %c16 = arith.constant 16 : index
    %25 = vector.load %arg13[%c0_31, %c0_32, %c16] : memref<12x16x24xbf16, #tpu.memory_space<vmem>>, vector<12x15x4xbf16>
    tpu.vector_store %arg13[%c0_31, %c0_32, %c16], %24 {strides = array<i32>} : memref<12x16x24xbf16, #tpu.memory_space<vmem>>, vector<12x15x4xbf16>,
    %26 = vector.extract_strided_slice %17 {offsets = [0, 1, 0], sizes = [12, 15, 4], strides = [1, 1, 1]} : vector<12x16x4xbf16> to vector<12x15x4xbf16>
    %c0_33 = arith.constant 0 : index
    %c0_34 = arith.constant 0 : index
    %c20 = arith.constant 20 : index
    %27 = vector.load %arg13[%c0_33, %c0_34, %c20] : memref<12x16x24xbf16, #tpu.memory_space<vmem>>, vector<12x15x4xbf16>
    tpu.vector_store %arg13[%c0_33, %c0_34, %c20], %26 {strides = array<i32>} : memref<12x16x24xbf16, #tpu.memory_space<vmem>>, vector<12x15x4xbf16>,
    %cst = arith.constant 0.000000e+00 : bf16
    %28 = vector.broadcast %cst : bf16 to vector<12x1x8xbf16>
    %c0_35 = arith.constant 0 : index
    %c0_36 = arith.constant 0 : index
    %c0_37 = arith.constant 0 : index
    %29 = vector.load %arg13[%c0_35, %c0_36, %c0_37] : memref<12x16x24xbf16, #tpu.memory_space<vmem>>, vector<12x1x8xbf16>
    tpu.vector_store %arg13[%c0_35, %c0_36, %c0_37], %28 {strides = array<i32>} : memref<12x16x24xbf16, #tpu.memory_space<vmem>>, vector<12x1x8xbf16>,
    %cst_38 = arith.constant 0.000000e+00 : bf16
    %30 = vector.broadcast %cst_38 : bf16 to vector<12x1x8xbf16>
    %c0_39 = arith.constant 0 : index
    %c15 = arith.constant 15 : index
    %c16_40 = arith.constant 16 : index
    %31 = vector.load %arg13[%c0_39, %c15, %c16_40] : memref<12x16x24xbf16, #tpu.memory_space<vmem>>, vector<12x1x8xbf16>
    tpu.vector_store %arg13[%c0_39, %c15, %c16_40], %30 {strides = array<i32>} : memref<12x16x24xbf16, #tpu.memory_space<vmem>>, vector<12x1x8xbf16>,
    %c0_i32 = arith.constant 0 : i32
    %32 = arith.cmpi eq, %arg1, %c0_i32 : i32
    %33 = arith.extui %32 : i1 to i32
    %c0_i32_41 = arith.constant 0 : i32
    %34 = arith.cmpi ne, %33, %c0_i32_41 : i32
    scf.if %34 {
      %cst_115 = arith.constant 0.000000e+00 : bf16
      %97 = vector.broadcast %cst_115 : bf16 to vector<2x16x24xbf16>
      %c0_116 = arith.constant 0 : index
      %c0_117 = arith.constant 0 : index
      %c0_118 = arith.constant 0 : index
      %98 = vector.load %arg13[%c0_116, %c0_117, %c0_118] : memref<12x16x24xbf16, #tpu.memory_space<vmem>>, vector<2x16x24xbf16>
      tpu.vector_store %arg13[%c0_116, %c0_117, %c0_118], %97 {strides = array<i32>} : memref<12x16x24xbf16, #tpu.memory_space<vmem>>, vector<2x16x24xbf16>,
    } else {
    }
    %c1_i32 = arith.constant 1 : i32
    %35 = arith.cmpi eq, %arg1, %c1_i32 : i32
    %36 = arith.extui %35 : i1 to i32
    %c0_i32_42 = arith.constant 0 : i32
    %37 = arith.cmpi ne, %36, %c0_i32_42 : i32
    scf.if %37 {
      %cst_115 = arith.constant 0.000000e+00 : bf16
      %97 = vector.broadcast %cst_115 : bf16 to vector<2x16x24xbf16>
      %c10 = arith.constant 10 : index
      %c0_116 = arith.constant 0 : index
      %c0_117 = arith.constant 0 : index
      %98 = vector.load %arg13[%c10, %c0_116, %c0_117] : memref<12x16x24xbf16, #tpu.memory_space<vmem>>, vector<2x16x24xbf16>
      tpu.vector_store %arg13[%c10, %c0_116, %c0_117], %97 {strides = array<i32>} : memref<12x16x24xbf16, #tpu.memory_space<vmem>>, vector<2x16x24xbf16>,
    } else {
    }
    %c0_43 = arith.constant 0 : index
    %c0_44 = arith.constant 0 : index
    %c0_45 = arith.constant 0 : index
    %38 = vector.load %arg13[%c0_43, %c0_44, %c0_45] : memref<12x16x24xbf16, #tpu.memory_space<vmem>>, vector<10x16x24xbf16>
    %c0_46 = arith.constant 0 : index
    %c0_47 = arith.constant 0 : index
    %c0_48 = arith.constant 0 : index
    %39 = vector.load %arg8[%c0_46, %c0_47, %c0_48] : memref<3x24x8xbf16, #tpu.memory_space<vmem>>, vector<1x24x8xbf16>
    %40 = vector.shape_cast %39 : vector<1x24x8xbf16> to vector<24x8xbf16>
    %cst_49 = arith.constant dense<0.000000e+00> : vector<10x16x8xf32>
    %41 = tpu.matmul %38, %40, %cst_49 {dimension_numbers = #tpu.dot_dimension_numbers<[2], [0], [0, 1], [1], [0, 0, 0, 1, 1, 1], [], []>} : vector<10x16x24xbf16>, vector<24x8xbf16>, vector<10x16x8xf32> -> vector<10x16x8xf32>
    %c1_50 = arith.constant 1 : index
    %c0_51 = arith.constant 0 : index
    %c0_52 = arith.constant 0 : index
    %42 = vector.load %arg13[%c1_50, %c0_51, %c0_52] : memref<12x16x24xbf16, #tpu.memory_space<vmem>>, vector<10x16x24xbf16>
    %c1_53 = arith.constant 1 : index
    %c0_54 = arith.constant 0 : index
    %c0_55 = arith.constant 0 : index
    %43 = vector.load %arg8[%c1_53, %c0_54, %c0_55] : memref<3x24x8xbf16, #tpu.memory_space<vmem>>, vector<1x24x8xbf16>
    %44 = vector.shape_cast %43 : vector<1x24x8xbf16> to vector<24x8xbf16>
    %cst_56 = arith.constant dense<0.000000e+00> : vector<10x16x8xf32>
    %45 = tpu.matmul %42, %44, %cst_56 {dimension_numbers = #tpu.dot_dimension_numbers<[2], [0], [0, 1], [1], [0, 0, 0, 1, 1, 1], [], []>} : vector<10x16x24xbf16>, vector<24x8xbf16>, vector<10x16x8xf32> -> vector<10x16x8xf32>
    %46 = arith.addf %41, %45 : vector<10x16x8xf32>
    %c2 = arith.constant 2 : index
    %c0_57 = arith.constant 0 : index
    %c0_58 = arith.constant 0 : index
    %47 = vector.load %arg13[%c2, %c0_57, %c0_58] : memref<12x16x24xbf16, #tpu.memory_space<vmem>>, vector<10x16x24xbf16>
    %c2_59 = arith.constant 2 : index
    %c0_60 = arith.constant 0 : index
    %c0_61 = arith.constant 0 : index
    %48 = vector.load %arg8[%c2_59, %c0_60, %c0_61] : memref<3x24x8xbf16, #tpu.memory_space<vmem>>, vector<1x24x8xbf16>
    %49 = vector.shape_cast %48 : vector<1x24x8xbf16> to vector<24x8xbf16>
    %cst_62 = arith.constant dense<0.000000e+00> : vector<10x16x8xf32>
    %50 = tpu.matmul %47, %49, %cst_62 {dimension_numbers = #tpu.dot_dimension_numbers<[2], [0], [0, 1], [1], [0, 0, 0, 1, 1, 1], [], []>} : vector<10x16x24xbf16>, vector<24x8xbf16>, vector<10x16x8xf32> -> vector<10x16x8xf32>
    %51 = arith.addf %46, %50 : vector<10x16x8xf32>
    %c0_63 = arith.constant 0 : index
    %c0_64 = arith.constant 0 : index
    %52 = vector.load %arg9[%c0_63, %c0_64] : memref<1x8xf32, #tpu.memory_space<vmem>>, vector<1x8xf32>
    %53 = vector.shape_cast %52 : vector<1x8xf32> to vector<1x1x8xf32>
    %54 = vector.broadcast %53 : vector<1x1x8xf32> to vector<10x16x8xf32>
    %55 = arith.addf %51, %54 : vector<10x16x8xf32>
    %cst_65 = arith.constant 0.000000e+00 : f32
    %56 = vector.broadcast %cst_65 : f32 to vector<10x16x8xf32>
    %57 = arith.maximumf %55, %56 : vector<10x16x8xf32>
    %58 = arith.truncf %57 : vector<10x16x8xf32> to vector<10x16x8xbf16>
    %c0_66 = arith.constant 0 : index
    %c0_67 = arith.constant 0 : index
    %c8_68 = arith.constant 8 : index
    %59 = vector.load %arg14[%c0_66, %c0_67, %c8_68] : memref<10x16x24xbf16, #tpu.memory_space<vmem>>, vector<10x16x8xbf16>
    tpu.vector_store %arg14[%c0_66, %c0_67, %c8_68], %58 {strides = array<i32>} : memref<10x16x24xbf16, #tpu.memory_space<vmem>>, vector<10x16x8xbf16>,
    %60 = vector.extract_strided_slice %58 {offsets = [0, 0, 0], sizes = [10, 15, 8], strides = [1, 1, 1]} : vector<10x16x8xbf16> to vector<10x15x8xbf16>
    %c0_69 = arith.constant 0 : index
    %c1_70 = arith.constant 1 : index
    %c0_71 = arith.constant 0 : index
    %61 = vector.load %arg14[%c0_69, %c1_70, %c0_71] : memref<10x16x24xbf16, #tpu.memory_space<vmem>>, vector<10x15x8xbf16>
    tpu.vector_store %arg14[%c0_69, %c1_70, %c0_71], %60 {strides = array<i32>} : memref<10x16x24xbf16, #tpu.memory_space<vmem>>, vector<10x15x8xbf16>,
    %62 = vector.extract_strided_slice %58 {offsets = [0, 1, 0], sizes = [10, 15, 8], strides = [1, 1, 1]} : vector<10x16x8xbf16> to vector<10x15x8xbf16>
    %c0_72 = arith.constant 0 : index
    %c0_73 = arith.constant 0 : index
    %c16_74 = arith.constant 16 : index
    %63 = vector.load %arg14[%c0_72, %c0_73, %c16_74] : memref<10x16x24xbf16, #tpu.memory_space<vmem>>, vector<10x15x8xbf16>
    tpu.vector_store %arg14[%c0_72, %c0_73, %c16_74], %62 {strides = array<i32>} : memref<10x16x24xbf16, #tpu.memory_space<vmem>>, vector<10x15x8xbf16>,
    %cst_75 = arith.constant 0.000000e+00 : bf16
    %64 = vector.broadcast %cst_75 : bf16 to vector<10x1x8xbf16>
    %c0_76 = arith.constant 0 : index
    %c0_77 = arith.constant 0 : index
    %c0_78 = arith.constant 0 : index
    %65 = vector.load %arg14[%c0_76, %c0_77, %c0_78] : memref<10x16x24xbf16, #tpu.memory_space<vmem>>, vector<10x1x8xbf16>
    tpu.vector_store %arg14[%c0_76, %c0_77, %c0_78], %64 {strides = array<i32>} : memref<10x16x24xbf16, #tpu.memory_space<vmem>>, vector<10x1x8xbf16>,
    %cst_79 = arith.constant 0.000000e+00 : bf16
    %66 = vector.broadcast %cst_79 : bf16 to vector<10x1x8xbf16>
    %c0_80 = arith.constant 0 : index
    %c15_81 = arith.constant 15 : index
    %c16_82 = arith.constant 16 : index
    %67 = vector.load %arg14[%c0_80, %c15_81, %c16_82] : memref<10x16x24xbf16, #tpu.memory_space<vmem>>, vector<10x1x8xbf16>
    tpu.vector_store %arg14[%c0_80, %c15_81, %c16_82], %66 {strides = array<i32>} : memref<10x16x24xbf16, #tpu.memory_space<vmem>>, vector<10x1x8xbf16>,
    %c0_i32_83 = arith.constant 0 : i32
    %68 = arith.cmpi eq, %arg1, %c0_i32_83 : i32
    %69 = arith.extui %68 : i1 to i32
    %c0_i32_84 = arith.constant 0 : i32
    %70 = arith.cmpi ne, %69, %c0_i32_84 : i32
    scf.if %70 {
      %cst_115 = arith.constant 0.000000e+00 : bf16
      %97 = vector.broadcast %cst_115 : bf16 to vector<1x16x24xbf16>
      %c0_116 = arith.constant 0 : index
      %c0_117 = arith.constant 0 : index
      %c0_118 = arith.constant 0 : index
      %98 = vector.load %arg14[%c0_116, %c0_117, %c0_118] : memref<10x16x24xbf16, #tpu.memory_space<vmem>>, vector<1x16x24xbf16>
      tpu.vector_store %arg14[%c0_116, %c0_117, %c0_118], %97 {strides = array<i32>} : memref<10x16x24xbf16, #tpu.memory_space<vmem>>, vector<1x16x24xbf16>,
    } else {
    }
    %c1_i32_85 = arith.constant 1 : i32
    %71 = arith.cmpi eq, %arg1, %c1_i32_85 : i32
    %72 = arith.extui %71 : i1 to i32
    %c0_i32_86 = arith.constant 0 : i32
    %73 = arith.cmpi ne, %72, %c0_i32_86 : i32
    scf.if %73 {
      %cst_115 = arith.constant 0.000000e+00 : bf16
      %97 = vector.broadcast %cst_115 : bf16 to vector<1x16x24xbf16>
      %c9 = arith.constant 9 : index
      %c0_116 = arith.constant 0 : index
      %c0_117 = arith.constant 0 : index
      %98 = vector.load %arg14[%c9, %c0_116, %c0_117] : memref<10x16x24xbf16, #tpu.memory_space<vmem>>, vector<1x16x24xbf16>
      tpu.vector_store %arg14[%c9, %c0_116, %c0_117], %97 {strides = array<i32>} : memref<10x16x24xbf16, #tpu.memory_space<vmem>>, vector<1x16x24xbf16>,
    } else {
    }
    %c0_87 = arith.constant 0 : index
    %c0_88 = arith.constant 0 : index
    %c0_89 = arith.constant 0 : index
    %74 = vector.load %arg14[%c0_87, %c0_88, %c0_89] : memref<10x16x24xbf16, #tpu.memory_space<vmem>>, vector<8x16x24xbf16>
    %c0_90 = arith.constant 0 : index
    %c0_91 = arith.constant 0 : index
    %c0_92 = arith.constant 0 : index
    %75 = vector.load %arg10[%c0_90, %c0_91, %c0_92] : memref<3x24x8xbf16, #tpu.memory_space<vmem>>, vector<1x24x8xbf16>
    %76 = vector.shape_cast %75 : vector<1x24x8xbf16> to vector<24x8xbf16>
    %cst_93 = arith.constant dense<0.000000e+00> : vector<8x16x8xf32>
    %77 = tpu.matmul %74, %76, %cst_93 {dimension_numbers = #tpu.dot_dimension_numbers<[2], [0], [0, 1], [1], [0, 0, 0, 1, 1, 1], [], []>} : vector<8x16x24xbf16>, vector<24x8xbf16>, vector<8x16x8xf32> -> vector<8x16x8xf32>
    %c1_94 = arith.constant 1 : index
    %c0_95 = arith.constant 0 : index
    %c0_96 = arith.constant 0 : index
    %78 = vector.load %arg14[%c1_94, %c0_95, %c0_96] : memref<10x16x24xbf16, #tpu.memory_space<vmem>>, vector<8x16x24xbf16>
    %c1_97 = arith.constant 1 : index
    %c0_98 = arith.constant 0 : index
    %c0_99 = arith.constant 0 : index
    %79 = vector.load %arg10[%c1_97, %c0_98, %c0_99] : memref<3x24x8xbf16, #tpu.memory_space<vmem>>, vector<1x24x8xbf16>
    %80 = vector.shape_cast %79 : vector<1x24x8xbf16> to vector<24x8xbf16>
    %cst_100 = arith.constant dense<0.000000e+00> : vector<8x16x8xf32>
    %81 = tpu.matmul %78, %80, %cst_100 {dimension_numbers = #tpu.dot_dimension_numbers<[2], [0], [0, 1], [1], [0, 0, 0, 1, 1, 1], [], []>} : vector<8x16x24xbf16>, vector<24x8xbf16>, vector<8x16x8xf32> -> vector<8x16x8xf32>
    %82 = arith.addf %77, %81 : vector<8x16x8xf32>
    %c2_101 = arith.constant 2 : index
    %c0_102 = arith.constant 0 : index
    %c0_103 = arith.constant 0 : index
    %83 = vector.load %arg14[%c2_101, %c0_102, %c0_103] : memref<10x16x24xbf16, #tpu.memory_space<vmem>>, vector<8x16x24xbf16>
    %c2_104 = arith.constant 2 : index
    %c0_105 = arith.constant 0 : index
    %c0_106 = arith.constant 0 : index
    %84 = vector.load %arg10[%c2_104, %c0_105, %c0_106] : memref<3x24x8xbf16, #tpu.memory_space<vmem>>, vector<1x24x8xbf16>
    %85 = vector.shape_cast %84 : vector<1x24x8xbf16> to vector<24x8xbf16>
    %cst_107 = arith.constant dense<0.000000e+00> : vector<8x16x8xf32>
    %86 = tpu.matmul %83, %85, %cst_107 {dimension_numbers = #tpu.dot_dimension_numbers<[2], [0], [0, 1], [1], [0, 0, 0, 1, 1, 1], [], []>} : vector<8x16x24xbf16>, vector<24x8xbf16>, vector<8x16x8xf32> -> vector<8x16x8xf32>
    %87 = arith.addf %82, %86 : vector<8x16x8xf32>
    %c0_108 = arith.constant 0 : index
    %c0_109 = arith.constant 0 : index
    %88 = vector.load %arg11[%c0_108, %c0_109] : memref<1x8xf32, #tpu.memory_space<vmem>>, vector<1x8xf32>
    %89 = vector.shape_cast %88 : vector<1x8xf32> to vector<1x1x8xf32>
    %90 = vector.broadcast %89 : vector<1x1x8xf32> to vector<8x16x8xf32>
    %91 = arith.addf %87, %90 : vector<8x16x8xf32>
    %cst_110 = arith.constant 0.000000e+00 : f32
    %92 = vector.broadcast %cst_110 : f32 to vector<8x16x8xf32>
    %93 = arith.maximumf %91, %92 : vector<8x16x8xf32>
    %c0_111 = arith.constant 0 : index
    %c0_112 = arith.constant 0 : index
    %c0_113 = arith.constant 0 : index
    %c0_114 = arith.constant 0 : index
    %94 = vector.load %arg12[%c0_111, %c0_112, %c0_113, %c0_114] : memref<1x8x16x8xf32, #tpu.memory_space<vmem>>, vector<1x8x16x8xf32>
    %95 = vector.shape_cast %94 : vector<1x8x16x8xf32> to vector<8x16x8xf32>
    %96 = vector.shape_cast %93 : vector<8x16x8xf32> to vector<1x8x16x8xf32>
    tpu.vector_store %arg12[%c0_111, %c0_112, %c0_113, %c0_114], %96 {strides = array<i32>} : memref<1x8x16x8xf32, #tpu.memory_space<vmem>>, vector<1x8x16x8xf32>,
    return
  }
  func.func @transform_0(%arg0: i32, %arg1: i32) -> (i32, i32, i32, i32) {
    %c0_i32 = arith.constant 0 : i32
    %c0_i32_0 = arith.constant 0 : i32
    %c0_i32_1 = arith.constant 0 : i32
    return %arg0, %arg1, %c0_i32, %c0_i32_0 : i32, i32, i32, i32
  }
  func.func @transform_1(%arg0: i32, %arg1: i32) -> (i32, i32, i32, i32) {
    %c4_i32 = arith.constant 4 : i32
    %0 = arith.muli %arg1, %c4_i32 : i32
    %c1_i32 = arith.constant 1 : i32
    %1 = arith.subi %0, %c1_i32 : i32
    %c0_i32 = arith.constant 0 : i32
    %2 = arith.maxsi %1, %c0_i32 : i32
    %c0_i32_0 = arith.constant 0 : i32
    %c0_i32_1 = arith.constant 0 : i32
    %c0_i32_2 = arith.constant 0 : i32
    return %arg0, %2, %c0_i32_0, %c0_i32_1 : i32, i32, i32, i32
  }
  func.func @transform_2(%arg0: i32, %arg1: i32) -> (i32, i32, i32, i32) {
    %c1_i32 = arith.constant 1 : i32
    %0 = arith.addi %arg1, %c1_i32 : i32
    %c4_i32 = arith.constant 4 : i32
    %1 = arith.muli %0, %c4_i32 : i32
    %c7_i32 = arith.constant 7 : i32
    %2 = arith.minsi %1, %c7_i32 : i32
    %c0_i32 = arith.constant 0 : i32
    %c0_i32_0 = arith.constant 0 : i32
    %c0_i32_1 = arith.constant 0 : i32
    return %arg0, %2, %c0_i32, %c0_i32_0 : i32, i32, i32, i32
  }
  func.func @transform_3(%arg0: i32, %arg1: i32) -> (i32, i32, i32, i32) {
    %c0_i32 = arith.constant 0 : i32
    %c0_i32_0 = arith.constant 0 : i32
    %c0_i32_1 = arith.constant 0 : i32
    return %arg0, %arg1, %c0_i32, %c0_i32_0 : i32, i32, i32, i32
  }
  func.func @transform_4(%arg0: i32, %arg1: i32) -> (i32, i32, i32, i32) {
    %c4_i32 = arith.constant 4 : i32
    %0 = arith.muli %arg1, %c4_i32 : i32
    %c1_i32 = arith.constant 1 : i32
    %1 = arith.subi %0, %c1_i32 : i32
    %c0_i32 = arith.constant 0 : i32
    %2 = arith.maxsi %1, %c0_i32 : i32
    %c0_i32_0 = arith.constant 0 : i32
    %c0_i32_1 = arith.constant 0 : i32
    %c0_i32_2 = arith.constant 0 : i32
    return %arg0, %2, %c0_i32_0, %c0_i32_1 : i32, i32, i32, i32
  }
  func.func @transform_5(%arg0: i32, %arg1: i32) -> (i32, i32, i32, i32) {
    %c1_i32 = arith.constant 1 : i32
    %0 = arith.addi %arg1, %c1_i32 : i32
    %c4_i32 = arith.constant 4 : i32
    %1 = arith.muli %0, %c4_i32 : i32
    %c7_i32 = arith.constant 7 : i32
    %2 = arith.minsi %1, %c7_i32 : i32
    %c0_i32 = arith.constant 0 : i32
    %c0_i32_0 = arith.constant 0 : i32
    %c0_i32_1 = arith.constant 0 : i32
    return %arg0, %2, %c0_i32, %c0_i32_0 : i32, i32, i32, i32
  }
  func.func @transform_6(%arg0: i32, %arg1: i32) -> (i32, i32, i32) {
    %c0_i32 = arith.constant 0 : i32
    %c0_i32_0 = arith.constant 0 : i32
    %c0_i32_1 = arith.constant 0 : i32
    %c0_i32_2 = arith.constant 0 : i32
    return %c0_i32, %c0_i32_0, %c0_i32_1 : i32, i32, i32
  }
  func.func @transform_7(%arg0: i32, %arg1: i32) -> (i32, i32) {
    %c0_i32 = arith.constant 0 : i32
    %c0_i32_0 = arith.constant 0 : i32
    %c0_i32_1 = arith.constant 0 : i32
    return %c0_i32, %c0_i32_0 : i32, i32
  }
  func.func @transform_8(%arg0: i32, %arg1: i32) -> (i32, i32, i32) {
    %c0_i32 = arith.constant 0 : i32
    %c0_i32_0 = arith.constant 0 : i32
    %c0_i32_1 = arith.constant 0 : i32
    %c0_i32_2 = arith.constant 0 : i32
    return %c0_i32, %c0_i32_0, %c0_i32_1 : i32, i32, i32
  }
  func.func @transform_9(%arg0: i32, %arg1: i32) -> (i32, i32) {
    %c0_i32 = arith.constant 0 : i32
    %c0_i32_0 = arith.constant 0 : i32
    %c0_i32_1 = arith.constant 0 : i32
    return %c0_i32, %c0_i32_0 : i32, i32
  }
  func.func @transform_10(%arg0: i32, %arg1: i32) -> (i32, i32, i32, i32) {
    %c0_i32 = arith.constant 0 : i32
    %c0_i32_0 = arith.constant 0 : i32
    %c0_i32_1 = arith.constant 0 : i32
    return %arg0, %arg1, %c0_i32, %c0_i32_0 : i32, i32, i32, i32
  }
}

</mosaic_0001>

<llo_original>
// kernel: decoder_block_forward.1
$region0: #{decoder_block_forward.1}
  #allocation0 [shape = 'u32[]', space=smem, size = 0x4, offset = 0x4, fixed_abs, tag = 'smem constant byte address 0x4 - core index']
  #allocation1 [shape = 'u32[72,128]{1,0:T(1,128)}', space=vmem, size = 0x9000, scoped, tag = 'internal scratch']
  #allocation2 [shape = 'bf16[12,16,24]{2,1,0:T(8,128)(2,1)}', space=vmem, size = 0xc000, scoped, tag = 'scratch operand']
  #allocation3 [shape = 'bf16[10,16,24]{2,1,0:T(8,128)(2,1)}', space=vmem, size = 0xa000, scoped, tag = 'scratch operand']
  %s0 = inlined_call_operand.vmem [shape: bf16[2,8,16,4], index: 0, kind: input, shape index: {}, may-alias: {0,1,2}]
  %s1 = inlined_call_operand.vmem [shape: bf16[2,8,16,4], index: 1, kind: input, shape index: {}, may-alias: {0,1,2}]
  %s2 = inlined_call_operand.vmem [shape: bf16[2,8,16,4], index: 2, kind: input, shape index: {}, may-alias: {0,1,2}]
  %s3 = inlined_call_operand.vmem [shape: bf16[2,16,16,4], index: 3, kind: input, shape index: {}, may-alias: {3,4,5}]
  %s4 = inlined_call_operand.vmem [shape: bf16[2,16,16,4], index: 4, kind: input, shape index: {}, may-alias: {3,4,5}]
  %s5 = inlined_call_operand.vmem [shape: bf16[2,16,16,4], index: 5, kind: input, shape index: {}, may-alias: {3,4,5}]
  %s6 = inlined_call_operand.vmem [shape: bf16[3,24,8], index: 6, kind: input, shape index: {}]
  %s7 = inlined_call_operand.vmem [shape: f32[1,8], index: 7, kind: input, shape index: {}]
  %s8 = inlined_call_operand.vmem [shape: bf16[3,24,8], index: 8, kind: input, shape index: {}]
  %s9 = inlined_call_operand.vmem [shape: f32[1,8], index: 9, kind: input, shape index: {}]
  %s10 = inlined_call_operand.vmem [shape: f32[2,16,16,8], index: 10, kind: output, shape index: {}]
  %s11 = sld [smem:[#allocation0]]
  $region89: #{decoder_block_forward.1} parent=0
    _
  %s13 = ssub.s32 1, %s11
  %s14 = scalar_select 0, %s13, %s11
  loop: start=0, step=1, limit=6
  $region2: #{decoder_block_forward.1} parent=0 // loop_pre_header
    _
  $region3: #{decoder_block_forward.1} parent=0 // loop_header
    %s16 = sphi 0, %s20
    %p17 = scmp.ge.s32.totalorder %s16, 6
    %s23 = sphi 0, %s35
    %s24 = sphi 0, %s31
    %s25 = sphi 0, %s23
    %s26 = sphi 0, %s24
    %s27 = sphi 0, %s25
    %s28 = sphi 0, %s26
    %s40 = sphi 0, %s42
    %s43 = sphi 0, %s40
    %s44 = sphi 0, %s43
    %s60 = sphi 0, %s44
    %s76 = sphi 0, %s78
    %s79 = sphi 0, %s76
    %s80 = sphi 0, %s79
    %s96 = sphi 0, %s80
    %s112 = sphi 0, %s114
    %s115 = sphi 0, %s112
    %s116 = sphi 0, %s115
    %s132 = sphi 0, %s116
    %s140 = sphi 0, %s142
    %s143 = sphi 0, %s140
    %s144 = sphi 0, %s143
    %s160 = sphi 0, %s144
    %s176 = sphi 0, %s178
    %s179 = sphi 0, %s176
    %s180 = sphi 0, %s179
    %s196 = sphi 0, %s180
    %s212 = sphi 0, %s214
    %s215 = sphi 0, %s212
    %s216 = sphi 0, %s215
    %s232 = sphi 0, %s216
    %s236 = sphi 0, %s236
    %s238 = sphi 0, %s236
    %s239 = sphi 0, %s238
    %s253 = sphi 0, %s239
    %s257 = sphi 0, %s257
    %s259 = sphi 0, %s257
    %s260 = sphi 0, %s259
    %s274 = sphi 0, %s260
    %s278 = sphi 0, %s278
    %s280 = sphi 0, %s278
    %s281 = sphi 0, %s280
    %s295 = sphi 0, %s281
    %s299 = sphi 0, %s299
    %s301 = sphi 0, %s299
    %s302 = sphi 0, %s301
    %s316 = sphi 0, %s302
    %s324 = sphi 0, %s326
    %s327 = sphi 0, %s324
    %s328 = sphi 0, %s327
    %s344 = sphi 0, %s328
  $region4: #{decoder_block_forward.1} parent=0 // loop_header_branch
    %19 = sbr.rel (%p17) target = $region8
  $region5: #{decoder_block_forward.1} parent=0 // loop_body
    %s21 = ssub.s32 %s16, 1
    %s22 = ssub.s32 %s16, 2
    %s29 = sadd.s32 1, %s24
    %p30 = scmp.ge.s32.totalorder %s29, 2
    %s31 = scalar_select %p30, 0, %s29
    %s32 = sadd.s32 1, %s23
    %s33 = scalar_select %p30, %s32, %s23
    %p34 = scmp.ge.s32.totalorder %s33, 2
    %s35 = scalar_select %p34, 0, %s33
    %s36 = ssub.s32 %s23, %s35
    %s37 = ssub.s32 %s24, %s31
    %s38 = sor.u32 %s36, %s37
    %p39 = scmp.eq.s32.totalorder %s38, 0
    %s41 = sadd.s32 %s40, 1
    %s42 = scalar_select %p39, %s40, %s41
    %p45 = pneg %p39
    %p46 = scmp.eq.s32.totalorder %s16, 3
    %p47 = por %p45, %p46
    %p48 = scmp.ne.s32.totalorder %s40, %s43
    %p49 = scmp.eq.s32.totalorder %s16, 0
    %p50 = por %p48, %p49
    %p51 = scmp.ne.s32.totalorder %s40, %s43
    %p52 = scmp.eq.s32.totalorder %s21, 3
    %p53 = por %p51, %p52
    %p54 = scmp.ne.s32.totalorder %s43, %s44
    %p55 = scmp.eq.s32.totalorder %s21, 0
    %p56 = por %p54, %p55
    %p57 = scmp.ne.s32.totalorder %s43, %s44
    %p58 = scmp.eq.s32.totalorder %s22, 3
    %p59 = por %p57, %p58
    %p61 = scmp.ne.s32.totalorder %s44, %s60
    %p62 = scmp.eq.s32.totalorder %s22, 0
    %p63 = por %p61, %p62
    %s64 = smul.u32 %s24, 4
    %s65 = ssub.s32 %s64, 1
    %p66 = scmp.gt.s32.totalorder %s65, 0
    %s67 = scalar_select %p66, %s65, 0
    %s68 = smul.u32 %s31, 4
    %s69 = ssub.s32 %s68, 1
    %p70 = scmp.gt.s32.totalorder %s69, 0
    %s71 = scalar_select %p70, %s69, 0
    %s72 = ssub.s32 %s23, %s35
    %s73 = ssub.s32 %s67, %s71
    %s74 = sor.u32 %s72, %s73
    %p75 = scmp.eq.s32.totalorder %s74, 0
    %s77 = sadd.s32 %s76, 1
    %s78 = scalar_select %p75, %s76, %s77
    %p81 = pneg %p75
    %p82 = scmp.eq.s32.totalorder %s16, 3
    %p83 = por %p81, %p82
    %p84 = scmp.ne.s32.totalorder %s76, %s79
    %p85 = scmp.eq.s32.totalorder %s16, 0
    %p86 = por %p84, %p85
    %p87 = scmp.ne.s32.totalorder %s76, %s79
    %p88 = scmp.eq.s32.totalorder %s21, 3
    %p89 = por %p87, %p88
    %p90 = scmp.ne.s32.totalorder %s79, %s80
    %p91 = scmp.eq.s32.totalorder %s21, 0
    %p92 = por %p90, %p91
    %p93 = scmp.ne.s32.totalorder %s79, %s80
    %p94 = scmp.eq.s32.totalorder %s22, 3
    %p95 = por %p93, %p94
    %p97 = scmp.ne.s32.totalorder %s80, %s96
    %p98 = scmp.eq.s32.totalorder %s22, 0
    %p99 = por %p97, %p98
    %s100 = sadd.s32 %s24, 1
    %s101 = smul.u32 %s100, 4
    %p102 = scmp.lt.s32.totalorder %s101, 7
    %s103 = scalar_select %p102, %s101, 7
    %s104 = sadd.s32 %s31, 1
    %s105 = smul.u32 %s104, 4
    %p106 = scmp.lt.s32.totalorder %s105, 7
    %s107 = scalar_select %p106, %s105, 7
    %s108 = ssub.s32 %s23, %s35
    %s109 = ssub.s32 %s103, %s107
    %s110 = sor.u32 %s108, %s109
    %p111 = scmp.eq.s32.totalorder %s110, 0
    %s113 = sadd.s32 %s112, 1
    %s114 = scalar_select %p111, %s112, %s113
    %p117 = pneg %p111
    %p118 = scmp.eq.s32.totalorder %s16, 3
    %p119 = por %p117, %p118
    %p120 = scmp.ne.s32.totalorder %s112, %s115
    %p121 = scmp.eq.s32.totalorder %s16, 0
    %p122 = por %p120, %p121
    %p123 = scmp.ne.s32.totalorder %s112, %s115
    %p124 = scmp.eq.s32.totalorder %s21, 3
    %p125 = por %p123, %p124
    %p126 = scmp.ne.s32.totalorder %s115, %s116
    %p127 = scmp.eq.s32.totalorder %s21, 0
    %p128 = por %p126, %p127
    %p129 = scmp.ne.s32.totalorder %s115, %s116
    %p130 = scmp.eq.s32.totalorder %s22, 3
    %p131 = por %p129, %p130
    %p133 = scmp.ne.s32.totalorder %s116, %s132
    %p134 = scmp.eq.s32.totalorder %s22, 0
    %p135 = por %p133, %p134
    %s136 = ssub.s32 %s23, %s35
    %s137 = ssub.s32 %s24, %s31
    %s138 = sor.u32 %s136, %s137
    %p139 = scmp.eq.s32.totalorder %s138, 0
    %s141 = sadd.s32 %s140, 1
    %s142 = scalar_select %p139, %s140, %s141
    %p145 = pneg %p139
    %p146 = scmp.eq.s32.totalorder %s16, 3
    %p147 = por %p145, %p146
    %p148 = scmp.ne.s32.totalorder %s140, %s143
    %p149 = scmp.eq.s32.totalorder %s16, 0
    %p150 = por %p148, %p149
    %p151 = scmp.ne.s32.totalorder %s140, %s143
    %p152 = scmp.eq.s32.totalorder %s21, 3
    %p153 = por %p151, %p152
    %p154 = scmp.ne.s32.totalorder %s143, %s144
    %p155 = scmp.eq.s32.totalorder %s21, 0
    %p156 = por %p154, %p155
    %p157 = scmp.ne.s32.totalorder %s143, %s144
    %p158 = scmp.eq.s32.totalorder %s22, 3
    %p159 = por %p157, %p158
    %p161 = scmp.ne.s32.totalorder %s144, %s160
    %p162 = scmp.eq.s32.totalorder %s22, 0
    %p163 = por %p161, %p162
    %s164 = smul.u32 %s24, 4
    %s165 = ssub.s32 %s164, 1
    %p166 = scmp.gt.s32.totalorder %s165, 0
    %s167 = scalar_select %p166, %s165, 0
    %s168 = smul.u32 %s31, 4
    %s169 = ssub.s32 %s168, 1
    %p170 = scmp.gt.s32.totalorder %s169, 0
    %s171 = scalar_select %p170, %s169, 0
    %s172 = ssub.s32 %s23, %s35
    %s173 = ssub.s32 %s167, %s171
    %s174 = sor.u32 %s172, %s173
    %p175 = scmp.eq.s32.totalorder %s174, 0
    %s177 = sadd.s32 %s176, 1
    %s178 = scalar_select %p175, %s176, %s177
    %p181 = pneg %p175
    %p182 = scmp.eq.s32.totalorder %s16, 3
    %p183 = por %p181, %p182
    %p184 = scmp.ne.s32.totalorder %s176, %s179
    %p185 = scmp.eq.s32.totalorder %s16, 0
    %p186 = por %p184, %p185
    %p187 = scmp.ne.s32.totalorder %s176, %s179
    %p188 = scmp.eq.s32.totalorder %s21, 3
    %p189 = por %p187, %p188
    %p190 = scmp.ne.s32.totalorder %s179, %s180
    %p191 = scmp.eq.s32.totalorder %s21, 0
    %p192 = por %p190, %p191
    %p193 = scmp.ne.s32.totalorder %s179, %s180
    %p194 = scmp.eq.s32.totalorder %s22, 3
    %p195 = por %p193, %p194
    %p197 = scmp.ne.s32.totalorder %s180, %s196
    %p198 = scmp.eq.s32.totalorder %s22, 0
    %p199 = por %p197, %p198
    %s200 = sadd.s32 %s24, 1
    %s201 = smul.u32 %s200, 4
    %p202 = scmp.lt.s32.totalorder %s201, 7
    %s203 = scalar_select %p202, %s201, 7
    %s204 = sadd.s32 %s31, 1
    %s205 = smul.u32 %s204, 4
    %p206 = scmp.lt.s32.totalorder %s205, 7
    %s207 = scalar_select %p206, %s205, 7
    %s208 = ssub.s32 %s23, %s35
    %s209 = ssub.s32 %s203, %s207
    %s210 = sor.u32 %s208, %s209
    %p211 = scmp.eq.s32.totalorder %s210, 0
    %s213 = sadd.s32 %s212, 1
    %s214 = scalar_select %p211, %s212, %s213
    %p217 = pneg %p211
    %p218 = scmp.eq.s32.totalorder %s16, 3
    %p219 = por %p217, %p218
    %p220 = scmp.ne.s32.totalorder %s212, %s215
    %p221 = scmp.eq.s32.totalorder %s16, 0
    %p222 = por %p220, %p221
    %p223 = scmp.ne.s32.totalorder %s212, %s215
    %p224 = scmp.eq.s32.totalorder %s21, 3
    %p225 = por %p223, %p224
    %p226 = scmp.ne.s32.totalorder %s215, %s216
    %p227 = scmp.eq.s32.totalorder %s21, 0
    %p228 = por %p226, %p227
    %p229 = scmp.ne.s32.totalorder %s215, %s216
    %p230 = scmp.eq.s32.totalorder %s22, 3
    %p231 = por %p229, %p230
    %p233 = scmp.ne.s32.totalorder %s216, %s232
    %p234 = scmp.eq.s32.totalorder %s22, 0
    %p235 = por %p233, %p234
    %s237 = sadd.s32 %s236, 1
    %p240 = scmp.eq.s32.totalorder %s16, 3
    %p241 = scmp.ne.s32.totalorder %s236, %s238
    %p242 = scmp.eq.s32.totalorder %s16, 0
    %p243 = por %p241, %p242
    %p244 = scmp.ne.s32.totalorder %s236, %s238
    %p245 = scmp.eq.s32.totalorder %s21, 3
    %p246 = por %p244, %p245
    %p247 = scmp.ne.s32.totalorder %s238, %s239
    %p248 = scmp.eq.s32.totalorder %s21, 0
    %p249 = por %p247, %p248
    %p250 = scmp.ne.s32.totalorder %s238, %s239
    %p251 = scmp.eq.s32.totalorder %s22, 3
    %p252 = por %p250, %p251
    %p254 = scmp.ne.s32.totalorder %s239, %s253
    %p255 = scmp.eq.s32.totalorder %s22, 0
    %p256 = por %p254, %p255
    %s258 = sadd.s32 %s257, 1
    %p261 = scmp.eq.s32.totalorder %s16, 3
    %p262 = scmp.ne.s32.totalorder %s257, %s259
    %p263 = scmp.eq.s32.totalorder %s16, 0
    %p264 = por %p262, %p263
    %p265 = scmp.ne.s32.totalorder %s257, %s259
    %p266 = scmp.eq.s32.totalorder %s21, 3
    %p267 = por %p265, %p266
    %p268 = scmp.ne.s32.totalorder %s259, %s260
    %p269 = scmp.eq.s32.totalorder %s21, 0
    %p270 = por %p268, %p269
    %p271 = scmp.ne.s32.totalorder %s259, %s260
    %p272 = scmp.eq.s32.totalorder %s22, 3
    %p273 = por %p271, %p272
    %p275 = scmp.ne.s32.totalorder %s260, %s274
    %p276 = scmp.eq.s32.totalorder %s22, 0
    %p277 = por %p275, %p276
    %s279 = sadd.s32 %s278, 1
    %p282 = scmp.eq.s32.totalorder %s16, 3
    %p283 = scmp.ne.s32.totalorder %s278, %s280
    %p284 = scmp.eq.s32.totalorder %s16, 0
    %p285 = por %p283, %p284
    %p286 = scmp.ne.s32.totalorder %s278, %s280
    %p287 = scmp.eq.s32.totalorder %s21, 3
    %p288 = por %p286, %p287
    %p289 = scmp.ne.s32.totalorder %s280, %s281
    %p290 = scmp.eq.s32.totalorder %s21, 0
    %p291 = por %p289, %p290
    %p292 = scmp.ne.s32.totalorder %s280, %s281
    %p293 = scmp.eq.s32.totalorder %s22, 3
    %p294 = por %p292, %p293
    %p296 = scmp.ne.s32.totalorder %s281, %s295
    %p297 = scmp.eq.s32.totalorder %s22, 0
    %p298 = por %p296, %p297
    %s300 = sadd.s32 %s299, 1
    %p303 = scmp.eq.s32.totalorder %s16, 3
    %p304 = scmp.ne.s32.totalorder %s299, %s301
    %p305 = scmp.eq.s32.totalorder %s16, 0
    %p306 = por %p304, %p305
    %p307 = scmp.ne.s32.totalorder %s299, %s301
    %p308 = scmp.eq.s32.totalorder %s21, 3
    %p309 = por %p307, %p308
    %p310 = scmp.ne.s32.totalorder %s301, %s302
    %p311 = scmp.eq.s32.totalorder %s21, 0
    %p312 = por %p310, %p311
    %p313 = scmp.ne.s32.totalorder %s301, %s302
    %p314 = scmp.eq.s32.totalorder %s22, 3
    %p315 = por %p313, %p314
    %p317 = scmp.ne.s32.totalorder %s302, %s316
    %p318 = scmp.eq.s32.totalorder %s22, 0
    %p319 = por %p317, %p318
    %s320 = ssub.s32 %s23, %s35
    %s321 = ssub.s32 %s24, %s31
    %s322 = sor.u32 %s320, %s321
    %p323 = scmp.eq.s32.totalorder %s322, 0
    %s325 = sadd.s32 %s324, 1
    %s326 = scalar_select %p323, %s324, %s325
    %p329 = pneg %p323
    %p330 = scmp.eq.s32.totalorder %s16, 3
    %p331 = por %p329, %p330
    %p332 = scmp.ne.s32.totalorder %s324, %s327
    %p333 = scmp.eq.s32.totalorder %s16, 0
    %p334 = por %p332, %p333
    %p335 = scmp.ne.s32.totalorder %s324, %s327
    %p336 = scmp.eq.s32.totalorder %s21, 3
    %p337 = por %p335, %p336
    %p338 = scmp.ne.s32.totalorder %s327, %s328
    %p339 = scmp.eq.s32.totalorder %s21, 0
    %p340 = por %p338, %p339
    %p341 = scmp.ne.s32.totalorder %s327, %s328
    %p342 = scmp.eq.s32.totalorder %s22, 3
    %p343 = por %p341, %p342
    %p345 = scmp.ne.s32.totalorder %s328, %s344
    %p346 = scmp.eq.s32.totalorder %s22, 0
    %p347 = por %p345, %p346
    %p348 = scmp.le.s32.totalorder 1, %s16
    %p349 = scmp.lt.s32.totalorder %s16, 5
    %p350 = pnand %p348, %p349
    %p351 = pneg %p350
    // Predicated region
    $region9: #{decoder_block_forward.1} parent=5 // pred_check
      _
    $region10: #{decoder_block_forward.1} parent=5 // pred_check_branch
      %353 = sbr.rel (%p350) target = $region12
    $region11: #{decoder_block_forward.1} parent=5 // pred_region
      %s354 = ssub.s32 %s16, 1
      // Predicated region
      $region13: #{decoder_block_forward.1} parent=11 // pred_check
        %p355 = pneg %p249
      $region14: #{decoder_block_forward.1} parent=11 // pred_check_branch
        %357 = sbr.rel (%p355) target = $region16
      $region15: #{decoder_block_forward.1} parent=11 // pred_region
        _
      $region16: #{decoder_block_forward.1} parent=11 // pred_fallthru
        _
      // Predicated region
      $region17: #{decoder_block_forward.1} parent=11 // pred_check
        %p358 = pneg %p270
      $region18: #{decoder_block_forward.1} parent=11 // pred_check_branch
        %360 = sbr.rel (%p358) target = $region20
      $region19: #{decoder_block_forward.1} parent=11 // pred_region
        _
      $region20: #{decoder_block_forward.1} parent=11 // pred_fallthru
        _
      // Predicated region
      $region21: #{decoder_block_forward.1} parent=11 // pred_check
        %p361 = pneg %p291
      $region22: #{decoder_block_forward.1} parent=11 // pred_check_branch
        %363 = sbr.rel (%p361) target = $region24
      $region23: #{decoder_block_forward.1} parent=11 // pred_region
        _
      $region24: #{decoder_block_forward.1} parent=11 // pred_fallthru
        _
      // Predicated region
      $region25: #{decoder_block_forward.1} parent=11 // pred_check
        %p364 = pneg %p312
      $region26: #{decoder_block_forward.1} parent=11 // pred_check_branch
        %366 = sbr.rel (%p364) target = $region28
      $region27: #{decoder_block_forward.1} parent=11 // pred_region
        _
      $region28: #{decoder_block_forward.1} parent=11 // pred_fallthru
        _
    $region12: #{decoder_block_forward.1} parent=5 // pred_fallthru
      _
    %p367 = scmp.lt.s32.totalorder %s16, 4
    // Predicated region
    $region29: #{decoder_block_forward.1} parent=5 // pred_check
      %p368 = pneg %p367
    $region30: #{decoder_block_forward.1} parent=5 // pred_check_branch
      %370 = sbr.rel (%p368) target = $region32
    $region31: #{decoder_block_forward.1} parent=5 // pred_region
      // Predicated region
      $region33: #{decoder_block_forward.1} parent=31 // pred_check
        %p371 = pneg %p50
      $region34: #{decoder_block_forward.1} parent=31 // pred_check_branch
        %373 = sbr.rel (%p371) target = $region36
      $region35: #{decoder_block_forward.1} parent=31 // pred_region
        %s374 = smul.u32 4, %s24
        %p375 = scmp.lt.s32.totalorder %s23, 1
        %s376 = scalar_select %p375, %s23, 1
        %p377 = scmp.lt.s32.totalorder %s374, 7
        %s378 = scalar_select %p377, %s374, 7
        %s379 = smul.addr %s378, 2
        %s380 = smul.addr %s376, 16
        %s381 = sadd.s32 %s379, %s380
        %s382 = smul.addr %s381, 4
        %s383 = scalar_lea.vmem %s0, %s382
        %s384 = smul.u32 4, %s24
      $region36: #{decoder_block_forward.1} parent=31 // pred_fallthru
        _
      // Predicated region
      $region37: #{decoder_block_forward.1} parent=31 // pred_check
        %p385 = pneg %p86
      $region38: #{decoder_block_forward.1} parent=31 // pred_check_branch
        %387 = sbr.rel (%p385) target = $region40
      $region39: #{decoder_block_forward.1} parent=31 // pred_region
        %s388 = smul.u32 %s24, 4
        %s389 = ssub.s32 %s388, 1
        %p390 = scmp.gt.s32.totalorder %s389, 0
        %s391 = scalar_select %p390, %s389, 0
        %p392 = scmp.lt.s32.totalorder %s23, 1
        %s393 = scalar_select %p392, %s23, 1
        %p394 = scmp.lt.s32.totalorder %s391, 7
        %s395 = scalar_select %p394, %s391, 7
        %s396 = smul.addr %s395, 2
        %s397 = smul.addr %s393, 16
        %s398 = sadd.s32 %s396, %s397
        %s399 = smul.addr %s398, 4
        %s400 = scalar_lea.vmem %s1, %s399
        %s401 = smul.u32 %s24, 4
        %s402 = ssub.s32 %s401, 1
        %p403 = scmp.gt.s32.totalorder %s402, 0
        %s404 = scalar_select %p403, %s402, 0
      $region40: #{decoder_block_forward.1} parent=31 // pred_fallthru
        _
      // Predicated region
      $region41: #{decoder_block_forward.1} parent=31 // pred_check
        %p405 = pneg %p122
      $region42: #{decoder_block_forward.1} parent=31 // pred_check_branch
        %407 = sbr.rel (%p405) target = $region44
      $region43: #{decoder_block_forward.1} parent=31 // pred_region
        %s408 = sadd.s32 %s24, 1
        %s409 = smul.u32 %s408, 4
        %p410 = scmp.lt.s32.totalorder %s409, 7
        %s411 = scalar_select %p410, %s409, 7
        %p412 = scmp.lt.s32.totalorder %s23, 1
        %s413 = scalar_select %p412, %s23, 1
        %p414 = scmp.lt.s32.totalorder %s411, 7
        %s415 = scalar_select %p414, %s411, 7
        %s416 = smul.addr %s415, 2
        %s417 = smul.addr %s413, 16
        %s418 = sadd.s32 %s416, %s417
        %s419 = smul.addr %s418, 4
        %s420 = scalar_lea.vmem %s2, %s419
        %s421 = sadd.s32 %s24, 1
        %s422 = smul.u32 %s421, 4
        %p423 = scmp.lt.s32.totalorder %s422, 7
        %s424 = scalar_select %p423, %s422, 7
      $region44: #{decoder_block_forward.1} parent=31 // pred_fallthru
        _
      // Predicated region
      $region45: #{decoder_block_forward.1} parent=31 // pred_check
        %p425 = pneg %p150
      $region46: #{decoder_block_forward.1} parent=31 // pred_check_branch
        %427 = sbr.rel (%p425) target = $region48
      $region47: #{decoder_block_forward.1} parent=31 // pred_region
        %s428 = smul.u32 8, %s24
        %p429 = scmp.lt.s32.totalorder %s23, 1
        %s430 = scalar_select %p429, %s23, 1
        %p431 = scmp.lt.s32.totalorder %s428, 15
        %s432 = scalar_select %p431, %s428, 15
        %s433 = smul.addr %s432, 2
        %s434 = smul.addr %s430, 32
        %s435 = sadd.s32 %s433, %s434
        %s436 = smul.addr %s435, 4
        %s437 = scalar_lea.vmem %s3, %s436
        %s438 = smul.u32 8, %s24
      $region48: #{decoder_block_forward.1} parent=31 // pred_fallthru
        _
      // Predicated region
      $region49: #{decoder_block_forward.1} parent=31 // pred_check
        %p439 = pneg %p186
      $region50: #{decoder_block_forward.1} parent=31 // pred_check_branch
        %441 = sbr.rel (%p439) target = $region52
      $region51: #{decoder_block_forward.1} parent=31 // pred_region
        %s442 = smul.u32 %s24, 4
        %s443 = ssub.s32 %s442, 1
        %p444 = scmp.gt.s32.totalorder %s443, 0
        %s445 = scalar_select %p444, %s443, 0
        %s446 = smul.u32 2, %s445
        %p447 = scmp.lt.s32.totalorder %s23, 1
        %s448 = scalar_select %p447, %s23, 1
        %p449 = scmp.lt.s32.totalorder %s446, 15
        %s450 = scalar_select %p449, %s446, 15
        %s451 = smul.addr %s450, 2
        %s452 = smul.addr %s448, 32
        %s453 = sadd.s32 %s451, %s452
        %s454 = smul.addr %s453, 4
        %s455 = scalar_lea.vmem %s4, %s454
        %s456 = smul.u32 %s24, 4
        %s457 = ssub.s32 %s456, 1
        %p458 = scmp.gt.s32.totalorder %s457, 0
        %s459 = scalar_select %p458, %s457, 0
        %s460 = smul.u32 2, %s459
      $region52: #{decoder_block_forward.1} parent=31 // pred_fallthru
        _
      // Predicated region
      $region53: #{decoder_block_forward.1} parent=31 // pred_check
        %p461 = pneg %p222
      $region54: #{decoder_block_forward.1} parent=31 // pred_check_branch
        %463 = sbr.rel (%p461) target = $region56
      $region55: #{decoder_block_forward.1} parent=31 // pred_region
        %s464 = sadd.s32 %s24, 1
        %s465 = smul.u32 %s464, 4
        %p466 = scmp.lt.s32.totalorder %s465, 7
        %s467 = scalar_select %p466, %s465, 7
        %s468 = smul.u32 2, %s467
        %p469 = scmp.lt.s32.totalorder %s23, 1
        %s470 = scalar_select %p469, %s23, 1
        %p471 = scmp.lt.s32.totalorder %s468, 15
        %s472 = scalar_select %p471, %s468, 15
        %s473 = smul.addr %s472, 2
        %s474 = smul.addr %s470, 32
        %s475 = sadd.s32 %s473, %s474
        %s476 = smul.addr %s475, 4
        %s477 = scalar_lea.vmem %s5, %s476
        %s478 = sadd.s32 %s24, 1
        %s479 = smul.u32 %s478, 4
        %p480 = scmp.lt.s32.totalorder %s479, 7
        %s481 = scalar_select %p480, %s479, 7
        %s482 = smul.u32 2, %s481
      $region56: #{decoder_block_forward.1} parent=31 // pred_fallthru
        _
    $region32: #{decoder_block_forward.1} parent=5 // pred_fallthru
      _
    %p483 = scmp.le.s32.totalorder 1, %s16
    %p484 = scmp.lt.s32.totalorder %s16, 5
    %p485 = pnand %p483, %p484
    %p486 = pneg %p485
    // Predicated region
    $region57: #{decoder_block_forward.1} parent=5 // pred_check
      _
    $region58: #{decoder_block_forward.1} parent=5 // pred_check_branch
      %488 = sbr.rel (%p485) target = $region60
    $region59: #{decoder_block_forward.1} parent=5 // pred_region
      %s489 = ssub.s32 %s16, 1
      %s490 = smul.u32 4, %s26
      %p491 = scmp.lt.s32.totalorder %s25, 1
      %s492 = scalar_select %p491, %s25, 1
      %p493 = scmp.lt.s32.totalorder %s490, 7
      %s494 = scalar_select %p493, %s490, 7
      %s495 = smul.addr %s494, 2
      %s496 = smul.addr %s492, 16
      %s497 = sadd.s32 %s495, %s496
      %s498 = smul.addr %s497, 4
      %s499 = scalar_lea.vmem %s0, %s498
      %p500 = pneg %p56
      %p501 = pneg %p53
      %s502 = smul.u32 %s26, 4
      %s503 = ssub.s32 %s502, 1
      %p504 = scmp.gt.s32.totalorder %s503, 0
      %s505 = scalar_select %p504, %s503, 0
      %p506 = scmp.lt.s32.totalorder %s25, 1
      %s507 = scalar_select %p506, %s25, 1
      %p508 = scmp.lt.s32.totalorder %s505, 7
      %s509 = scalar_select %p508, %s505, 7
      %s510 = smul.addr %s509, 2
      %s511 = smul.addr %s507, 16
      %s512 = sadd.s32 %s510, %s511
      %s513 = smul.addr %s512, 4
      %s514 = scalar_lea.vmem %s1, %s513
      %p515 = pneg %p92
      %p516 = pneg %p89
      %s517 = sadd.s32 %s26, 1
      %s518 = smul.u32 %s517, 4
      %p519 = scmp.lt.s32.totalorder %s518, 7
      %s520 = scalar_select %p519, %s518, 7
      %p521 = scmp.lt.s32.totalorder %s25, 1
      %s522 = scalar_select %p521, %s25, 1
      %p523 = scmp.lt.s32.totalorder %s520, 7
      %s524 = scalar_select %p523, %s520, 7
      %s525 = smul.addr %s524, 2
      %s526 = smul.addr %s522, 16
      %s527 = sadd.s32 %s525, %s526
      %s528 = smul.addr %s527, 4
      %s529 = scalar_lea.vmem %s2, %s528
      %p530 = pneg %p128
      %p531 = pneg %p125
      %s532 = smul.u32 8, %s26
      %p533 = scmp.lt.s32.totalorder %s25, 1
      %s534 = scalar_select %p533, %s25, 1
      %p535 = scmp.lt.s32.totalorder %s532, 15
      %s536 = scalar_select %p535, %s532, 15
      %s537 = smul.addr %s536, 2
      %s538 = smul.addr %s534, 32
      %s539 = sadd.s32 %s537, %s538
      %s540 = smul.addr %s539, 4
      %s541 = scalar_lea.vmem %s3, %s540
      %p542 = pneg %p156
      %p543 = pneg %p153
      %s544 = smul.u32 %s26, 4
      %s545 = ssub.s32 %s544, 1
      %p546 = scmp.gt.s32.totalorder %s545, 0
      %s547 = scalar_select %p546, %s545, 0
      %s548 = smul.u32 2, %s547
      %p549 = scmp.lt.s32.totalorder %s25, 1
      %s550 = scalar_select %p549, %s25, 1
      %p551 = scmp.lt.s32.totalorder %s548, 15
      %s552 = scalar_select %p551, %s548, 15
      %s553 = smul.addr %s552, 2
      %s554 = smul.addr %s550, 32
      %s555 = sadd.s32 %s553, %s554
      %s556 = smul.addr %s555, 4
      %s557 = scalar_lea.vmem %s4, %s556
      %p558 = pneg %p192
      %p559 = pneg %p189
      %s560 = sadd.s32 %s26, 1
      %s561 = smul.u32 %s560, 4
      %p562 = scmp.lt.s32.totalorder %s561, 7
      %s563 = scalar_select %p562, %s561, 7
      %s564 = smul.u32 2, %s563
      %p565 = scmp.lt.s32.totalorder %s25, 1
      %s566 = scalar_select %p565, %s25, 1
      %p567 = scmp.lt.s32.totalorder %s564, 15
      %s568 = scalar_select %p567, %s564, 15
      %s569 = smul.addr %s568, 2
      %s570 = smul.addr %s566, 32
      %s571 = sadd.s32 %s569, %s570
      %s572 = smul.addr %s571, 4
      %s573 = scalar_lea.vmem %s5, %s572
      %p574 = pneg %p228
      %p575 = pneg %p225
      %p576 = pneg %p249
      %p577 = pneg %p246
      %p578 = pneg %p270
      %p579 = pneg %p267
      %p580 = pneg %p291
      %p581 = pneg %p288
      %p582 = pneg %p312
      %p583 = pneg %p309
      %p584 = pneg %p340
      %p585 = pneg %p337
      %s586 = smul.u32 8, %s26
      %p587 = scmp.lt.s32.totalorder %s25, 1
      %s588 = scalar_select %p587, %s25, 1
      %p589 = scmp.lt.s32.totalorder %s586, 15
      %s590 = scalar_select %p589, %s586, 15
      %s591 = smul.addr %s590, 2
      %s592 = smul.addr %s588, 32
      %s593 = sadd.s32 %s591, %s592
      %s594 = smul.addr %s593, 8
      %s595 = scalar_lea.vmem %s10, %s594
      %s596 = smul.u32 4, %s26
      %p597 = scmp.lt.s32.totalorder %s25, 1
      %s598 = scalar_select %p597, %s25, 1
      %p599 = scmp.lt.s32.totalorder %s596, 7
      %s600 = scalar_select %p599, %s596, 7
      %s601 = smul.addr %s600, 2
      %s602 = smul.addr %s598, 16
      %s603 = sadd.s32 %s601, %s602
      %s604 = smul.addr %s603, 4
      %s605 = scalar_lea.vmem %s0, %s604
      %s606 = smul.u32 4, %s26
      %s607 = smul.u32 %s26, 4
      %s608 = ssub.s32 %s607, 1
      %p609 = scmp.gt.s32.totalorder %s608, 0
      %s610 = scalar_select %p609, %s608, 0
      %p611 = scmp.lt.s32.totalorder %s25, 1
      %s612 = scalar_select %p611, %s25, 1
      %p613 = scmp.lt.s32.totalorder %s610, 7
      %s614 = scalar_select %p613, %s610, 7
      %s615 = smul.addr %s614, 2
      %s616 = smul.addr %s612, 16
      %s617 = sadd.s32 %s615, %s616
      %s618 = smul.addr %s617, 4
      %s619 = scalar_lea.vmem %s1, %s618
      %s620 = smul.u32 %s26, 4
      %s621 = ssub.s32 %s620, 1
      %p622 = scmp.gt.s32.totalorder %s621, 0
      %s623 = scalar_select %p622, %s621, 0
      %s624 = sadd.s32 %s26, 1
      %s625 = smul.u32 %s624, 4
      %p626 = scmp.lt.s32.totalorder %s625, 7
      %s627 = scalar_select %p626, %s625, 7
      %p628 = scmp.lt.s32.totalorder %s25, 1
      %s629 = scalar_select %p628, %s25, 1
      %p630 = scmp.lt.s32.totalorder %s627, 7
      %s631 = scalar_select %p630, %s627, 7
      %s632 = smul.addr %s631, 2
      %s633 = smul.addr %s629, 16
      %s634 = sadd.s32 %s632, %s633
      %s635 = smul.addr %s634, 4
      %s636 = scalar_lea.vmem %s2, %s635
      %s637 = sadd.s32 %s26, 1
      %s638 = smul.u32 %s637, 4
      %p639 = scmp.lt.s32.totalorder %s638, 7
      %s640 = scalar_select %p639, %s638, 7
      %s641 = smul.u32 8, %s26
      %p642 = scmp.lt.s32.totalorder %s25, 1
      %s643 = scalar_select %p642, %s25, 1
      %p644 = scmp.lt.s32.totalorder %s641, 15
      %s645 = scalar_select %p644, %s641, 15
      %s646 = smul.addr %s645, 2
      %s647 = smul.addr %s643, 32
      %s648 = sadd.s32 %s646, %s647
      %s649 = smul.addr %s648, 4
      %s650 = scalar_lea.vmem %s3, %s649
      %s651 = smul.u32 8, %s26
      %s652 = smul.u32 %s26, 4
      %s653 = ssub.s32 %s652, 1
      %p654 = scmp.gt.s32.totalorder %s653, 0
      %s655 = scalar_select %p654, %s653, 0
      %s656 = smul.u32 2, %s655
      %p657 = scmp.lt.s32.totalorder %s25, 1
      %s658 = scalar_select %p657, %s25, 1
      %p659 = scmp.lt.s32.totalorder %s656, 15
      %s660 = scalar_select %p659, %s656, 15
      %s661 = smul.addr %s660, 2
      %s662 = smul.addr %s658, 32
      %s663 = sadd.s32 %s661, %s662
      %s664 = smul.addr %s663, 4
      %s665 = scalar_lea.vmem %s4, %s664
      %s666 = smul.u32 %s26, 4
      %s667 = ssub.s32 %s666, 1
      %p668 = scmp.gt.s32.totalorder %s667, 0
      %s669 = scalar_select %p668, %s667, 0
      %s670 = smul.u32 2, %s669
      %s671 = sadd.s32 %s26, 1
      %s672 = smul.u32 %s671, 4
      %p673 = scmp.lt.s32.totalorder %s672, 7
      %s674 = scalar_select %p673, %s672, 7
      %s675 = smul.u32 2, %s674
      %p676 = scmp.lt.s32.totalorder %s25, 1
      %s677 = scalar_select %p676, %s25, 1
      %p678 = scmp.lt.s32.totalorder %s675, 15
      %s679 = scalar_select %p678, %s675, 15
      %s680 = smul.addr %s679, 2
      %s681 = smul.addr %s677, 32
      %s682 = sadd.s32 %s680, %s681
      %s683 = smul.addr %s682, 4
      %s684 = scalar_lea.vmem %s5, %s683
      %s685 = sadd.s32 %s26, 1
      %s686 = smul.u32 %s685, 4
      %p687 = scmp.lt.s32.totalorder %s686, 7
      %s688 = scalar_select %p687, %s686, 7
      %s689 = smul.u32 2, %s688
      %s690 = smul.u32 8, %s26
      %p691 = scmp.lt.s32.totalorder %s25, 1
      %s692 = scalar_select %p691, %s25, 1
      %p693 = scmp.lt.s32.totalorder %s690, 15
      %s694 = scalar_select %p693, %s690, 15
      %s695 = smul.addr %s694, 2
      %s696 = smul.addr %s692, 32
      %s697 = sadd.s32 %s695, %s696
      %s698 = smul.addr %s697, 8
      %s699 = scalar_lea.vmem %s10, %s698
      %s700 = smul.u32 8, %s26
      %v702 = vld [vmem:[%s619] sm:$0xf]
      %v703 = vld [vmem:[%s619 + $0x4] sm:$0xf]
      %v704 = vld [vmem:[%s605] sm:$0xf]
      %v705 = vld [vmem:[%s605 + $0x4] sm:$0xf]
      %v706 = vld [vmem:[%s605 + $0x8] sm:$0xf]
      %v707 = vld [vmem:[%s605 + $0xc] sm:$0xf]
      %v708 = vld [vmem:[%s605 + $0x10] sm:$0xf]
      %v709 = vld [vmem:[%s605 + $0x14] sm:$0xf]
      %v710 = vld [vmem:[%s605 + $0x18] sm:$0xf]
      %v711 = vld [vmem:[%s605 + $0x1c] sm:$0xf]
      %v712 = vld [vmem:[%s636] sm:$0xf]
      %v713 = vld [vmem:[%s636 + $0x4] sm:$0xf]
      %v714 = vld [vmem:[%s665] sm:$0xf]
      %v715 = vld [vmem:[%s665 + $0x4] sm:$0xf]
      %v716 = vld [vmem:[%s665 + $0x8] sm:$0xf]
      %v717 = vld [vmem:[%s665 + $0xc] sm:$0xf]
      %v718 = vld [vmem:[%s650] sm:$0xf]
      %v719 = vld [vmem:[%s650 + $0x4] sm:$0xf]
      %v720 = vld [vmem:[%s650 + $0x8] sm:$0xf]
      %v721 = vld [vmem:[%s650 + $0xc] sm:$0xf]
      %v722 = vld [vmem:[%s650 + $0x10] sm:$0xf]
      %v723 = vld [vmem:[%s650 + $0x14] sm:$0xf]
      %v724 = vld [vmem:[%s650 + $0x18] sm:$0xf]
      %v725 = vld [vmem:[%s650 + $0x1c] sm:$0xf]
      %v726 = vld [vmem:[%s650 + $0x20] sm:$0xf]
      %v727 = vld [vmem:[%s650 + $0x24] sm:$0xf]
      %v728 = vld [vmem:[%s650 + $0x28] sm:$0xf]
      %v729 = vld [vmem:[%s650 + $0x2c] sm:$0xf]
      %v730 = vld [vmem:[%s650 + $0x30] sm:$0xf]
      %v731 = vld [vmem:[%s650 + $0x34] sm:$0xf]
      %v732 = vld [vmem:[%s650 + $0x38] sm:$0xf]
      %v733 = vld [vmem:[%s650 + $0x3c] sm:$0xf]
      %v734 = vld [vmem:[%s684] sm:$0xf]
      %v735 = vld [vmem:[%s684 + $0x4] sm:$0xf]
      %v736 = vld [vmem:[%s684 + $0x8] sm:$0xf]
      %v737 = vld [vmem:[%s684 + $0xc] sm:$0xf]
      %750 = vrot.lane.b32.xlu0 %v702, 8
      %v751 = vpop.permute.xlu0 %750
      %752 = vrot.lane.b32.xlu0 %v703, 8
      %v753 = vpop.permute.xlu0 %752
      %754 = vrot.lane.b32.xlu0 %v704, 8
      %v755 = vpop.permute.xlu0 %754
      %756 = vrot.lane.b32.xlu0 %v705, 8
      %v757 = vpop.permute.xlu0 %756
      %758 = vrot.lane.b32.xlu0 %v706, 8
      %v759 = vpop.permute.xlu0 %758
      %760 = vrot.lane.b32.xlu0 %v707, 8
      %v761 = vpop.permute.xlu0 %760
      %762 = vrot.lane.b32.xlu0 %v708, 8
      %v763 = vpop.permute.xlu0 %762
      %764 = vrot.lane.b32.xlu0 %v709, 8
      %v765 = vpop.permute.xlu0 %764
      %766 = vrot.lane.b32.xlu0 %v710, 8
      %v767 = vpop.permute.xlu0 %766
      %768 = vrot.lane.b32.xlu0 %v711, 8
      %v769 = vpop.permute.xlu0 %768
      %770 = vrot.lane.b32.xlu0 %v712, 8
      %v771 = vpop.permute.xlu0 %770
      %772 = vrot.lane.b32.xlu0 %v713, 8
      %v773 = vpop.permute.xlu0 %772
      %vm786 = vcmask 93248
      %787 = vst.msk [vmem:[#allocation2] sm:$0xf] %vm786, %v751
      %788 = vst.msk [vmem:[#allocation2 + $0x4] sm:$0xf] %vm786, %v753
      %789 = vst.msk [vmem:[#allocation2 + $0x8] sm:$0xf] %vm786, %v751
      %790 = vst.msk [vmem:[#allocation2 + $0xc] sm:$0xf] %vm786, %v753
      %791 = vst.msk [vmem:[#allocation2 + $0x10] sm:$0xf] %vm786, %v755
      %792 = vst.msk [vmem:[#allocation2 + $0x14] sm:$0xf] %vm786, %v757
      %793 = vst.msk [vmem:[#allocation2 + $0x18] sm:$0xf] %vm786, %v755
      %794 = vst.msk [vmem:[#allocation2 + $0x1c] sm:$0xf] %vm786, %v757
      %795 = vst.msk [vmem:[#allocation2 + $0x20] sm:$0xf] %vm786, %v759
      %796 = vst.msk [vmem:[#allocation2 + $0x24] sm:$0xf] %vm786, %v761
      %797 = vst.msk [vmem:[#allocation2 + $0x28] sm:$0xf] %vm786, %v759
      %798 = vst.msk [vmem:[#allocation2 + $0x2c] sm:$0xf] %vm786, %v761
      %799 = vst.msk [vmem:[#allocation2 + $0x30] sm:$0xf] %vm786, %v763
      %800 = vst.msk [vmem:[#allocation2 + $0x34] sm:$0xf] %vm786, %v765
      %801 = vst.msk [vmem:[#allocation2 + $0x38] sm:$0xf] %vm786, %v763
      %802 = vst.msk [vmem:[#allocation2 + $0x3c] sm:$0xf] %vm786, %v765
      %803 = vst.msk [vmem:[#allocation2 + $0x40] sm:$0xf] %vm786, %v767
      %804 = vst.msk [vmem:[#allocation2 + $0x44] sm:$0xf] %vm786, %v769
      %805 = vst.msk [vmem:[#allocation2 + $0x48] sm:$0xf] %vm786, %v767
      %806 = vst.msk [vmem:[#allocation2 + $0x4c] sm:$0xf] %vm786, %v769
      %807 = vst.msk [vmem:[#allocation2 + $0x50] sm:$0xf] %vm786, %v771
      %808 = vst.msk [vmem:[#allocation2 + $0x54] sm:$0xf] %vm786, %v773
      %809 = vst.msk [vmem:[#allocation2 + $0x58] sm:$0xf] %vm786, %v771
      %810 = vst.msk [vmem:[#allocation2 + $0x5c] sm:$0xf] %vm786, %v773
      %835 = vrot.lane.b32.xlu0 %v714, 12
      %v836 = vpop.permute.xlu0 %835
      %837 = vrot.lane.b32.xlu0 %v715, 12
      %v838 = vpop.permute.xlu0 %837
      %839 = vrot.lane.b32.xlu0 %v716, 12
      %v840 = vpop.permute.xlu0 %839
      %841 = vrot.lane.b32.xlu0 %v717, 12
      %v842 = vpop.permute.xlu0 %841
      %843 = vrot.lane.b32.xlu0 %v718, 12
      %v844 = vpop.permute.xlu0 %843
      %845 = vrot.lane.b32.xlu0 %v719, 12
      %v846 = vpop.permute.xlu0 %845
      %847 = vrot.lane.b32.xlu0 %v720, 12
      %v848 = vpop.permute.xlu0 %847
      %849 = vrot.lane.b32.xlu0 %v721, 12
      %v850 = vpop.permute.xlu0 %849
      %851 = vrot.lane.b32.xlu0 %v722, 12
      %v852 = vpop.permute.xlu0 %851
      %853 = vrot.lane.b32.xlu0 %v723, 12
      %v854 = vpop.permute.xlu0 %853
      %855 = vrot.lane.b32.xlu0 %v724, 12
      %v856 = vpop.permute.xlu0 %855
      %857 = vrot.lane.b32.xlu0 %v725, 12
      %v858 = vpop.permute.xlu0 %857
      %859 = vrot.lane.b32.xlu0 %v726, 12
      %v860 = vpop.permute.xlu0 %859
      %861 = vrot.lane.b32.xlu0 %v727, 12
      %v862 = vpop.permute.xlu0 %861
      %863 = vrot.lane.b32.xlu0 %v728, 12
      %v864 = vpop.permute.xlu0 %863
      %865 = vrot.lane.b32.xlu0 %v729, 12
      %v866 = vpop.permute.xlu0 %865
      %867 = vrot.lane.b32.xlu0 %v730, 12
      %v868 = vpop.permute.xlu0 %867
      %869 = vrot.lane.b32.xlu0 %v731, 12
      %v870 = vpop.permute.xlu0 %869
      %871 = vrot.lane.b32.xlu0 %v732, 12
      %v872 = vpop.permute.xlu0 %871
      %873 = vrot.lane.b32.xlu0 %v733, 12
      %v874 = vpop.permute.xlu0 %873
      %875 = vrot.lane.b32.xlu0 %v734, 12
      %v876 = vpop.permute.xlu0 %875
      %877 = vrot.lane.b32.xlu0 %v735, 12
      %v878 = vpop.permute.xlu0 %877
      %879 = vrot.lane.b32.xlu0 %v736, 12
      %v880 = vpop.permute.xlu0 %879
      %881 = vrot.lane.b32.xlu0 %v737, 12
      %v882 = vpop.permute.xlu0 %881
      %vm907 = vcmask 126048
      %908 = vst.msk [vmem:[#allocation2] sm:$0xf] %vm907, %v836
      %909 = vst.msk [vmem:[#allocation2 + $0x4] sm:$0xf] %vm907, %v838
      %910 = vst.msk [vmem:[#allocation2 + $0x8] sm:$0xf] %vm907, %v840
      %911 = vst.msk [vmem:[#allocation2 + $0xc] sm:$0xf] %vm907, %v842
      %912 = vst.msk [vmem:[#allocation2 + $0x10] sm:$0xf] %vm907, %v844
      %913 = vst.msk [vmem:[#allocation2 + $0x14] sm:$0xf] %vm907, %v846
      %914 = vst.msk [vmem:[#allocation2 + $0x18] sm:$0xf] %vm907, %v848
      %915 = vst.msk [vmem:[#allocation2 + $0x1c] sm:$0xf] %vm907, %v850
      %916 = vst.msk [vmem:[#allocation2 + $0x20] sm:$0xf] %vm907, %v852
      %917 = vst.msk [vmem:[#allocation2 + $0x24] sm:$0xf] %vm907, %v854
      %918 = vst.msk [vmem:[#allocation2 + $0x28] sm:$0xf] %vm907, %v856
      %919 = vst.msk [vmem:[#allocation2 + $0x2c] sm:$0xf] %vm907, %v858
      %920 = vst.msk [vmem:[#allocation2 + $0x30] sm:$0xf] %vm907, %v860
      %921 = vst.msk [vmem:[#allocation2 + $0x34] sm:$0xf] %vm907, %v862
      %922 = vst.msk [vmem:[#allocation2 + $0x38] sm:$0xf] %vm907, %v864
      %923 = vst.msk [vmem:[#allocation2 + $0x3c] sm:$0xf] %vm907, %v866
      %924 = vst.msk [vmem:[#allocation2 + $0x40] sm:$0xf] %vm907, %v868
      %925 = vst.msk [vmem:[#allocation2 + $0x44] sm:$0xf] %vm907, %v870
      %926 = vst.msk [vmem:[#allocation2 + $0x48] sm:$0xf] %vm907, %v872
      %927 = vst.msk [vmem:[#allocation2 + $0x4c] sm:$0xf] %vm907, %v874
      %928 = vst.msk [vmem:[#allocation2 + $0x50] sm:$0xf] %vm907, %v876
      %929 = vst.msk [vmem:[#allocation2 + $0x54] sm:$0xf] %vm907, %v878
      %930 = vst.msk [vmem:[#allocation2 + $0x58] sm:$0xf] %vm907, %v880
      %931 = vst.msk [vmem:[#allocation2 + $0x5c] sm:$0xf] %vm907, %v882
      %vm932 = vsmask.f32 256
      %vm933 = vsmask.f32 4368
      %vm934 = vmor %vm932, %vm933
      %v936 = vshrl.u32 %v702, 16
      %v938 = vrot.slane %v936, 7
      %v939 = vshll.u32 %v702, 16
      %v941 = vor.u32 %v938, %v939
      %v942 = vrot.slane %v938, 4
      %v944 = vshrl.u32 %v703, 16
      %v946 = vrot.slane %v944, 7
      %v947 = vshll.u32 %v703, 16
      %v949 = vor.u32 %v946, %v947
      %v950 = vsel %vm934, %v942, %v949
      %v952 = vshrl.u32 %v704, 16
      %v954 = vrot.slane %v952, 7
      %v955 = vshll.u32 %v704, 16
      %v957 = vor.u32 %v954, %v955
      %v958 = vrot.slane %v954, 4
      %v960 = vshrl.u32 %v705, 16
      %v962 = vrot.slane %v960, 7
      %v963 = vshll.u32 %v705, 16
      %v965 = vor.u32 %v962, %v963
      %v966 = vsel %vm934, %v958, %v965
      %v968 = vshrl.u32 %v706, 16
      %v970 = vrot.slane %v968, 7
      %v971 = vshll.u32 %v706, 16
      %v973 = vor.u32 %v970, %v971
      %v974 = vrot.slane %v970, 4
      %v976 = vshrl.u32 %v707, 16
      %v978 = vrot.slane %v976, 7
      %v979 = vshll.u32 %v707, 16
      %v981 = vor.u32 %v978, %v979
      %v982 = vsel %vm934, %v974, %v981
      %v984 = vshrl.u32 %v708, 16
      %v986 = vrot.slane %v984, 7
      %v987 = vshll.u32 %v708, 16
      %v989 = vor.u32 %v986, %v987
      %v990 = vrot.slane %v986, 4
      %v992 = vshrl.u32 %v709, 16
      %v994 = vrot.slane %v992, 7
      %v995 = vshll.u32 %v709, 16
      %v997 = vor.u32 %v994, %v995
      %v998 = vsel %vm934, %v990, %v997
      %v1000 = vshrl.u32 %v710, 16
      %v1002 = vrot.slane %v1000, 7
      %v1003 = vshll.u32 %v710, 16
      %v1005 = vor.u32 %v1002, %v1003
      %v1006 = vrot.slane %v1002, 4
      %v1008 = vshrl.u32 %v711, 16
      %v1010 = vrot.slane %v1008, 7
      %v1011 = vshll.u32 %v711, 16
      %v1013 = vor.u32 %v1010, %v1011
      %v1014 = vsel %vm934, %v1006, %v1013
      %v1016 = vshrl.u32 %v712, 16
      %v1018 = vrot.slane %v1016, 7
      %v1019 = vshll.u32 %v712, 16
      %v1021 = vor.u32 %v1018, %v1019
      %v1022 = vrot.slane %v1018, 4
      %v1024 = vshrl.u32 %v713, 16
      %v1026 = vrot.slane %v1024, 7
      %v1027 = vshll.u32 %v713, 16
      %v1029 = vor.u32 %v1026, %v1027
      %v1030 = vsel %vm934, %v1022, %v1029
      %vm1043 = vcmask 27648
      %vm1044 = vsmask.f32 7938
      %vm1045 = vmand %vm1043, %vm1044
      %v1046 = vld [vmem:[#allocation2] sm:$0xf]
      %v1047 = vsel %vm1045, %v941, %v1046
      %1048 = vst [vmem:[#allocation2] sm:$0xf] %v1047
      %vm1049 = vcmask 27648
      %1050 = vst.msk [vmem:[#allocation2 + $0x4] sm:$0xf] %vm1049, %v950
      %v1051 = vld [vmem:[#allocation2 + $0x8] sm:$0xf]
      %v1052 = vsel %vm1045, %v941, %v1051
      %1053 = vst [vmem:[#allocation2 + $0x8] sm:$0xf] %v1052
      %1054 = vst.msk [vmem:[#allocation2 + $0xc] sm:$0xf] %vm1049, %v950
      %v1055 = vld [vmem:[#allocation2 + $0x10] sm:$0xf]
      %v1056 = vsel %vm1045, %v957, %v1055
      %1057 = vst [vmem:[#allocation2 + $0x10] sm:$0xf] %v1056
      %1058 = vst.msk [vmem:[#allocation2 + $0x14] sm:$0xf] %vm1049, %v966
      %v1059 = vld [vmem:[#allocation2 + $0x18] sm:$0xf]
      %v1060 = vsel %vm1045, %v957, %v1059
      %1061 = vst [vmem:[#allocation2 + $0x18] sm:$0xf] %v1060
      %1062 = vst.msk [vmem:[#allocation2 + $0x1c] sm:$0xf] %vm1049, %v966
      %v1063 = vld [vmem:[#allocation2 + $0x20] sm:$0xf]
      %v1064 = vsel %vm1045, %v973, %v1063
      %1065 = vst [vmem:[#allocation2 + $0x20] sm:$0xf] %v1064
      %1066 = vst.msk [vmem:[#allocation2 + $0x24] sm:$0xf] %vm1049, %v982
      %v1067 = vld [vmem:[#allocation2 + $0x28] sm:$0xf]
      %v1068 = vsel %vm1045, %v973, %v1067
      %1069 = vst [vmem:[#allocation2 + $0x28] sm:$0xf] %v1068
      %1070 = vst.msk [vmem:[#allocation2 + $0x2c] sm:$0xf] %vm1049, %v982
      %v1071 = vld [vmem:[#allocation2 + $0x30] sm:$0xf]
      %v1072 = vsel %vm1045, %v989, %v1071
      %1073 = vst [vmem:[#allocation2 + $0x30] sm:$0xf] %v1072
      %1074 = vst.msk [vmem:[#allocation2 + $0x34] sm:$0xf] %vm1049, %v998
      %v1075 = vld [vmem:[#allocation2 + $0x38] sm:$0xf]
      %v1076 = vsel %vm1045, %v989, %v1075
      %1077 = vst [vmem:[#allocation2 + $0x38] sm:$0xf] %v1076
      %1078 = vst.msk [vmem:[#allocation2 + $0x3c] sm:$0xf] %vm1049, %v998
      %v1079 = vld [vmem:[#allocation2 + $0x40] sm:$0xf]
      %v1080 = vsel %vm1045, %v1005, %v1079
      %1081 = vst [vmem:[#allocation2 + $0x40] sm:$0xf] %v1080
      %1082 = vst.msk [vmem:[#allocation2 + $0x44] sm:$0xf] %vm1049, %v1014
      %v1083 = vld [vmem:[#allocation2 + $0x48] sm:$0xf]
      %v1084 = vsel %vm1045, %v1005, %v1083
      %1085 = vst [vmem:[#allocation2 + $0x48] sm:$0xf] %v1084
      %1086 = vst.msk [vmem:[#allocation2 + $0x4c] sm:$0xf] %vm1049, %v1014
      %v1087 = vld [vmem:[#allocation2 + $0x50] sm:$0xf]
      %v1088 = vsel %vm1045, %v1021, %v1087
      %1089 = vst [vmem:[#allocation2 + $0x50] sm:$0xf] %v1088
      %1090 = vst.msk [vmem:[#allocation2 + $0x54] sm:$0xf] %vm1049, %v1030
      %v1091 = vld [vmem:[#allocation2 + $0x58] sm:$0xf]
      %v1092 = vsel %vm1045, %v1021, %v1091
      %1093 = vst [vmem:[#allocation2 + $0x58] sm:$0xf] %v1092
      %1094 = vst.msk [vmem:[#allocation2 + $0x5c] sm:$0xf] %vm1049, %v1030
      %v1096 = vshrl.u32 %v714, 16
      %v1098 = vrot.slane %v1096, 7
      %v1099 = vshll.u32 %v714, 16
      %v1101 = vor.u32 %v1098, %v1099
      %v1102 = vrot.slane %v1098, 4
      %v1104 = vshrl.u32 %v715, 16
      %v1106 = vrot.slane %v1104, 7
      %v1107 = vshll.u32 %v715, 16
      %v1109 = vor.u32 %v1106, %v1107
      %v1110 = vsel %vm934, %v1102, %v1109
      %v1112 = vshrl.u32 %v716, 16
      %v1114 = vrot.slane %v1112, 7
      %v1115 = vshll.u32 %v716, 16
      %v1117 = vor.u32 %v1114, %v1115
      %v1118 = vrot.slane %v1114, 4
      %v1120 = vshrl.u32 %v717, 16
      %v1122 = vrot.slane %v1120, 7
      %v1123 = vshll.u32 %v717, 16
      %v1125 = vor.u32 %v1122, %v1123
      %v1126 = vsel %vm934, %v1118, %v1125
      %v1128 = vshrl.u32 %v718, 16
      %v1130 = vrot.slane %v1128, 7
      %v1131 = vshll.u32 %v718, 16
      %v1133 = vor.u32 %v1130, %v1131
      %v1134 = vrot.slane %v1130, 4
      %v1136 = vshrl.u32 %v719, 16
      %v1138 = vrot.slane %v1136, 7
      %v1139 = vshll.u32 %v719, 16
      %v1141 = vor.u32 %v1138, %v1139
      %v1142 = vsel %vm934, %v1134, %v1141
      %v1144 = vshrl.u32 %v720, 16
      %v1146 = vrot.slane %v1144, 7
      %v1147 = vshll.u32 %v720, 16
      %v1149 = vor.u32 %v1146, %v1147
      %v1150 = vrot.slane %v1146, 4
      %v1152 = vshrl.u32 %v721, 16
      %v1154 = vrot.slane %v1152, 7
      %v1155 = vshll.u32 %v721, 16
      %v1157 = vor.u32 %v1154, %v1155
      %v1158 = vsel %vm934, %v1150, %v1157
      %v1160 = vshrl.u32 %v722, 16
      %v1162 = vrot.slane %v1160, 7
      %v1163 = vshll.u32 %v722, 16
      %v1165 = vor.u32 %v1162, %v1163
      %v1166 = vrot.slane %v1162, 4
      %v1168 = vshrl.u32 %v723, 16
      %v1170 = vrot.slane %v1168, 7
      %v1171 = vshll.u32 %v723, 16
      %v1173 = vor.u32 %v1170, %v1171
      %v1174 = vsel %vm934, %v1166, %v1173
      %v1176 = vshrl.u32 %v724, 16
      %v1178 = vrot.slane %v1176, 7
      %v1179 = vshll.u32 %v724, 16
      %v1181 = vor.u32 %v1178, %v1179
      %v1182 = vrot.slane %v1178, 4
      %v1184 = vshrl.u32 %v725, 16
      %v1186 = vrot.slane %v1184, 7
      %v1187 = vshll.u32 %v725, 16
      %v1189 = vor.u32 %v1186, %v1187
      %v1190 = vsel %vm934, %v1182, %v1189
      %v1192 = vshrl.u32 %v726, 16
      %v1194 = vrot.slane %v1192, 7
      %v1195 = vshll.u32 %v726, 16
      %v1197 = vor.u32 %v1194, %v1195
      %v1198 = vrot.slane %v1194, 4
      %v1200 = vshrl.u32 %v727, 16
      %v1202 = vrot.slane %v1200, 7
      %v1203 = vshll.u32 %v727, 16
      %v1205 = vor.u32 %v1202, %v1203
      %v1206 = vsel %vm934, %v1198, %v1205
      %v1208 = vshrl.u32 %v728, 16
      %v1210 = vrot.slane %v1208, 7
      %v1211 = vshll.u32 %v728, 16
      %v1213 = vor.u32 %v1210, %v1211
      %v1214 = vrot.slane %v1210, 4
      %v1216 = vshrl.u32 %v729, 16
      %v1218 = vrot.slane %v1216, 7
      %v1219 = vshll.u32 %v729, 16
      %v1221 = vor.u32 %v1218, %v1219
      %v1222 = vsel %vm934, %v1214, %v1221
      %v1224 = vshrl.u32 %v730, 16
      %v1226 = vrot.slane %v1224, 7
      %v1227 = vshll.u32 %v730, 16
      %v1229 = vor.u32 %v1226, %v1227
      %v1230 = vrot.slane %v1226, 4
      %v1232 = vshrl.u32 %v731, 16
      %v1234 = vrot.slane %v1232, 7
      %v1235 = vshll.u32 %v731, 16
      %v1237 = vor.u32 %v1234, %v1235
      %v1238 = vsel %vm934, %v1230, %v1237
      %v1240 = vshrl.u32 %v732, 16
      %v1242 = vrot.slane %v1240, 7
      %v1243 = vshll.u32 %v732, 16
      %v1245 = vor.u32 %v1242, %v1243
      %v1246 = vrot.slane %v1242, 4
      %v1248 = vshrl.u32 %v733, 16
      %v1250 = vrot.slane %v1248, 7
      %v1251 = vshll.u32 %v733, 16
      %v1253 = vor.u32 %v1250, %v1251
      %v1254 = vsel %vm934, %v1246, %v1253
      %v1256 = vshrl.u32 %v734, 16
      %v1258 = vrot.slane %v1256, 7
      %v1259 = vshll.u32 %v734, 16
      %v1261 = vor.u32 %v1258, %v1259
      %v1262 = vrot.slane %v1258, 4
      %v1264 = vshrl.u32 %v735, 16
      %v1266 = vrot.slane %v1264, 7
      %v1267 = vshll.u32 %v735, 16
      %v1269 = vor.u32 %v1266, %v1267
      %v1270 = vsel %vm934, %v1262, %v1269
      %v1272 = vshrl.u32 %v736, 16
      %v1274 = vrot.slane %v1272, 7
      %v1275 = vshll.u32 %v736, 16
      %v1277 = vor.u32 %v1274, %v1275
      %v1278 = vrot.slane %v1274, 4
      %v1280 = vshrl.u32 %v737, 16
      %v1282 = vrot.slane %v1280, 7
      %v1283 = vshll.u32 %v737, 16
      %v1285 = vor.u32 %v1282, %v1283
      %v1286 = vsel %vm934, %v1278, %v1285
      %1287 = vrot.lane.b32.xlu0 %v1101, 4
      %v1288 = vpop.permute.xlu0 %1287
      %1289 = vrot.lane.b32.xlu0 %v1110, 4
      %v1290 = vpop.permute.xlu0 %1289
      %1291 = vrot.lane.b32.xlu0 %v1117, 4
      %v1292 = vpop.permute.xlu0 %1291
      %1293 = vrot.lane.b32.xlu0 %v1126, 4
      %v1294 = vpop.permute.xlu0 %1293
      %1295 = vrot.lane.b32.xlu0 %v1133, 4
      %v1296 = vpop.permute.xlu0 %1295
      %1297 = vrot.lane.b32.xlu0 %v1142, 4
      %v1298 = vpop.permute.xlu0 %1297
      %1299 = vrot.lane.b32.xlu0 %v1149, 4
      %v1300 = vpop.permute.xlu0 %1299
      %1301 = vrot.lane.b32.xlu0 %v1158, 4
      %v1302 = vpop.permute.xlu0 %1301
      %1303 = vrot.lane.b32.xlu0 %v1165, 4
      %v1304 = vpop.permute.xlu0 %1303
      %1305 = vrot.lane.b32.xlu0 %v1174, 4
      %v1306 = vpop.permute.xlu0 %1305
      %1307 = vrot.lane.b32.xlu0 %v1181, 4
      %v1308 = vpop.permute.xlu0 %1307
      %1309 = vrot.lane.b32.xlu0 %v1190, 4
      %v1310 = vpop.permute.xlu0 %1309
      %1311 = vrot.lane.b32.xlu0 %v1197, 4
      %v1312 = vpop.permute.xlu0 %1311
      %1313 = vrot.lane.b32.xlu0 %v1206, 4
      %v1314 = vpop.permute.xlu0 %1313
      %1315 = vrot.lane.b32.xlu0 %v1213, 4
      %v1316 = vpop.permute.xlu0 %1315
      %1317 = vrot.lane.b32.xlu0 %v1222, 4
      %v1318 = vpop.permute.xlu0 %1317
      %1319 = vrot.lane.b32.xlu0 %v1229, 4
      %v1320 = vpop.permute.xlu0 %1319
      %1321 = vrot.lane.b32.xlu0 %v1238, 4
      %v1322 = vpop.permute.xlu0 %1321
      %1323 = vrot.lane.b32.xlu0 %v1245, 4
      %v1324 = vpop.permute.xlu0 %1323
      %1325 = vrot.lane.b32.xlu0 %v1254, 4
      %v1326 = vpop.permute.xlu0 %1325
      %1327 = vrot.lane.b32.xlu0 %v1261, 4
      %v1328 = vpop.permute.xlu0 %1327
      %1329 = vrot.lane.b32.xlu0 %v1270, 4
      %v1330 = vpop.permute.xlu0 %1329
      %1331 = vrot.lane.b32.xlu0 %v1277, 4
      %v1332 = vpop.permute.xlu0 %1331
      %1333 = vrot.lane.b32.xlu0 %v1286, 4
      %v1334 = vpop.permute.xlu0 %1333
      %vm1359 = vcmask 60448
      %vm1360 = vmand %vm1359, %vm1044
      %v1361 = vld [vmem:[#allocation2] sm:$0xf]
      %v1362 = vsel %vm1360, %v1288, %v1361
      %1363 = vst [vmem:[#allocation2] sm:$0xf] %v1362
      %vm1364 = vcmask 60448
      %1365 = vst.msk [vmem:[#allocation2 + $0x4] sm:$0xf] %vm1364, %v1290
      %v1366 = vld [vmem:[#allocation2 + $0x8] sm:$0xf]
      %v1367 = vsel %vm1360, %v1292, %v1366
      %1368 = vst [vmem:[#allocation2 + $0x8] sm:$0xf] %v1367
      %1369 = vst.msk [vmem:[#allocation2 + $0xc] sm:$0xf] %vm1364, %v1294
      %v1370 = vld [vmem:[#allocation2 + $0x10] sm:$0xf]
      %v1371 = vsel %vm1360, %v1296, %v1370
      %1372 = vst [vmem:[#allocation2 + $0x10] sm:$0xf] %v1371
      %1373 = vst.msk [vmem:[#allocation2 + $0x14] sm:$0xf] %vm1364, %v1298
      %v1374 = vld [vmem:[#allocation2 + $0x18] sm:$0xf]
      %v1375 = vsel %vm1360, %v1300, %v1374
      %1376 = vst [vmem:[#allocation2 + $0x18] sm:$0xf] %v1375
      %1377 = vst.msk [vmem:[#allocation2 + $0x1c] sm:$0xf] %vm1364, %v1302
      %v1378 = vld [vmem:[#allocation2 + $0x20] sm:$0xf]
      %v1379 = vsel %vm1360, %v1304, %v1378
      %1380 = vst [vmem:[#allocation2 + $0x20] sm:$0xf] %v1379
      %1381 = vst.msk [vmem:[#allocation2 + $0x24] sm:$0xf] %vm1364, %v1306
      %v1382 = vld [vmem:[#allocation2 + $0x28] sm:$0xf]
      %v1383 = vsel %vm1360, %v1308, %v1382
      %1384 = vst [vmem:[#allocation2 + $0x28] sm:$0xf] %v1383
      %1385 = vst.msk [vmem:[#allocation2 + $0x2c] sm:$0xf] %vm1364, %v1310
      %v1386 = vld [vmem:[#allocation2 + $0x30] sm:$0xf]
      %v1387 = vsel %vm1360, %v1312, %v1386
      %1388 = vst [vmem:[#allocation2 + $0x30] sm:$0xf] %v1387
      %1389 = vst.msk [vmem:[#allocation2 + $0x34] sm:$0xf] %vm1364, %v1314
      %v1390 = vld [vmem:[#allocation2 + $0x38] sm:$0xf]
      %v1391 = vsel %vm1360, %v1316, %v1390
      %1392 = vst [vmem:[#allocation2 + $0x38] sm:$0xf] %v1391
      %1393 = vst.msk [vmem:[#allocation2 + $0x3c] sm:$0xf] %vm1364, %v1318
      %v1394 = vld [vmem:[#allocation2 + $0x40] sm:$0xf]
      %v1395 = vsel %vm1360, %v1320, %v1394
      %1396 = vst [vmem:[#allocation2 + $0x40] sm:$0xf] %v1395
      %1397 = vst.msk [vmem:[#allocation2 + $0x44] sm:$0xf] %vm1364, %v1322
      %v1398 = vld [vmem:[#allocation2 + $0x48] sm:$0xf]
      %v1399 = vsel %vm1360, %v1324, %v1398
      %1400 = vst [vmem:[#allocation2 + $0x48] sm:$0xf] %v1399
      %1401 = vst.msk [vmem:[#allocation2 + $0x4c] sm:$0xf] %vm1364, %v1326
      %v1402 = vld [vmem:[#allocation2 + $0x50] sm:$0xf]
      %v1403 = vsel %vm1360, %v1328, %v1402
      %1404 = vst [vmem:[#allocation2 + $0x50] sm:$0xf] %v1403
      %1405 = vst.msk [vmem:[#allocation2 + $0x54] sm:$0xf] %vm1364, %v1330
      %v1406 = vld [vmem:[#allocation2 + $0x58] sm:$0xf]
      %v1407 = vsel %vm1360, %v1332, %v1406
      %1408 = vst [vmem:[#allocation2 + $0x58] sm:$0xf] %v1407
      %1409 = vst.msk [vmem:[#allocation2 + $0x5c] sm:$0xf] %vm1364, %v1334
      %vm1410 = vsmask.f32 3328
      %vm1411 = vsmask.f32 7440
      %vm1412 = vmor %vm1410, %vm1411
      %v1413 = vrot.slane %v936, 4
      %v1414 = vrot.slane %v939, 5
      %v1415 = vor.u32 %v1413, %v1414
      %v1416 = vrot.slane %v1415, 4
      %v1417 = vrot.slane %v947, 5
      %v1418 = vsel %vm1412, %v1416, %v1417
      %v1419 = vrot.slane %v944, 4
      %v1420 = vor.u32 %v1419, %v1417
      %v1421 = vrot.slane %v1420, 4
      %v1422 = vrot.slane %v952, 4
      %v1423 = vrot.slane %v955, 5
      %v1424 = vor.u32 %v1422, %v1423
      %v1425 = vrot.slane %v1424, 4
      %v1426 = vrot.slane %v963, 5
      %v1427 = vsel %vm1412, %v1425, %v1426
      %v1428 = vrot.slane %v960, 4
      %v1429 = vor.u32 %v1428, %v1426
      %v1430 = vrot.slane %v1429, 4
      %v1431 = vrot.slane %v968, 4
      %v1432 = vrot.slane %v971, 5
      %v1433 = vor.u32 %v1431, %v1432
      %v1434 = vrot.slane %v1433, 4
      %v1435 = vrot.slane %v979, 5
      %v1436 = vsel %vm1412, %v1434, %v1435
      %v1437 = vrot.slane %v976, 4
      %v1438 = vor.u32 %v1437, %v1435
      %v1439 = vrot.slane %v1438, 4
      %v1440 = vrot.slane %v984, 4
      %v1441 = vrot.slane %v987, 5
      %v1442 = vor.u32 %v1440, %v1441
      %v1443 = vrot.slane %v1442, 4
      %v1444 = vrot.slane %v995, 5
      %v1445 = vsel %vm1412, %v1443, %v1444
      %v1446 = vrot.slane %v992, 4
      %v1447 = vor.u32 %v1446, %v1444
      %v1448 = vrot.slane %v1447, 4
      %v1449 = vrot.slane %v1000, 4
      %v1450 = vrot.slane %v1003, 5
      %v1451 = vor.u32 %v1449, %v1450
      %v1452 = vrot.slane %v1451, 4
      %v1453 = vrot.slane %v1011, 5
      %v1454 = vsel %vm1412, %v1452, %v1453
      %v1455 = vrot.slane %v1008, 4
      %v1456 = vor.u32 %v1455, %v1453
      %v1457 = vrot.slane %v1456, 4
      %v1458 = vrot.slane %v1016, 4
      %v1459 = vrot.slane %v1019, 5
      %v1460 = vor.u32 %v1458, %v1459
      %v1461 = vrot.slane %v1460, 4
      %v1462 = vrot.slane %v1027, 5
      %v1463 = vsel %vm1412, %v1461, %v1462
      %v1464 = vrot.slane %v1024, 4
      %v1465 = vor.u32 %v1464, %v1462
      %v1466 = vrot.slane %v1465, 4
      %1467 = vrot.lane.b32.xlu0 %v1418, 16
      %v1468 = vpop.permute.xlu0 %1467
      %1469 = vrot.lane.b32.xlu0 %v1421, 16
      %v1470 = vpop.permute.xlu0 %1469
      %1471 = vrot.lane.b32.xlu0 %v1427, 16
      %v1472 = vpop.permute.xlu0 %1471
      %1473 = vrot.lane.b32.xlu0 %v1430, 16
      %v1474 = vpop.permute.xlu0 %1473
      %1475 = vrot.lane.b32.xlu0 %v1436, 16
      %v1476 = vpop.permute.xlu0 %1475
      %1477 = vrot.lane.b32.xlu0 %v1439, 16
      %v1478 = vpop.permute.xlu0 %1477
      %1479 = vrot.lane.b32.xlu0 %v1445, 16
      %v1480 = vpop.permute.xlu0 %1479
      %1481 = vrot.lane.b32.xlu0 %v1448, 16
      %v1482 = vpop.permute.xlu0 %1481
      %1483 = vrot.lane.b32.xlu0 %v1454, 16
      %v1484 = vpop.permute.xlu0 %1483
      %1485 = vrot.lane.b32.xlu0 %v1457, 16
      %v1486 = vpop.permute.xlu0 %1485
      %1487 = vrot.lane.b32.xlu0 %v1463, 16
      %v1488 = vpop.permute.xlu0 %1487
      %1489 = vrot.lane.b32.xlu0 %v1466, 16
      %v1490 = vpop.permute.xlu0 %1489
      %vm1503 = vcmask 158848
      %1504 = vst.msk [vmem:[#allocation2] sm:$0xf] %vm1503, %v1468
      %vm1505 = vcmask 158848
      %vm1506 = vmand %vm1505, %vm1410
      %v1507 = vld [vmem:[#allocation2 + $0x4] sm:$0xf]
      %v1508 = vsel %vm1506, %v1470, %v1507
      %1509 = vst [vmem:[#allocation2 + $0x4] sm:$0xf] %v1508
      %1510 = vst.msk [vmem:[#allocation2 + $0x8] sm:$0xf] %vm1503, %v1468
      %v1511 = vld [vmem:[#allocation2 + $0xc] sm:$0xf]
      %v1512 = vsel %vm1506, %v1470, %v1511
      %1513 = vst [vmem:[#allocation2 + $0xc] sm:$0xf] %v1512
      %1514 = vst.msk [vmem:[#allocation2 + $0x10] sm:$0xf] %vm1503, %v1472
      %v1515 = vld [vmem:[#allocation2 + $0x14] sm:$0xf]
      %v1516 = vsel %vm1506, %v1474, %v1515
      %1517 = vst [vmem:[#allocation2 + $0x14] sm:$0xf] %v1516
      %1518 = vst.msk [vmem:[#allocation2 + $0x18] sm:$0xf] %vm1503, %v1472
      %v1519 = vld [vmem:[#allocation2 + $0x1c] sm:$0xf]
      %v1520 = vsel %vm1506, %v1474, %v1519
      %1521 = vst [vmem:[#allocation2 + $0x1c] sm:$0xf] %v1520
      %1522 = vst.msk [vmem:[#allocation2 + $0x20] sm:$0xf] %vm1503, %v1476
      %v1523 = vld [vmem:[#allocation2 + $0x24] sm:$0xf]
      %v1524 = vsel %vm1506, %v1478, %v1523
      %1525 = vst [vmem:[#allocation2 + $0x24] sm:$0xf] %v1524
      %1526 = vst.msk [vmem:[#allocation2 + $0x28] sm:$0xf] %vm1503, %v1476
      %v1527 = vld [vmem:[#allocation2 + $0x2c] sm:$0xf]
      %v1528 = vsel %vm1506, %v1478, %v1527
      %1529 = vst [vmem:[#allocation2 + $0x2c] sm:$0xf] %v1528
      %1530 = vst.msk [vmem:[#allocation2 + $0x30] sm:$0xf] %vm1503, %v1480
      %v1531 = vld [vmem:[#allocation2 + $0x34] sm:$0xf]
      %v1532 = vsel %vm1506, %v1482, %v1531
      %1533 = vst [vmem:[#allocation2 + $0x34] sm:$0xf] %v1532
      %1534 = vst.msk [vmem:[#allocation2 + $0x38] sm:$0xf] %vm1503, %v1480
      %v1535 = vld [vmem:[#allocation2 + $0x3c] sm:$0xf]
      %v1536 = vsel %vm1506, %v1482, %v1535
      %1537 = vst [vmem:[#allocation2 + $0x3c] sm:$0xf] %v1536
      %1538 = vst.msk [vmem:[#allocation2 + $0x40] sm:$0xf] %vm1503, %v1484
      %v1539 = vld [vmem:[#allocation2 + $0x44] sm:$0xf]
      %v1540 = vsel %vm1506, %v1486, %v1539
      %1541 = vst [vmem:[#allocation2 + $0x44] sm:$0xf] %v1540
      %1542 = vst.msk [vmem:[#allocation2 + $0x48] sm:$0xf] %vm1503, %v1484
      %v1543 = vld [vmem:[#allocation2 + $0x4c] sm:$0xf]
      %v1544 = vsel %vm1506, %v1486, %v1543
      %1545 = vst [vmem:[#allocation2 + $0x4c] sm:$0xf] %v1544
      %1546 = vst.msk [vmem:[#allocation2 + $0x50] sm:$0xf] %vm1503, %v1488
      %v1547 = vld [vmem:[#allocation2 + $0x54] sm:$0xf]
      %v1548 = vsel %vm1506, %v1490, %v1547
      %1549 = vst [vmem:[#allocation2 + $0x54] sm:$0xf] %v1548
      %1550 = vst.msk [vmem:[#allocation2 + $0x58] sm:$0xf] %vm1503, %v1488
      %v1551 = vld [vmem:[#allocation2 + $0x5c] sm:$0xf]
      %v1552 = vsel %vm1506, %v1490, %v1551
      %1553 = vst [vmem:[#allocation2 + $0x5c] sm:$0xf] %v1552
      %v1554 = vrot.slane %v1096, 4
      %v1555 = vrot.slane %v1099, 5
      %v1556 = vor.u32 %v1554, %v1555
      %v1557 = vrot.slane %v1556, 4
      %v1558 = vrot.slane %v1107, 5
      %v1559 = vsel %vm1412, %v1557, %v1558
      %v1560 = vrot.slane %v1104, 4
      %v1561 = vor.u32 %v1560, %v1558
      %v1562 = vrot.slane %v1561, 4
      %v1563 = vrot.slane %v1112, 4
      %v1564 = vrot.slane %v1115, 5
      %v1565 = vor.u32 %v1563, %v1564
      %v1566 = vrot.slane %v1565, 4
      %v1567 = vrot.slane %v1123, 5
      %v1568 = vsel %vm1412, %v1566, %v1567
      %v1569 = vrot.slane %v1120, 4
      %v1570 = vor.u32 %v1569, %v1567
      %v1571 = vrot.slane %v1570, 4
      %v1572 = vrot.slane %v1128, 4
      %v1573 = vrot.slane %v1131, 5
      %v1574 = vor.u32 %v1572, %v1573
      %v1575 = vrot.slane %v1574, 4
      %v1576 = vrot.slane %v1139, 5
      %v1577 = vsel %vm1412, %v1575, %v1576
      %v1578 = vrot.slane %v1136, 4
      %v1579 = vor.u32 %v1578, %v1576
      %v1580 = vrot.slane %v1579, 4
      %v1581 = vrot.slane %v1144, 4
      %v1582 = vrot.slane %v1147, 5
      %v1583 = vor.u32 %v1581, %v1582
      %v1584 = vrot.slane %v1583, 4
      %v1585 = vrot.slane %v1155, 5
      %v1586 = vsel %vm1412, %v1584, %v1585
      %v1587 = vrot.slane %v1152, 4
      %v1588 = vor.u32 %v1587, %v1585
      %v1589 = vrot.slane %v1588, 4
      %v1590 = vrot.slane %v1160, 4
      %v1591 = vrot.slane %v1163, 5
      %v1592 = vor.u32 %v1590, %v1591
      %v1593 = vrot.slane %v1592, 4
      %v1594 = vrot.slane %v1171, 5
      %v1595 = vsel %vm1412, %v1593, %v1594
      %v1596 = vrot.slane %v1168, 4
      %v1597 = vor.u32 %v1596, %v1594
      %v1598 = vrot.slane %v1597, 4
      %v1599 = vrot.slane %v1176, 4
      %v1600 = vrot.slane %v1179, 5
      %v1601 = vor.u32 %v1599, %v1600
      %v1602 = vrot.slane %v1601, 4
      %v1603 = vrot.slane %v1187, 5
      %v1604 = vsel %vm1412, %v1602, %v1603
      %v1605 = vrot.slane %v1184, 4
      %v1606 = vor.u32 %v1605, %v1603
      %v1607 = vrot.slane %v1606, 4
      %v1608 = vrot.slane %v1192, 4
      %v1609 = vrot.slane %v1195, 5
      %v1610 = vor.u32 %v1608, %v1609
      %v1611 = vrot.slane %v1610, 4
      %v1612 = vrot.slane %v1203, 5
      %v1613 = vsel %vm1412, %v1611, %v1612
      %v1614 = vrot.slane %v1200, 4
      %v1615 = vor.u32 %v1614, %v1612
      %v1616 = vrot.slane %v1615, 4
      %v1617 = vrot.slane %v1208, 4
      %v1618 = vrot.slane %v1211, 5
      %v1619 = vor.u32 %v1617, %v1618
      %v1620 = vrot.slane %v1619, 4
      %v1621 = vrot.slane %v1219, 5
      %v1622 = vsel %vm1412, %v1620, %v1621
      %v1623 = vrot.slane %v1216, 4
      %v1624 = vor.u32 %v1623, %v1621
      %v1625 = vrot.slane %v1624, 4
      %v1626 = vrot.slane %v1224, 4
      %v1627 = vrot.slane %v1227, 5
      %v1628 = vor.u32 %v1626, %v1627
      %v1629 = vrot.slane %v1628, 4
      %v1630 = vrot.slane %v1235, 5
      %v1631 = vsel %vm1412, %v1629, %v1630
      %v1632 = vrot.slane %v1232, 4
      %v1633 = vor.u32 %v1632, %v1630
      %v1634 = vrot.slane %v1633, 4
      %v1635 = vrot.slane %v1240, 4
      %v1636 = vrot.slane %v1243, 5
      %v1637 = vor.u32 %v1635, %v1636
      %v1638 = vrot.slane %v1637, 4
      %v1639 = vrot.slane %v1251, 5
      %v1640 = vsel %vm1412, %v1638, %v1639
      %v1641 = vrot.slane %v1248, 4
      %v1642 = vor.u32 %v1641, %v1639
      %v1643 = vrot.slane %v1642, 4
      %v1644 = vrot.slane %v1256, 4
      %v1645 = vrot.slane %v1259, 5
      %v1646 = vor.u32 %v1644, %v1645
      %v1647 = vrot.slane %v1646, 4
      %v1648 = vrot.slane %v1267, 5
      %v1649 = vsel %vm1412, %v1647, %v1648
      %v1650 = vrot.slane %v1264, 4
      %v1651 = vor.u32 %v1650, %v1648
      %v1652 = vrot.slane %v1651, 4
      %v1653 = vrot.slane %v1272, 4
      %v1654 = vrot.slane %v1275, 5
      %v1655 = vor.u32 %v1653, %v1654
      %v1656 = vrot.slane %v1655, 4
      %v1657 = vrot.slane %v1283, 5
      %v1658 = vsel %vm1412, %v1656, %v1657
      %v1659 = vrot.slane %v1280, 4
      %v1660 = vor.u32 %v1659, %v1657
      %v1661 = vrot.slane %v1660, 4
      %1662 = vrot.lane.b32.xlu0 %v1559, 20
      %v1663 = vpop.permute.xlu0 %1662
      %1664 = vrot.lane.b32.xlu0 %v1562, 20
      %v1665 = vpop.permute.xlu0 %1664
      %1666 = vrot.lane.b32.xlu0 %v1568, 20
      %v1667 = vpop.permute.xlu0 %1666
      %1668 = vrot.lane.b32.xlu0 %v1571, 20
      %v1669 = vpop.permute.xlu0 %1668
      %1670 = vrot.lane.b32.xlu0 %v1577, 20
      %v1671 = vpop.permute.xlu0 %1670
      %1672 = vrot.lane.b32.xlu0 %v1580, 20
      %v1673 = vpop.permute.xlu0 %1672
      %1674 = vrot.lane.b32.xlu0 %v1586, 20
      %v1675 = vpop.permute.xlu0 %1674
      %1676 = vrot.lane.b32.xlu0 %v1589, 20
      %v1677 = vpop.permute.xlu0 %1676
      %1678 = vrot.lane.b32.xlu0 %v1595, 20
      %v1679 = vpop.permute.xlu0 %1678
      %1680 = vrot.lane.b32.xlu0 %v1598, 20
      %v1681 = vpop.permute.xlu0 %1680
      %1682 = vrot.lane.b32.xlu0 %v1604, 20
      %v1683 = vpop.permute.xlu0 %1682
      %1684 = vrot.lane.b32.xlu0 %v1607, 20
      %v1685 = vpop.permute.xlu0 %1684
      %1686 = vrot.lane.b32.xlu0 %v1613, 20
      %v1687 = vpop.permute.xlu0 %1686
      %1688 = vrot.lane.b32.xlu0 %v1616, 20
      %v1689 = vpop.permute.xlu0 %1688
      %1690 = vrot.lane.b32.xlu0 %v1622, 20
      %v1691 = vpop.permute.xlu0 %1690
      %1692 = vrot.lane.b32.xlu0 %v1625, 20
      %v1693 = vpop.permute.xlu0 %1692
      %1694 = vrot.lane.b32.xlu0 %v1631, 20
      %v1695 = vpop.permute.xlu0 %1694
      %1696 = vrot.lane.b32.xlu0 %v1634, 20
      %v1697 = vpop.permute.xlu0 %1696
      %1698 = vrot.lane.b32.xlu0 %v1640, 20
      %v1699 = vpop.permute.xlu0 %1698
      %1700 = vrot.lane.b32.xlu0 %v1643, 20
      %v1701 = vpop.permute.xlu0 %1700
      %1702 = vrot.lane.b32.xlu0 %v1649, 20
      %v1703 = vpop.permute.xlu0 %1702
      %1704 = vrot.lane.b32.xlu0 %v1652, 20
      %v1705 = vpop.permute.xlu0 %1704
      %1706 = vrot.lane.b32.xlu0 %v1658, 20
      %v1707 = vpop.permute.xlu0 %1706
      %1708 = vrot.lane.b32.xlu0 %v1661, 20
      %v1709 = vpop.permute.xlu0 %1708
      %vm1734 = vcmask 191648
      %1735 = vst.msk [vmem:[#allocation2] sm:$0xf] %vm1734, %v1663
      %vm1736 = vcmask 191648
      %vm1737 = vmand %vm1736, %vm1410
      %v1738 = vld [vmem:[#allocation2 + $0x4] sm:$0xf]
      %v1739 = vsel %vm1737, %v1665, %v1738
      %1740 = vst [vmem:[#allocation2 + $0x4] sm:$0xf] %v1739
      %1741 = vst.msk [vmem:[#allocation2 + $0x8] sm:$0xf] %vm1734, %v1667
      %v1742 = vld [vmem:[#allocation2 + $0xc] sm:$0xf]
      %v1743 = vsel %vm1737, %v1669, %v1742
      %1744 = vst [vmem:[#allocation2 + $0xc] sm:$0xf] %v1743
      %1745 = vst.msk [vmem:[#allocation2 + $0x10] sm:$0xf] %vm1734, %v1671
      %v1746 = vld [vmem:[#allocation2 + $0x14] sm:$0xf]
      %v1747 = vsel %vm1737, %v1673, %v1746
      %1748 = vst [vmem:[#allocation2 + $0x14] sm:$0xf] %v1747
      %1749 = vst.msk [vmem:[#allocation2 + $0x18] sm:$0xf] %vm1734, %v1675
      %v1750 = vld [vmem:[#allocation2 + $0x1c] sm:$0xf]
      %v1751 = vsel %vm1737, %v1677, %v1750
      %1752 = vst [vmem:[#allocation2 + $0x1c] sm:$0xf] %v1751
      %1753 = vst.msk [vmem:[#allocation2 + $0x20] sm:$0xf] %vm1734, %v1679
      %v1754 = vld [vmem:[#allocation2 + $0x24] sm:$0xf]
      %v1755 = vsel %vm1737, %v1681, %v1754
      %1756 = vst [vmem:[#allocation2 + $0x24] sm:$0xf] %v1755
      %1757 = vst.msk [vmem:[#allocation2 + $0x28] sm:$0xf] %vm1734, %v1683
      %v1758 = vld [vmem:[#allocation2 + $0x2c] sm:$0xf]
      %v1759 = vsel %vm1737, %v1685, %v1758
      %1760 = vst [vmem:[#allocation2 + $0x2c] sm:$0xf] %v1759
      %1761 = vst.msk [vmem:[#allocation2 + $0x30] sm:$0xf] %vm1734, %v1687
      %v1762 = vld [vmem:[#allocation2 + $0x34] sm:$0xf]
      %v1763 = vsel %vm1737, %v1689, %v1762
      %1764 = vst [vmem:[#allocation2 + $0x34] sm:$0xf] %v1763
      %1765 = vst.msk [vmem:[#allocation2 + $0x38] sm:$0xf] %vm1734, %v1691
      %v1766 = vld [vmem:[#allocation2 + $0x3c] sm:$0xf]
      %v1767 = vsel %vm1737, %v1693, %v1766
      %1768 = vst [vmem:[#allocation2 + $0x3c] sm:$0xf] %v1767
      %1769 = vst.msk [vmem:[#allocation2 + $0x40] sm:$0xf] %vm1734, %v1695
      %v1770 = vld [vmem:[#allocation2 + $0x44] sm:$0xf]
      %v1771 = vsel %vm1737, %v1697, %v1770
      %1772 = vst [vmem:[#allocation2 + $0x44] sm:$0xf] %v1771
      %1773 = vst.msk [vmem:[#allocation2 + $0x48] sm:$0xf] %vm1734, %v1699
      %v1774 = vld [vmem:[#allocation2 + $0x4c] sm:$0xf]
      %v1775 = vsel %vm1737, %v1701, %v1774
      %1776 = vst [vmem:[#allocation2 + $0x4c] sm:$0xf] %v1775
      %1777 = vst.msk [vmem:[#allocation2 + $0x50] sm:$0xf] %vm1734, %v1703
      %v1778 = vld [vmem:[#allocation2 + $0x54] sm:$0xf]
      %v1779 = vsel %vm1737, %v1705, %v1778
      %1780 = vst [vmem:[#allocation2 + $0x54] sm:$0xf] %v1779
      %1781 = vst.msk [vmem:[#allocation2 + $0x58] sm:$0xf] %vm1734, %v1707
      %v1782 = vld [vmem:[#allocation2 + $0x5c] sm:$0xf]
      %v1783 = vsel %vm1737, %v1709, %v1782
      %1784 = vst [vmem:[#allocation2 + $0x5c] sm:$0xf] %v1783
      %vm1785 = vcmask 57344
      %vm1786 = vmand %vm1785, %vm932
      %v1787 = vld [vmem:[#allocation2] sm:$0x1]
      %v1788 = vsel %vm1786, 0, %v1787
      %1789 = vst [vmem:[#allocation2] sm:$0x1] %v1788
      %v1790 = vld [vmem:[#allocation2 + $0x8] sm:$0x1]
      %v1791 = vsel %vm1786, 0, %v1790
      %1792 = vst [vmem:[#allocation2 + $0x8] sm:$0x1] %v1791
      %v1793 = vld [vmem:[#allocation2 + $0x10] sm:$0x1]
      %v1794 = vsel %vm1786, 0, %v1793
      %1795 = vst [vmem:[#allocation2 + $0x10] sm:$0x1] %v1794
      %v1796 = vld [vmem:[#allocation2 + $0x18] sm:$0x1]
      %v1797 = vsel %vm1786, 0, %v1796
      %1798 = vst [vmem:[#allocation2 + $0x18] sm:$0x1] %v1797
      %v1799 = vld [vmem:[#allocation2 + $0x20] sm:$0x1]
      %v1800 = vsel %vm1786, 0, %v1799
      %1801 = vst [vmem:[#allocation2 + $0x20] sm:$0x1] %v1800
      %v1802 = vld [vmem:[#allocation2 + $0x28] sm:$0x1]
      %v1803 = vsel %vm1786, 0, %v1802
      %1804 = vst [vmem:[#allocation2 + $0x28] sm:$0x1] %v1803
      %v1805 = vld [vmem:[#allocation2 + $0x30] sm:$0x1]
      %v1806 = vsel %vm1786, 0, %v1805
      %1807 = vst [vmem:[#allocation2 + $0x30] sm:$0x1] %v1806
      %v1808 = vld [vmem:[#allocation2 + $0x38] sm:$0x1]
      %v1809 = vsel %vm1786, 0, %v1808
      %1810 = vst [vmem:[#allocation2 + $0x38] sm:$0x1] %v1809
      %v1811 = vld [vmem:[#allocation2 + $0x40] sm:$0x1]
      %v1812 = vsel %vm1786, 0, %v1811
      %1813 = vst [vmem:[#allocation2 + $0x40] sm:$0x1] %v1812
      %v1814 = vld [vmem:[#allocation2 + $0x48] sm:$0x1]
      %v1815 = vsel %vm1786, 0, %v1814
      %1816 = vst [vmem:[#allocation2 + $0x48] sm:$0x1] %v1815
      %v1817 = vld [vmem:[#allocation2 + $0x50] sm:$0x1]
      %v1818 = vsel %vm1786, 0, %v1817
      %1819 = vst [vmem:[#allocation2 + $0x50] sm:$0x1] %v1818
      %v1820 = vld [vmem:[#allocation2 + $0x58] sm:$0x1]
      %v1821 = vsel %vm1786, 0, %v1820
      %1822 = vst [vmem:[#allocation2 + $0x58] sm:$0x1] %v1821
      %vm1823 = vcmask 191619
      %vm1824 = vsmask.f32 7950
      %vm1825 = vmand %vm1823, %vm1824
      %v1826 = vld [vmem:[#allocation2 + $0x4] sm:$0x8]
      %v1827 = vsel %vm1825, 0, %v1826
      %1828 = vst [vmem:[#allocation2 + $0x4] sm:$0x8] %v1827
      %v1829 = vld [vmem:[#allocation2 + $0xc] sm:$0x8]
      %v1830 = vsel %vm1825, 0, %v1829
      %1831 = vst [vmem:[#allocation2 + $0xc] sm:$0x8] %v1830
      %v1832 = vld [vmem:[#allocation2 + $0x14] sm:$0x8]
      %v1833 = vsel %vm1825, 0, %v1832
      %1834 = vst [vmem:[#allocation2 + $0x14] sm:$0x8] %v1833
      %v1835 = vld [vmem:[#allocation2 + $0x1c] sm:$0x8]
      %v1836 = vsel %vm1825, 0, %v1835
      %1837 = vst [vmem:[#allocation2 + $0x1c] sm:$0x8] %v1836
      %v1838 = vld [vmem:[#allocation2 + $0x24] sm:$0x8]
      %v1839 = vsel %vm1825, 0, %v1838
      %1840 = vst [vmem:[#allocation2 + $0x24] sm:$0x8] %v1839
      %v1841 = vld [vmem:[#allocation2 + $0x2c] sm:$0x8]
      %v1842 = vsel %vm1825, 0, %v1841
      %1843 = vst [vmem:[#allocation2 + $0x2c] sm:$0x8] %v1842
      %v1844 = vld [vmem:[#allocation2 + $0x34] sm:$0x8]
      %v1845 = vsel %vm1825, 0, %v1844
      %1846 = vst [vmem:[#allocation2 + $0x34] sm:$0x8] %v1845
      %v1847 = vld [vmem:[#allocation2 + $0x3c] sm:$0x8]
      %v1848 = vsel %vm1825, 0, %v1847
      %1849 = vst [vmem:[#allocation2 + $0x3c] sm:$0x8] %v1848
      %v1850 = vld [vmem:[#allocation2 + $0x44] sm:$0x8]
      %v1851 = vsel %vm1825, 0, %v1850
      %1852 = vst [vmem:[#allocation2 + $0x44] sm:$0x8] %v1851
      %v1853 = vld [vmem:[#allocation2 + $0x4c] sm:$0x8]
      %v1854 = vsel %vm1825, 0, %v1853
      %1855 = vst [vmem:[#allocation2 + $0x4c] sm:$0x8] %v1854
      %v1856 = vld [vmem:[#allocation2 + $0x54] sm:$0x8]
      %v1857 = vsel %vm1825, 0, %v1856
      %1858 = vst [vmem:[#allocation2 + $0x54] sm:$0x8] %v1857
      %v1859 = vld [vmem:[#allocation2 + $0x5c] sm:$0x8]
      %v1860 = vsel %vm1825, 0, %v1859
      %1861 = vst [vmem:[#allocation2 + $0x5c] sm:$0x8] %v1860
      %p1862 = scmp.eq.s32.totalorder %s26, 0
      // Predicated region
      $region61: #{decoder_block_forward.1} parent=59 // pred_check
        %p1863 = pneg %p1862
      $region62: #{decoder_block_forward.1} parent=59 // pred_check_branch
        %1865 = sbr.rel (%p1863) target = $region64
      $region63: #{decoder_block_forward.1} parent=59 // pred_region
        %vm1866 = vcmask 191488
        %1867 = vst.msk [vmem:[#allocation2] sm:$0xf] %vm1866, 0
        %1868 = vst.msk [vmem:[#allocation2 + $0x4] sm:$0xf] %vm1866, 0
        %1869 = vst.msk [vmem:[#allocation2 + $0x8] sm:$0xf] %vm1866, 0
        %1870 = vst.msk [vmem:[#allocation2 + $0xc] sm:$0xf] %vm1866, 0
      $region64: #{decoder_block_forward.1} parent=59 // pred_fallthru
        _
      %p1871 = scmp.eq.s32.totalorder %s26, 1
      // Predicated region
      $region65: #{decoder_block_forward.1} parent=59 // pred_check
        %p1872 = pneg %p1871
      $region66: #{decoder_block_forward.1} parent=59 // pred_check_branch
        %1874 = sbr.rel (%p1872) target = $region68
      $region67: #{decoder_block_forward.1} parent=59 // pred_region
        %s1875 = scalar_lea.vmem [#allocation2], 80
        %vm1876 = vcmask 191488
        %1877 = vst.msk [vmem:[%s1875] sm:$0xf] %vm1876, 0
        %1878 = vst.msk [vmem:[%s1875 + $0x4] sm:$0xf] %vm1876, 0
        %1879 = vst.msk [vmem:[%s1875 + $0x8] sm:$0xf] %vm1876, 0
        %1880 = vst.msk [vmem:[%s1875 + $0xc] sm:$0xf] %vm1876, 0
      $region68: #{decoder_block_forward.1} parent=59 // pred_fallthru
        _
      %v1881 = vld [vmem:[#allocation2] sm:$0xf]
      %v1882 = vld [vmem:[#allocation2 + $0x4] sm:$0xf]
      %v1883 = vld [vmem:[#allocation2 + $0x8] sm:$0xf]
      %v1884 = vld [vmem:[#allocation2 + $0xc] sm:$0xf]
      %v1885 = vld [vmem:[#allocation2 + $0x10] sm:$0xf]
      %v1886 = vld [vmem:[#allocation2 + $0x14] sm:$0xf]
      %v1887 = vld [vmem:[#allocation2 + $0x18] sm:$0xf]
      %v1888 = vld [vmem:[#allocation2 + $0x1c] sm:$0xf]
      %v1889 = vld [vmem:[#allocation2 + $0x20] sm:$0xf]
      %v1890 = vld [vmem:[#allocation2 + $0x24] sm:$0xf]
      %v1891 = vld [vmem:[#allocation2 + $0x28] sm:$0xf]
      %v1892 = vld [vmem:[#allocation2 + $0x2c] sm:$0xf]
      %v1893 = vld [vmem:[#allocation2 + $0x30] sm:$0xf]
      %v1894 = vld [vmem:[#allocation2 + $0x34] sm:$0xf]
      %v1895 = vld [vmem:[#allocation2 + $0x38] sm:$0xf]
      %v1896 = vld [vmem:[#allocation2 + $0x3c] sm:$0xf]
      %v1897 = vld [vmem:[#allocation2 + $0x40] sm:$0xf]
      %v1898 = vld [vmem:[#allocation2 + $0x44] sm:$0xf]
      %v1899 = vld [vmem:[#allocation2 + $0x48] sm:$0xf]
      %v1900 = vld [vmem:[#allocation2 + $0x4c] sm:$0xf]
      %v1901 = vld [vmem:[%s6] sm:$0xf]
      %v1902 = vld [vmem:[%s6 + $0x4] sm:$0xf]
      %v1903 = vld [vmem:[%s6 + $0x8] sm:$0xf]
      %s1904 = scalar_lea.vmem [#allocation2], 8
      %v1905 = vld [vmem:[%s1904] sm:$0xf]
      %v1906 = vld [vmem:[%s1904 + $0x4] sm:$0xf]
      %v1907 = vld [vmem:[%s1904 + $0x8] sm:$0xf]
      %v1908 = vld [vmem:[%s1904 + $0xc] sm:$0xf]
      %v1909 = vld [vmem:[%s1904 + $0x10] sm:$0xf]
      %v1910 = vld [vmem:[%s1904 + $0x14] sm:$0xf]
      %v1911 = vld [vmem:[%s1904 + $0x18] sm:$0xf]
      %v1912 = vld [vmem:[%s1904 + $0x1c] sm:$0xf]
      %v1913 = vld [vmem:[%s1904 + $0x20] sm:$0xf]
      %v1914 = vld [vmem:[%s1904 + $0x24] sm:$0xf]
      %v1915 = vld [vmem:[%s1904 + $0x28] sm:$0xf]
      %v1916 = vld [vmem:[%s1904 + $0x2c] sm:$0xf]
      %v1917 = vld [vmem:[%s1904 + $0x30] sm:$0xf]
      %v1918 = vld [vmem:[%s1904 + $0x34] sm:$0xf]
      %v1919 = vld [vmem:[%s1904 + $0x38] sm:$0xf]
      %v1920 = vld [vmem:[%s1904 + $0x3c] sm:$0xf]
      %v1921 = vld [vmem:[%s1904 + $0x40] sm:$0xf]
      %v1922 = vld [vmem:[%s1904 + $0x44] sm:$0xf]
      %v1923 = vld [vmem:[%s1904 + $0x48] sm:$0xf]
      %v1924 = vld [vmem:[%s1904 + $0x4c] sm:$0xf]
      %s1925 = scalar_lea.vmem %s6, 12
      %v1926 = vld [vmem:[%s1925] sm:$0xf]
      %v1927 = vld [vmem:[%s1925 + $0x4] sm:$0xf]
      %v1928 = vld [vmem:[%s1925 + $0x8] sm:$0xf]
      %v1949 = vunpack.c.l.b16 %v1905
      %v1950 = vunpack.c.l.b16 %v1906
      %v1951 = vunpack.c.l.b16 %v1907
      %v1952 = vunpack.c.l.b16 %v1908
      %v1953 = vunpack.c.l.b16 %v1909
      %v1954 = vunpack.c.l.b16 %v1910
      %v1955 = vunpack.c.l.b16 %v1911
      %v1956 = vunpack.c.l.b16 %v1912
      %v1957 = vunpack.c.l.b16 %v1913
      %v1958 = vunpack.c.l.b16 %v1914
      %v1959 = vunpack.c.l.b16 %v1915
      %v1960 = vunpack.c.l.b16 %v1916
      %v1961 = vunpack.c.l.b16 %v1917
      %v1962 = vunpack.c.l.b16 %v1918
      %v1963 = vunpack.c.l.b16 %v1919
      %v1964 = vunpack.c.l.b16 %v1920
      %v1965 = vunpack.c.l.b16 %v1921
      %v1966 = vunpack.c.l.b16 %v1922
      %v1967 = vunpack.c.l.b16 %v1923
      %v1968 = vunpack.c.l.b16 %v1924
      %v1969 = vpack.c.b16 %v1950, %v1949
      %v1970 = vpack.c.b16 %v1952, %v1951
      %v1971 = vpack.c.b16 %v1954, %v1953
      %v1972 = vpack.c.b16 %v1956, %v1955
      %v1973 = vpack.c.b16 %v1958, %v1957
      %v1974 = vpack.c.b16 %v1960, %v1959
      %v1975 = vpack.c.b16 %v1962, %v1961
      %v1976 = vpack.c.b16 %v1964, %v1963
      %v1977 = vpack.c.b16 %v1966, %v1965
      %v1978 = vpack.c.b16 %v1968, %v1967
      %v1982 = vunpack.c.l.b16 %v1926
      %v1983 = vunpack.c.l.b16 %v1927
      %v1984 = vunpack.c.l.b16 %v1928
      %v1985 = vpack.c.b16 %v1983, %v1982
      %v1986 = vpack.c.b16 %v1984, %v1984
      %vm1988 = vcmask 195584
      %v1990 = vsel %vm1988, %v1969, 0
      %v1993 = vsel %vm1988, %v1970, 0
      %v1996 = vsel %vm1988, %v1971, 0
      %v1999 = vsel %vm1988, %v1972, 0
      %v2002 = vsel %vm1988, %v1973, 0
      %v2005 = vsel %vm1988, %v1974, 0
      %v2008 = vsel %vm1988, %v1975, 0
      %v2011 = vsel %vm1988, %v1976, 0
      %v2014 = vsel %vm1988, %v1977, 0
      %v2017 = vsel %vm1988, %v1978, 0
      %vm2019 = vcmask 1043456
      %v2021 = vsel %vm2019, %v1986, 0
      %2023 = vmatpush.bf16.msra.mxu0 0
      %2024 = vmatpush.bf16.msra.mxu0 0
      %2025 = vmatpush.bf16.msra.mxu0 0
      %2026 = vmatpush.bf16.msra.mxu0 0
      %2027 = vmatpush.bf16.msra.mxu0 0
      %2028 = vmatpush.bf16.msra.mxu0 0
      %2029 = vmatpush.bf16.msra.mxu0 %v2021
      %2030 = vmatpush.bf16.msra.mxu0 %v1985
      %2031 = vmatmul.bf16.gmra.mxu0 %v1990
      %v2032 = vpop.f32.mrf.mxu0
      %v2033 = vadd.f32 0.0, %v2032
      %v2034 = vpop.f32.mrf.mxu0
      %v2035 = vadd.f32 0.0, %v2034
      %2036 = vmatmul.bf16.gmra.mxu0 %v1993
      %v2037 = vpop.f32.mrf.mxu0
      %v2038 = vadd.f32 0.0, %v2037
      %v2039 = vpop.f32.mrf.mxu0
      %v2040 = vadd.f32 0.0, %v2039
      %2041 = vmatmul.bf16.gmra.mxu0 %v1996
      %v2042 = vpop.f32.mrf.mxu0
      %v2043 = vadd.f32 0.0, %v2042
      %v2044 = vpop.f32.mrf.mxu0
      %v2045 = vadd.f32 0.0, %v2044
      %2046 = vmatmul.bf16.gmra.mxu0 %v1999
      %v2047 = vpop.f32.mrf.mxu0
      %v2048 = vadd.f32 0.0, %v2047
      %v2049 = vpop.f32.mrf.mxu0
      %v2050 = vadd.f32 0.0, %v2049
      %2051 = vmatmul.bf16.gmra.mxu0 %v2002
      %v2052 = vpop.f32.mrf.mxu0
      %v2053 = vadd.f32 0.0, %v2052
      %v2054 = vpop.f32.mrf.mxu0
      %v2055 = vadd.f32 0.0, %v2054
      %2056 = vmatmul.bf16.gmra.mxu0 %v2005
      %v2057 = vpop.f32.mrf.mxu0
      %v2058 = vadd.f32 0.0, %v2057
      %v2059 = vpop.f32.mrf.mxu0
      %v2060 = vadd.f32 0.0, %v2059
      %2061 = vmatmul.bf16.gmra.mxu0 %v2008
      %v2062 = vpop.f32.mrf.mxu0
      %v2063 = vadd.f32 0.0, %v2062
      %v2064 = vpop.f32.mrf.mxu0
      %v2065 = vadd.f32 0.0, %v2064
      %2066 = vmatmul.bf16.gmra.mxu0 %v2011
      %v2067 = vpop.f32.mrf.mxu0
      %v2068 = vadd.f32 0.0, %v2067
      %v2069 = vpop.f32.mrf.mxu0
      %v2070 = vadd.f32 0.0, %v2069
      %2071 = vmatmul.bf16.gmra.mxu0 %v2014
      %v2072 = vpop.f32.mrf.mxu0
      %v2073 = vadd.f32 0.0, %v2072
      %v2074 = vpop.f32.mrf.mxu0
      %v2075 = vadd.f32 0.0, %v2074
      %2076 = vmatmul.bf16.gmra.mxu0 %v2017
      %v2077 = vpop.f32.mrf.mxu0
      %v2078 = vadd.f32 0.0, %v2077
      %v2079 = vpop.f32.mrf.mxu0
      %v2080 = vadd.f32 0.0, %v2079
      %2081 = vdwg.mxu0
      %v2102 = vunpack.c.l.b16 %v1881
      %v2103 = vunpack.c.l.b16 %v1882
      %v2104 = vunpack.c.l.b16 %v1883
      %v2105 = vunpack.c.l.b16 %v1884
      %v2106 = vunpack.c.l.b16 %v1885
      %v2107 = vunpack.c.l.b16 %v1886
      %v2108 = vunpack.c.l.b16 %v1887
      %v2109 = vunpack.c.l.b16 %v1888
      %v2110 = vunpack.c.l.b16 %v1889
      %v2111 = vunpack.c.l.b16 %v1890
      %v2112 = vunpack.c.l.b16 %v1891
      %v2113 = vunpack.c.l.b16 %v1892
      %v2114 = vunpack.c.l.b16 %v1893
      %v2115 = vunpack.c.l.b16 %v1894
      %v2116 = vunpack.c.l.b16 %v1895
      %v2117 = vunpack.c.l.b16 %v1896
      %v2118 = vunpack.c.l.b16 %v1897
      %v2119 = vunpack.c.l.b16 %v1898
      %v2120 = vunpack.c.l.b16 %v1899
      %v2121 = vunpack.c.l.b16 %v1900
      %v2122 = vpack.c.b16 %v2103, %v2102
      %v2123 = vpack.c.b16 %v2105, %v2104
      %v2124 = vpack.c.b16 %v2107, %v2106
      %v2125 = vpack.c.b16 %v2109, %v2108
      %v2126 = vpack.c.b16 %v2111, %v2110
      %v2127 = vpack.c.b16 %v2113, %v2112
      %v2128 = vpack.c.b16 %v2115, %v2114
      %v2129 = vpack.c.b16 %v2117, %v2116
      %v2130 = vpack.c.b16 %v2119, %v2118
      %v2131 = vpack.c.b16 %v2121, %v2120
      %v2135 = vunpack.c.l.b16 %v1901
      %v2136 = vunpack.c.l.b16 %v1902
      %v2137 = vunpack.c.l.b16 %v1903
      %v2138 = vpack.c.b16 %v2136, %v2135
      %v2139 = vpack.c.b16 %v2137, %v2137
      %v2142 = vsel %vm1988, %v2122, 0
      %v2145 = vsel %vm1988, %v2123, 0
      %v2148 = vsel %vm1988, %v2124, 0
      %v2151 = vsel %vm1988, %v2125, 0
      %v2154 = vsel %vm1988, %v2126, 0
      %v2157 = vsel %vm1988, %v2127, 0
      %v2160 = vsel %vm1988, %v2128, 0
      %v2163 = vsel %vm1988, %v2129, 0
      %v2166 = vsel %vm1988, %v2130, 0
      %v2169 = vsel %vm1988, %v2131, 0
      %v2172 = vsel %vm2019, %v2139, 0
      %2174 = vmatpush.bf16.msra.mxu0 0
      %2175 = vmatpush.bf16.msra.mxu0 0
      %2176 = vmatpush.bf16.msra.mxu0 0
      %2177 = vmatpush.bf16.msra.mxu0 0
      %2178 = vmatpush.bf16.msra.mxu0 0
      %2179 = vmatpush.bf16.msra.mxu0 0
      %2180 = vmatpush.bf16.msra.mxu0 %v2172
      %2181 = vmatpush.bf16.msra.mxu0 %v2138
      %2182 = vmatmul.bf16.gmra.mxu0 %v2142
      %v2183 = vpop.f32.mrf.mxu0
      %v2184 = vadd.f32 %v2033, %v2183
      %v2185 = vpop.f32.mrf.mxu0
      %v2186 = vadd.f32 %v2035, %v2185
      %2187 = vmatmul.bf16.gmra.mxu0 %v2145
      %v2188 = vpop.f32.mrf.mxu0
      %v2189 = vadd.f32 %v2038, %v2188
      %v2190 = vpop.f32.mrf.mxu0
      %v2191 = vadd.f32 %v2040, %v2190
      %2192 = vmatmul.bf16.gmra.mxu0 %v2148
      %v2193 = vpop.f32.mrf.mxu0
      %v2194 = vadd.f32 %v2043, %v2193
      %v2195 = vpop.f32.mrf.mxu0
      %v2196 = vadd.f32 %v2045, %v2195
      %2197 = vmatmul.bf16.gmra.mxu0 %v2151
      %v2198 = vpop.f32.mrf.mxu0
      %v2199 = vadd.f32 %v2048, %v2198
      %v2200 = vpop.f32.mrf.mxu0
      %v2201 = vadd.f32 %v2050, %v2200
      %2202 = vmatmul.bf16.gmra.mxu0 %v2154
      %v2203 = vpop.f32.mrf.mxu0
      %v2204 = vadd.f32 %v2053, %v2203
      %v2205 = vpop.f32.mrf.mxu0
      %v2206 = vadd.f32 %v2055, %v2205
      %2207 = vmatmul.bf16.gmra.mxu0 %v2157
      %v2208 = vpop.f32.mrf.mxu0
      %v2209 = vadd.f32 %v2058, %v2208
      %v2210 = vpop.f32.mrf.mxu0
      %v2211 = vadd.f32 %v2060, %v2210
      %2212 = vmatmul.bf16.gmra.mxu0 %v2160
      %v2213 = vpop.f32.mrf.mxu0
      %v2214 = vadd.f32 %v2063, %v2213
      %v2215 = vpop.f32.mrf.mxu0
      %v2216 = vadd.f32 %v2065, %v2215
      %2217 = vmatmul.bf16.gmra.mxu0 %v2163
      %v2218 = vpop.f32.mrf.mxu0
      %v2219 = vadd.f32 %v2068, %v2218
      %v2220 = vpop.f32.mrf.mxu0
      %v2221 = vadd.f32 %v2070, %v2220
      %2222 = vmatmul.bf16.gmra.mxu0 %v2166
      %v2223 = vpop.f32.mrf.mxu0
      %v2224 = vadd.f32 %v2073, %v2223
      %v2225 = vpop.f32.mrf.mxu0
      %v2226 = vadd.f32 %v2075, %v2225
      %2227 = vmatmul.bf16.gmra.mxu0 %v2169
      %v2228 = vpop.f32.mrf.mxu0
      %v2229 = vadd.f32 %v2078, %v2228
      %v2230 = vpop.f32.mrf.mxu0
      %v2231 = vadd.f32 %v2080, %v2230
      %2232 = vdwg.mxu0
      %s2233 = scalar_lea.vmem [#allocation2], 16
      %v2234 = vld [vmem:[%s2233] sm:$0xf]
      %v2235 = vld [vmem:[%s2233 + $0x4] sm:$0xf]
      %v2236 = vld [vmem:[%s2233 + $0x8] sm:$0xf]
      %v2237 = vld [vmem:[%s2233 + $0xc] sm:$0xf]
      %v2238 = vld [vmem:[%s2233 + $0x10] sm:$0xf]
      %v2239 = vld [vmem:[%s2233 + $0x14] sm:$0xf]
      %v2240 = vld [vmem:[%s2233 + $0x18] sm:$0xf]
      %v2241 = vld [vmem:[%s2233 + $0x1c] sm:$0xf]
      %v2242 = vld [vmem:[%s2233 + $0x20] sm:$0xf]
      %v2243 = vld [vmem:[%s2233 + $0x24] sm:$0xf]
      %v2244 = vld [vmem:[%s2233 + $0x28] sm:$0xf]
      %v2245 = vld [vmem:[%s2233 + $0x2c] sm:$0xf]
      %v2246 = vld [vmem:[%s2233 + $0x30] sm:$0xf]
      %v2247 = vld [vmem:[%s2233 + $0x34] sm:$0xf]
      %v2248 = vld [vmem:[%s2233 + $0x38] sm:$0xf]
      %v2249 = vld [vmem:[%s2233 + $0x3c] sm:$0xf]
      %v2250 = vld [vmem:[%s2233 + $0x40] sm:$0xf]
      %v2251 = vld [vmem:[%s2233 + $0x44] sm:$0xf]
      %v2252 = vld [vmem:[%s2233 + $0x48] sm:$0xf]
      %v2253 = vld [vmem:[%s2233 + $0x4c] sm:$0xf]
      %s2254 = scalar_lea.vmem %s6, 24
      %v2255 = vld [vmem:[%s2254] sm:$0xf]
      %v2256 = vld [vmem:[%s2254 + $0x4] sm:$0xf]
      %v2257 = vld [vmem:[%s2254 + $0x8] sm:$0xf]
      %v2278 = vunpack.c.l.b16 %v2234
      %v2279 = vunpack.c.l.b16 %v2235
      %v2280 = vunpack.c.l.b16 %v2236
      %v2281 = vunpack.c.l.b16 %v2237
      %v2282 = vunpack.c.l.b16 %v2238
      %v2283 = vunpack.c.l.b16 %v2239
      %v2284 = vunpack.c.l.b16 %v2240
      %v2285 = vunpack.c.l.b16 %v2241
      %v2286 = vunpack.c.l.b16 %v2242
      %v2287 = vunpack.c.l.b16 %v2243
      %v2288 = vunpack.c.l.b16 %v2244
      %v2289 = vunpack.c.l.b16 %v2245
      %v2290 = vunpack.c.l.b16 %v2246
      %v2291 = vunpack.c.l.b16 %v2247
      %v2292 = vunpack.c.l.b16 %v2248
      %v2293 = vunpack.c.l.b16 %v2249
      %v2294 = vunpack.c.l.b16 %v2250
      %v2295 = vunpack.c.l.b16 %v2251
      %v2296 = vunpack.c.l.b16 %v2252
      %v2297 = vunpack.c.l.b16 %v2253
      %v2298 = vpack.c.b16 %v2279, %v2278
      %v2299 = vpack.c.b16 %v2281, %v2280
      %v2300 = vpack.c.b16 %v2283, %v2282
      %v2301 = vpack.c.b16 %v2285, %v2284
      %v2302 = vpack.c.b16 %v2287, %v2286
      %v2303 = vpack.c.b16 %v2289, %v2288
      %v2304 = vpack.c.b16 %v2291, %v2290
      %v2305 = vpack.c.b16 %v2293, %v2292
      %v2306 = vpack.c.b16 %v2295, %v2294
      %v2307 = vpack.c.b16 %v2297, %v2296
      %v2311 = vunpack.c.l.b16 %v2255
      %v2312 = vunpack.c.l.b16 %v2256
      %v2313 = vunpack.c.l.b16 %v2257
      %v2314 = vpack.c.b16 %v2312, %v2311
      %v2315 = vpack.c.b16 %v2313, %v2313
      %v2318 = vsel %vm1988, %v2298, 0
      %v2321 = vsel %vm1988, %v2299, 0
      %v2324 = vsel %vm1988, %v2300, 0
      %v2327 = vsel %vm1988, %v2301, 0
      %v2330 = vsel %vm1988, %v2302, 0
      %v2333 = vsel %vm1988, %v2303, 0
      %v2336 = vsel %vm1988, %v2304, 0
      %v2339 = vsel %vm1988, %v2305, 0
      %v2342 = vsel %vm1988, %v2306, 0
      %v2345 = vsel %vm1988, %v2307, 0
      %v2348 = vsel %vm2019, %v2315, 0
      %2350 = vmatpush.bf16.msra.mxu0 0
      %2351 = vmatpush.bf16.msra.mxu0 0
      %2352 = vmatpush.bf16.msra.mxu0 0
      %2353 = vmatpush.bf16.msra.mxu0 0
      %2354 = vmatpush.bf16.msra.mxu0 0
      %2355 = vmatpush.bf16.msra.mxu0 0
      %2356 = vmatpush.bf16.msra.mxu0 %v2348
      %2357 = vmatpush.bf16.msra.mxu0 %v2314
      %2358 = vmatmul.bf16.gmra.mxu0 %v2318
      %v2359 = vpop.f32.mrf.mxu0
      %v2360 = vadd.f32 0.0, %v2359
      %v2361 = vpop.f32.mrf.mxu0
      %v2362 = vadd.f32 0.0, %v2361
      %2363 = vmatmul.bf16.gmra.mxu0 %v2321
      %v2364 = vpop.f32.mrf.mxu0
      %v2365 = vadd.f32 0.0, %v2364
      %v2366 = vpop.f32.mrf.mxu0
      %v2367 = vadd.f32 0.0, %v2366
      %2368 = vmatmul.bf16.gmra.mxu0 %v2324
      %v2369 = vpop.f32.mrf.mxu0
      %v2370 = vadd.f32 0.0, %v2369
      %v2371 = vpop.f32.mrf.mxu0
      %v2372 = vadd.f32 0.0, %v2371
      %2373 = vmatmul.bf16.gmra.mxu0 %v2327
      %v2374 = vpop.f32.mrf.mxu0
      %v2375 = vadd.f32 0.0, %v2374
      %v2376 = vpop.f32.mrf.mxu0
      %v2377 = vadd.f32 0.0, %v2376
      %2378 = vmatmul.bf16.gmra.mxu0 %v2330
      %v2379 = vpop.f32.mrf.mxu0
      %v2380 = vadd.f32 0.0, %v2379
      %v2381 = vpop.f32.mrf.mxu0
      %v2382 = vadd.f32 0.0, %v2381
      %2383 = vmatmul.bf16.gmra.mxu0 %v2333
      %v2384 = vpop.f32.mrf.mxu0
      %v2385 = vadd.f32 0.0, %v2384
      %v2386 = vpop.f32.mrf.mxu0
      %v2387 = vadd.f32 0.0, %v2386
      %2388 = vmatmul.bf16.gmra.mxu0 %v2336
      %v2389 = vpop.f32.mrf.mxu0
      %v2390 = vadd.f32 0.0, %v2389
      %v2391 = vpop.f32.mrf.mxu0
      %v2392 = vadd.f32 0.0, %v2391
      %2393 = vmatmul.bf16.gmra.mxu0 %v2339
      %v2394 = vpop.f32.mrf.mxu0
      %v2395 = vadd.f32 0.0, %v2394
      %v2396 = vpop.f32.mrf.mxu0
      %v2397 = vadd.f32 0.0, %v2396
      %2398 = vmatmul.bf16.gmra.mxu0 %v2342
      %v2399 = vpop.f32.mrf.mxu0
      %v2400 = vadd.f32 0.0, %v2399
      %v2401 = vpop.f32.mrf.mxu0
      %v2402 = vadd.f32 0.0, %v2401
      %2403 = vmatmul.bf16.gmra.mxu0 %v2345
      %v2404 = vpop.f32.mrf.mxu0
      %v2405 = vadd.f32 0.0, %v2404
      %v2406 = vpop.f32.mrf.mxu0
      %v2407 = vadd.f32 0.0, %v2406
      %2408 = vdwg.mxu0
      %v2409 = vadd.f32 %v2184, %v2360
      %v2410 = vadd.f32 %v2186, %v2362
      %v2411 = vadd.f32 %v2189, %v2365
      %v2412 = vadd.f32 %v2191, %v2367
      %v2413 = vadd.f32 %v2194, %v2370
      %v2414 = vadd.f32 %v2196, %v2372
      %v2415 = vadd.f32 %v2199, %v2375
      %v2416 = vadd.f32 %v2201, %v2377
      %v2417 = vadd.f32 %v2204, %v2380
      %v2418 = vadd.f32 %v2206, %v2382
      %v2419 = vadd.f32 %v2209, %v2385
      %v2420 = vadd.f32 %v2211, %v2387
      %v2421 = vadd.f32 %v2214, %v2390
      %v2422 = vadd.f32 %v2216, %v2392
      %v2423 = vadd.f32 %v2219, %v2395
      %v2424 = vadd.f32 %v2221, %v2397
      %v2425 = vadd.f32 %v2224, %v2400
      %v2426 = vadd.f32 %v2226, %v2402
      %v2427 = vadd.f32 %v2229, %v2405
      %v2428 = vadd.f32 %v2231, %v2407
      %v2429 = vld [vmem:[%s7] sm:$0x1]
      %v2431 = vperm.slane %v2429, 0
      %v2433 = vadd.f32 %v2409, %v2431
      %v2434 = vadd.f32 %v2410, %v2431
      %v2435 = vadd.f32 %v2411, %v2431
      %v2436 = vadd.f32 %v2412, %v2431
      %v2437 = vadd.f32 %v2413, %v2431
      %v2438 = vadd.f32 %v2414, %v2431
      %v2439 = vadd.f32 %v2415, %v2431
      %v2440 = vadd.f32 %v2416, %v2431
      %v2441 = vadd.f32 %v2417, %v2431
      %v2442 = vadd.f32 %v2418, %v2431
      %v2443 = vadd.f32 %v2419, %v2431
      %v2444 = vadd.f32 %v2420, %v2431
      %v2445 = vadd.f32 %v2421, %v2431
      %v2446 = vadd.f32 %v2422, %v2431
      %v2447 = vadd.f32 %v2423, %v2431
      %v2448 = vadd.f32 %v2424, %v2431
      %v2449 = vadd.f32 %v2425, %v2431
      %v2450 = vadd.f32 %v2426, %v2431
      %v2451 = vadd.f32 %v2427, %v2431
      %v2452 = vadd.f32 %v2428, %v2431
      %v2453 = vmax.f32 %v2433, 0.0
      %v2454 = vmax.f32 %v2434, 0.0
      %v2455 = vmax.f32 %v2435, 0.0
      %v2456 = vmax.f32 %v2436, 0.0
      %v2457 = vmax.f32 %v2437, 0.0
      %v2458 = vmax.f32 %v2438, 0.0
      %v2459 = vmax.f32 %v2439, 0.0
      %v2460 = vmax.f32 %v2440, 0.0
      %v2461 = vmax.f32 %v2441, 0.0
      %v2462 = vmax.f32 %v2442, 0.0
      %v2463 = vmax.f32 %v2443, 0.0
      %v2464 = vmax.f32 %v2444, 0.0
      %v2465 = vmax.f32 %v2445, 0.0
      %v2466 = vmax.f32 %v2446, 0.0
      %v2467 = vmax.f32 %v2447, 0.0
      %v2468 = vmax.f32 %v2448, 0.0
      %v2469 = vmax.f32 %v2449, 0.0
      %v2470 = vmax.f32 %v2450, 0.0
      %v2471 = vmax.f32 %v2451, 0.0
      %v2472 = vmax.f32 %v2452, 0.0
      %v2473 = vpack.c.bf16 %v2453, %v2453
      %v2474 = vpack.c.bf16 %v2454, %v2454
      %v2475 = vpack.c.bf16 %v2455, %v2455
      %v2476 = vpack.c.bf16 %v2456, %v2456
      %v2477 = vpack.c.bf16 %v2457, %v2457
      %v2478 = vpack.c.bf16 %v2458, %v2458
      %v2479 = vpack.c.bf16 %v2459, %v2459
      %v2480 = vpack.c.bf16 %v2460, %v2460
      %v2481 = vpack.c.bf16 %v2461, %v2461
      %v2482 = vpack.c.bf16 %v2462, %v2462
      %v2483 = vpack.c.bf16 %v2463, %v2463
      %v2484 = vpack.c.bf16 %v2464, %v2464
      %v2485 = vpack.c.bf16 %v2465, %v2465
      %v2486 = vpack.c.bf16 %v2466, %v2466
      %v2487 = vpack.c.bf16 %v2467, %v2467
      %v2488 = vpack.c.bf16 %v2468, %v2468
      %v2489 = vpack.c.bf16 %v2469, %v2469
      %v2490 = vpack.c.bf16 %v2470, %v2470
      %v2491 = vpack.c.bf16 %v2471, %v2471
      %v2492 = vpack.c.bf16 %v2472, %v2472
      %2513 = vrot.lane.b32.xlu0 %v2473, 8
      %v2514 = vpop.permute.xlu0 %2513
      %2515 = vrot.lane.b32.xlu0 %v2474, 8
      %v2516 = vpop.permute.xlu0 %2515
      %2517 = vrot.lane.b32.xlu0 %v2475, 8
      %v2518 = vpop.permute.xlu0 %2517
      %2519 = vrot.lane.b32.xlu0 %v2476, 8
      %v2520 = vpop.permute.xlu0 %2519
      %2521 = vrot.lane.b32.xlu0 %v2477, 8
      %v2522 = vpop.permute.xlu0 %2521
      %2523 = vrot.lane.b32.xlu0 %v2478, 8
      %v2524 = vpop.permute.xlu0 %2523
      %2525 = vrot.lane.b32.xlu0 %v2479, 8
      %v2526 = vpop.permute.xlu0 %2525
      %2527 = vrot.lane.b32.xlu0 %v2480, 8
      %v2528 = vpop.permute.xlu0 %2527
      %2529 = vrot.lane.b32.xlu0 %v2481, 8
      %v2530 = vpop.permute.xlu0 %2529
      %2531 = vrot.lane.b32.xlu0 %v2482, 8
      %v2532 = vpop.permute.xlu0 %2531
      %2533 = vrot.lane.b32.xlu0 %v2483, 8
      %v2534 = vpop.permute.xlu0 %2533
      %2535 = vrot.lane.b32.xlu0 %v2484, 8
      %v2536 = vpop.permute.xlu0 %2535
      %2537 = vrot.lane.b32.xlu0 %v2485, 8
      %v2538 = vpop.permute.xlu0 %2537
      %2539 = vrot.lane.b32.xlu0 %v2486, 8
      %v2540 = vpop.permute.xlu0 %2539
      %2541 = vrot.lane.b32.xlu0 %v2487, 8
      %v2542 = vpop.permute.xlu0 %2541
      %2543 = vrot.lane.b32.xlu0 %v2488, 8
      %v2544 = vpop.permute.xlu0 %2543
      %2545 = vrot.lane.b32.xlu0 %v2489, 8
      %v2546 = vpop.permute.xlu0 %2545
      %2547 = vrot.lane.b32.xlu0 %v2490, 8
      %v2548 = vpop.permute.xlu0 %2547
      %2549 = vrot.lane.b32.xlu0 %v2491, 8
      %v2550 = vpop.permute.xlu0 %2549
      %2551 = vrot.lane.b32.xlu0 %v2492, 8
      %v2552 = vpop.permute.xlu0 %2551
      %vm2573 = vcmask 126016
      %2574 = vst.msk [vmem:[#allocation3] sm:$0xf] %vm2573, %v2514
      %2575 = vst.msk [vmem:[#allocation3 + $0x4] sm:$0xf] %vm2573, %v2516
      %2576 = vst.msk [vmem:[#allocation3 + $0x8] sm:$0xf] %vm2573, %v2518
      %2577 = vst.msk [vmem:[#allocation3 + $0xc] sm:$0xf] %vm2573, %v2520
      %2578 = vst.msk [vmem:[#allocation3 + $0x10] sm:$0xf] %vm2573, %v2522
      %2579 = vst.msk [vmem:[#allocation3 + $0x14] sm:$0xf] %vm2573, %v2524
      %2580 = vst.msk [vmem:[#allocation3 + $0x18] sm:$0xf] %vm2573, %v2526
      %2581 = vst.msk [vmem:[#allocation3 + $0x1c] sm:$0xf] %vm2573, %v2528
      %2582 = vst.msk [vmem:[#allocation3 + $0x20] sm:$0xf] %vm2573, %v2530
      %2583 = vst.msk [vmem:[#allocation3 + $0x24] sm:$0xf] %vm2573, %v2532
      %2584 = vst.msk [vmem:[#allocation3 + $0x28] sm:$0xf] %vm2573, %v2534
      %2585 = vst.msk [vmem:[#allocation3 + $0x2c] sm:$0xf] %vm2573, %v2536
      %2586 = vst.msk [vmem:[#allocation3 + $0x30] sm:$0xf] %vm2573, %v2538
      %2587 = vst.msk [vmem:[#allocation3 + $0x34] sm:$0xf] %vm2573, %v2540
      %2588 = vst.msk [vmem:[#allocation3 + $0x38] sm:$0xf] %vm2573, %v2542
      %2589 = vst.msk [vmem:[#allocation3 + $0x3c] sm:$0xf] %vm2573, %v2544
      %2590 = vst.msk [vmem:[#allocation3 + $0x40] sm:$0xf] %vm2573, %v2546
      %2591 = vst.msk [vmem:[#allocation3 + $0x44] sm:$0xf] %vm2573, %v2548
      %2592 = vst.msk [vmem:[#allocation3 + $0x48] sm:$0xf] %vm2573, %v2550
      %2593 = vst.msk [vmem:[#allocation3 + $0x4c] sm:$0xf] %vm2573, %v2552
      %v2595 = vshrl.u32 %v2473, 16
      %v2597 = vrot.slane %v2595, 7
      %v2598 = vshll.u32 %v2473, 16
      %v2600 = vor.u32 %v2597, %v2598
      %v2601 = vrot.slane %v2597, 4
      %v2603 = vshrl.u32 %v2474, 16
      %v2605 = vrot.slane %v2603, 7
      %v2606 = vshll.u32 %v2474, 16
      %v2608 = vor.u32 %v2605, %v2606
      %v2609 = vsel %vm934, %v2601, %v2608
      %v2611 = vshrl.u32 %v2475, 16
      %v2613 = vrot.slane %v2611, 7
      %v2614 = vshll.u32 %v2475, 16
      %v2616 = vor.u32 %v2613, %v2614
      %v2617 = vrot.slane %v2613, 4
      %v2619 = vshrl.u32 %v2476, 16
      %v2621 = vrot.slane %v2619, 7
      %v2622 = vshll.u32 %v2476, 16
      %v2624 = vor.u32 %v2621, %v2622
      %v2625 = vsel %vm934, %v2617, %v2624
      %v2627 = vshrl.u32 %v2477, 16
      %v2629 = vrot.slane %v2627, 7
      %v2630 = vshll.u32 %v2477, 16
      %v2632 = vor.u32 %v2629, %v2630
      %v2633 = vrot.slane %v2629, 4
      %v2635 = vshrl.u32 %v2478, 16
      %v2637 = vrot.slane %v2635, 7
      %v2638 = vshll.u32 %v2478, 16
      %v2640 = vor.u32 %v2637, %v2638
      %v2641 = vsel %vm934, %v2633, %v2640
      %v2643 = vshrl.u32 %v2479, 16
      %v2645 = vrot.slane %v2643, 7
      %v2646 = vshll.u32 %v2479, 16
      %v2648 = vor.u32 %v2645, %v2646
      %v2649 = vrot.slane %v2645, 4
      %v2651 = vshrl.u32 %v2480, 16
      %v2653 = vrot.slane %v2651, 7
      %v2654 = vshll.u32 %v2480, 16
      %v2656 = vor.u32 %v2653, %v2654
      %v2657 = vsel %vm934, %v2649, %v2656
      %v2659 = vshrl.u32 %v2481, 16
      %v2661 = vrot.slane %v2659, 7
      %v2662 = vshll.u32 %v2481, 16
      %v2664 = vor.u32 %v2661, %v2662
      %v2665 = vrot.slane %v2661, 4
      %v2667 = vshrl.u32 %v2482, 16
      %v2669 = vrot.slane %v2667, 7
      %v2670 = vshll.u32 %v2482, 16
      %v2672 = vor.u32 %v2669, %v2670
      %v2673 = vsel %vm934, %v2665, %v2672
      %v2675 = vshrl.u32 %v2483, 16
      %v2677 = vrot.slane %v2675, 7
      %v2678 = vshll.u32 %v2483, 16
      %v2680 = vor.u32 %v2677, %v2678
      %v2681 = vrot.slane %v2677, 4
      %v2683 = vshrl.u32 %v2484, 16
      %v2685 = vrot.slane %v2683, 7
      %v2686 = vshll.u32 %v2484, 16
      %v2688 = vor.u32 %v2685, %v2686
      %v2689 = vsel %vm934, %v2681, %v2688
      %v2691 = vshrl.u32 %v2485, 16
      %v2693 = vrot.slane %v2691, 7
      %v2694 = vshll.u32 %v2485, 16
      %v2696 = vor.u32 %v2693, %v2694
      %v2697 = vrot.slane %v2693, 4
      %v2699 = vshrl.u32 %v2486, 16
      %v2701 = vrot.slane %v2699, 7
      %v2702 = vshll.u32 %v2486, 16
      %v2704 = vor.u32 %v2701, %v2702
      %v2705 = vsel %vm934, %v2697, %v2704
      %v2707 = vshrl.u32 %v2487, 16
      %v2709 = vrot.slane %v2707, 7
      %v2710 = vshll.u32 %v2487, 16
      %v2712 = vor.u32 %v2709, %v2710
      %v2713 = vrot.slane %v2709, 4
      %v2715 = vshrl.u32 %v2488, 16
      %v2717 = vrot.slane %v2715, 7
      %v2718 = vshll.u32 %v2488, 16
      %v2720 = vor.u32 %v2717, %v2718
      %v2721 = vsel %vm934, %v2713, %v2720
      %v2723 = vshrl.u32 %v2489, 16
      %v2725 = vrot.slane %v2723, 7
      %v2726 = vshll.u32 %v2489, 16
      %v2728 = vor.u32 %v2725, %v2726
      %v2729 = vrot.slane %v2725, 4
      %v2731 = vshrl.u32 %v2490, 16
      %v2733 = vrot.slane %v2731, 7
      %v2734 = vshll.u32 %v2490, 16
      %v2736 = vor.u32 %v2733, %v2734
      %v2737 = vsel %vm934, %v2729, %v2736
      %v2739 = vshrl.u32 %v2491, 16
      %v2741 = vrot.slane %v2739, 7
      %v2742 = vshll.u32 %v2491, 16
      %v2744 = vor.u32 %v2741, %v2742
      %v2745 = vrot.slane %v2741, 4
      %v2747 = vshrl.u32 %v2492, 16
      %v2749 = vrot.slane %v2747, 7
      %v2750 = vshll.u32 %v2492, 16
      %v2752 = vor.u32 %v2749, %v2750
      %v2753 = vsel %vm934, %v2745, %v2752
      %vm2774 = vcmask 60416
      %vm2775 = vmand %vm2774, %vm1044
      %v2776 = vld [vmem:[#allocation3] sm:$0xf]
      %v2777 = vsel %vm2775, %v2600, %v2776
      %2778 = vst [vmem:[#allocation3] sm:$0xf] %v2777
      %vm2779 = vcmask 60416
      %2780 = vst.msk [vmem:[#allocation3 + $0x4] sm:$0xf] %vm2779, %v2609
      %v2781 = vld [vmem:[#allocation3 + $0x8] sm:$0xf]
      %v2782 = vsel %vm2775, %v2616, %v2781
      %2783 = vst [vmem:[#allocation3 + $0x8] sm:$0xf] %v2782
      %2784 = vst.msk [vmem:[#allocation3 + $0xc] sm:$0xf] %vm2779, %v2625
      %v2785 = vld [vmem:[#allocation3 + $0x10] sm:$0xf]
      %v2786 = vsel %vm2775, %v2632, %v2785
      %2787 = vst [vmem:[#allocation3 + $0x10] sm:$0xf] %v2786
      %2788 = vst.msk [vmem:[#allocation3 + $0x14] sm:$0xf] %vm2779, %v2641
      %v2789 = vld [vmem:[#allocation3 + $0x18] sm:$0xf]
      %v2790 = vsel %vm2775, %v2648, %v2789
      %2791 = vst [vmem:[#allocation3 + $0x18] sm:$0xf] %v2790
      %2792 = vst.msk [vmem:[#allocation3 + $0x1c] sm:$0xf] %vm2779, %v2657
      %v2793 = vld [vmem:[#allocation3 + $0x20] sm:$0xf]
      %v2794 = vsel %vm2775, %v2664, %v2793
      %2795 = vst [vmem:[#allocation3 + $0x20] sm:$0xf] %v2794
      %2796 = vst.msk [vmem:[#allocation3 + $0x24] sm:$0xf] %vm2779, %v2673
      %v2797 = vld [vmem:[#allocation3 + $0x28] sm:$0xf]
      %v2798 = vsel %vm2775, %v2680, %v2797
      %2799 = vst [vmem:[#allocation3 + $0x28] sm:$0xf] %v2798
      %2800 = vst.msk [vmem:[#allocation3 + $0x2c] sm:$0xf] %vm2779, %v2689
      %v2801 = vld [vmem:[#allocation3 + $0x30] sm:$0xf]
      %v2802 = vsel %vm2775, %v2696, %v2801
      %2803 = vst [vmem:[#allocation3 + $0x30] sm:$0xf] %v2802
      %2804 = vst.msk [vmem:[#allocation3 + $0x34] sm:$0xf] %vm2779, %v2705
      %v2805 = vld [vmem:[#allocation3 + $0x38] sm:$0xf]
      %v2806 = vsel %vm2775, %v2712, %v2805
      %2807 = vst [vmem:[#allocation3 + $0x38] sm:$0xf] %v2806
      %2808 = vst.msk [vmem:[#allocation3 + $0x3c] sm:$0xf] %vm2779, %v2721
      %v2809 = vld [vmem:[#allocation3 + $0x40] sm:$0xf]
      %v2810 = vsel %vm2775, %v2728, %v2809
      %2811 = vst [vmem:[#allocation3 + $0x40] sm:$0xf] %v2810
      %2812 = vst.msk [vmem:[#allocation3 + $0x44] sm:$0xf] %vm2779, %v2737
      %v2813 = vld [vmem:[#allocation3 + $0x48] sm:$0xf]
      %v2814 = vsel %vm2775, %v2744, %v2813
      %2815 = vst [vmem:[#allocation3 + $0x48] sm:$0xf] %v2814
      %2816 = vst.msk [vmem:[#allocation3 + $0x4c] sm:$0xf] %vm2779, %v2753
      %v2817 = vrot.slane %v2595, 4
      %v2818 = vrot.slane %v2598, 5
      %v2819 = vor.u32 %v2817, %v2818
      %v2820 = vrot.slane %v2819, 4
      %v2821 = vrot.slane %v2606, 5
      %v2822 = vsel %vm1412, %v2820, %v2821
      %v2823 = vrot.slane %v2603, 4
      %v2824 = vor.u32 %v2823, %v2821
      %v2825 = vrot.slane %v2824, 4
      %v2826 = vrot.slane %v2611, 4
      %v2827 = vrot.slane %v2614, 5
      %v2828 = vor.u32 %v2826, %v2827
      %v2829 = vrot.slane %v2828, 4
      %v2830 = vrot.slane %v2622, 5
      %v2831 = vsel %vm1412, %v2829, %v2830
      %v2832 = vrot.slane %v2619, 4
      %v2833 = vor.u32 %v2832, %v2830
      %v2834 = vrot.slane %v2833, 4
      %v2835 = vrot.slane %v2627, 4
      %v2836 = vrot.slane %v2630, 5
      %v2837 = vor.u32 %v2835, %v2836
      %v2838 = vrot.slane %v2837, 4
      %v2839 = vrot.slane %v2638, 5
      %v2840 = vsel %vm1412, %v2838, %v2839
      %v2841 = vrot.slane %v2635, 4
      %v2842 = vor.u32 %v2841, %v2839
      %v2843 = vrot.slane %v2842, 4
      %v2844 = vrot.slane %v2643, 4
      %v2845 = vrot.slane %v2646, 5
      %v2846 = vor.u32 %v2844, %v2845
      %v2847 = vrot.slane %v2846, 4
      %v2848 = vrot.slane %v2654, 5
      %v2849 = vsel %vm1412, %v2847, %v2848
      %v2850 = vrot.slane %v2651, 4
      %v2851 = vor.u32 %v2850, %v2848
      %v2852 = vrot.slane %v2851, 4
      %v2853 = vrot.slane %v2659, 4
      %v2854 = vrot.slane %v2662, 5
      %v2855 = vor.u32 %v2853, %v2854
      %v2856 = vrot.slane %v2855, 4
      %v2857 = vrot.slane %v2670, 5
      %v2858 = vsel %vm1412, %v2856, %v2857
      %v2859 = vrot.slane %v2667, 4
      %v2860 = vor.u32 %v2859, %v2857
      %v2861 = vrot.slane %v2860, 4
      %v2862 = vrot.slane %v2675, 4
      %v2863 = vrot.slane %v2678, 5
      %v2864 = vor.u32 %v2862, %v2863
      %v2865 = vrot.slane %v2864, 4
      %v2866 = vrot.slane %v2686, 5
      %v2867 = vsel %vm1412, %v2865, %v2866
      %v2868 = vrot.slane %v2683, 4
      %v2869 = vor.u32 %v2868, %v2866
      %v2870 = vrot.slane %v2869, 4
      %v2871 = vrot.slane %v2691, 4
      %v2872 = vrot.slane %v2694, 5
      %v2873 = vor.u32 %v2871, %v2872
      %v2874 = vrot.slane %v2873, 4
      %v2875 = vrot.slane %v2702, 5
      %v2876 = vsel %vm1412, %v2874, %v2875
      %v2877 = vrot.slane %v2699, 4
      %v2878 = vor.u32 %v2877, %v2875
      %v2879 = vrot.slane %v2878, 4
      %v2880 = vrot.slane %v2707, 4
      %v2881 = vrot.slane %v2710, 5
      %v2882 = vor.u32 %v2880, %v2881
      %v2883 = vrot.slane %v2882, 4
      %v2884 = vrot.slane %v2718, 5
      %v2885 = vsel %vm1412, %v2883, %v2884
      %v2886 = vrot.slane %v2715, 4
      %v2887 = vor.u32 %v2886, %v2884
      %v2888 = vrot.slane %v2887, 4
      %v2889 = vrot.slane %v2723, 4
      %v2890 = vrot.slane %v2726, 5
      %v2891 = vor.u32 %v2889, %v2890
      %v2892 = vrot.slane %v2891, 4
      %v2893 = vrot.slane %v2734, 5
      %v2894 = vsel %vm1412, %v2892, %v2893
      %v2895 = vrot.slane %v2731, 4
      %v2896 = vor.u32 %v2895, %v2893
      %v2897 = vrot.slane %v2896, 4
      %v2898 = vrot.slane %v2739, 4
      %v2899 = vrot.slane %v2742, 5
      %v2900 = vor.u32 %v2898, %v2899
      %v2901 = vrot.slane %v2900, 4
      %v2902 = vrot.slane %v2750, 5
      %v2903 = vsel %vm1412, %v2901, %v2902
      %v2904 = vrot.slane %v2747, 4
      %v2905 = vor.u32 %v2904, %v2902
      %v2906 = vrot.slane %v2905, 4
      %2907 = vrot.lane.b32.xlu0 %v2822, 16
      %v2908 = vpop.permute.xlu0 %2907
      %2909 = vrot.lane.b32.xlu0 %v2825, 16
      %v2910 = vpop.permute.xlu0 %2909
      %2911 = vrot.lane.b32.xlu0 %v2831, 16
      %v2912 = vpop.permute.xlu0 %2911
      %2913 = vrot.lane.b32.xlu0 %v2834, 16
      %v2914 = vpop.permute.xlu0 %2913
      %2915 = vrot.lane.b32.xlu0 %v2840, 16
      %v2916 = vpop.permute.xlu0 %2915
      %2917 = vrot.lane.b32.xlu0 %v2843, 16
      %v2918 = vpop.permute.xlu0 %2917
      %2919 = vrot.lane.b32.xlu0 %v2849, 16
      %v2920 = vpop.permute.xlu0 %2919
      %2921 = vrot.lane.b32.xlu0 %v2852, 16
      %v2922 = vpop.permute.xlu0 %2921
      %2923 = vrot.lane.b32.xlu0 %v2858, 16
      %v2924 = vpop.permute.xlu0 %2923
      %2925 = vrot.lane.b32.xlu0 %v2861, 16
      %v2926 = vpop.permute.xlu0 %2925
      %2927 = vrot.lane.b32.xlu0 %v2867, 16
      %v2928 = vpop.permute.xlu0 %2927
      %2929 = vrot.lane.b32.xlu0 %v2870, 16
      %v2930 = vpop.permute.xlu0 %2929
      %2931 = vrot.lane.b32.xlu0 %v2876, 16
      %v2932 = vpop.permute.xlu0 %2931
      %2933 = vrot.lane.b32.xlu0 %v2879, 16
      %v2934 = vpop.permute.xlu0 %2933
      %2935 = vrot.lane.b32.xlu0 %v2885, 16
      %v2936 = vpop.permute.xlu0 %2935
      %2937 = vrot.lane.b32.xlu0 %v2888, 16
      %v2938 = vpop.permute.xlu0 %2937
      %2939 = vrot.lane.b32.xlu0 %v2894, 16
      %v2940 = vpop.permute.xlu0 %2939
      %2941 = vrot.lane.b32.xlu0 %v2897, 16
      %v2942 = vpop.permute.xlu0 %2941
      %2943 = vrot.lane.b32.xlu0 %v2903, 16
      %v2944 = vpop.permute.xlu0 %2943
      %2945 = vrot.lane.b32.xlu0 %v2906, 16
      %v2946 = vpop.permute.xlu0 %2945
      %vm2967 = vcmask 191616
      %2968 = vst.msk [vmem:[#allocation3] sm:$0xf] %vm2967, %v2908
      %vm2969 = vcmask 191616
      %vm2970 = vmand %vm2969, %vm1410
      %v2971 = vld [vmem:[#allocation3 + $0x4] sm:$0xf]
      %v2972 = vsel %vm2970, %v2910, %v2971
      %2973 = vst [vmem:[#allocation3 + $0x4] sm:$0xf] %v2972
      %2974 = vst.msk [vmem:[#allocation3 + $0x8] sm:$0xf] %vm2967, %v2912
      %v2975 = vld [vmem:[#allocation3 + $0xc] sm:$0xf]
      %v2976 = vsel %vm2970, %v2914, %v2975
      %2977 = vst [vmem:[#allocation3 + $0xc] sm:$0xf] %v2976
      %2978 = vst.msk [vmem:[#allocation3 + $0x10] sm:$0xf] %vm2967, %v2916
      %v2979 = vld [vmem:[#allocation3 + $0x14] sm:$0xf]
      %v2980 = vsel %vm2970, %v2918, %v2979
      %2981 = vst [vmem:[#allocation3 + $0x14] sm:$0xf] %v2980
      %2982 = vst.msk [vmem:[#allocation3 + $0x18] sm:$0xf] %vm2967, %v2920
      %v2983 = vld [vmem:[#allocation3 + $0x1c] sm:$0xf]
      %v2984 = vsel %vm2970, %v2922, %v2983
      %2985 = vst [vmem:[#allocation3 + $0x1c] sm:$0xf] %v2984
      %2986 = vst.msk [vmem:[#allocation3 + $0x20] sm:$0xf] %vm2967, %v2924
      %v2987 = vld [vmem:[#allocation3 + $0x24] sm:$0xf]
      %v2988 = vsel %vm2970, %v2926, %v2987
      %2989 = vst [vmem:[#allocation3 + $0x24] sm:$0xf] %v2988
      %2990 = vst.msk [vmem:[#allocation3 + $0x28] sm:$0xf] %vm2967, %v2928
      %v2991 = vld [vmem:[#allocation3 + $0x2c] sm:$0xf]
      %v2992 = vsel %vm2970, %v2930, %v2991
      %2993 = vst [vmem:[#allocation3 + $0x2c] sm:$0xf] %v2992
      %2994 = vst.msk [vmem:[#allocation3 + $0x30] sm:$0xf] %vm2967, %v2932
      %v2995 = vld [vmem:[#allocation3 + $0x34] sm:$0xf]
      %v2996 = vsel %vm2970, %v2934, %v2995
      %2997 = vst [vmem:[#allocation3 + $0x34] sm:$0xf] %v2996
      %2998 = vst.msk [vmem:[#allocation3 + $0x38] sm:$0xf] %vm2967, %v2936
      %v2999 = vld [vmem:[#allocation3 + $0x3c] sm:$0xf]
      %v3000 = vsel %vm2970, %v2938, %v2999
      %3001 = vst [vmem:[#allocation3 + $0x3c] sm:$0xf] %v3000
      %3002 = vst.msk [vmem:[#allocation3 + $0x40] sm:$0xf] %vm2967, %v2940
      %v3003 = vld [vmem:[#allocation3 + $0x44] sm:$0xf]
      %v3004 = vsel %vm2970, %v2942, %v3003
      %3005 = vst [vmem:[#allocation3 + $0x44] sm:$0xf] %v3004
      %3006 = vst.msk [vmem:[#allocation3 + $0x48] sm:$0xf] %vm2967, %v2944
      %v3007 = vld [vmem:[#allocation3 + $0x4c] sm:$0xf]
      %v3008 = vsel %vm2970, %v2946, %v3007
      %3009 = vst [vmem:[#allocation3 + $0x4c] sm:$0xf] %v3008
      %v3010 = vld [vmem:[#allocation3] sm:$0x1]
      %v3011 = vsel %vm1786, 0, %v3010
      %3012 = vst [vmem:[#allocation3] sm:$0x1] %v3011
      %v3013 = vld [vmem:[#allocation3 + $0x8] sm:$0x1]
      %v3014 = vsel %vm1786, 0, %v3013
      %3015 = vst [vmem:[#allocation3 + $0x8] sm:$0x1] %v3014
      %v3016 = vld [vmem:[#allocation3 + $0x10] sm:$0x1]
      %v3017 = vsel %vm1786, 0, %v3016
      %3018 = vst [vmem:[#allocation3 + $0x10] sm:$0x1] %v3017
      %v3019 = vld [vmem:[#allocation3 + $0x18] sm:$0x1]
      %v3020 = vsel %vm1786, 0, %v3019
      %3021 = vst [vmem:[#allocation3 + $0x18] sm:$0x1] %v3020
      %v3022 = vld [vmem:[#allocation3 + $0x20] sm:$0x1]
      %v3023 = vsel %vm1786, 0, %v3022
      %3024 = vst [vmem:[#allocation3 + $0x20] sm:$0x1] %v3023
      %v3025 = vld [vmem:[#allocation3 + $0x28] sm:$0x1]
      %v3026 = vsel %vm1786, 0, %v3025
      %3027 = vst [vmem:[#allocation3 + $0x28] sm:$0x1] %v3026
      %v3028 = vld [vmem:[#allocation3 + $0x30] sm:$0x1]
      %v3029 = vsel %vm1786, 0, %v3028
      %3030 = vst [vmem:[#allocation3 + $0x30] sm:$0x1] %v3029
      %v3031 = vld [vmem:[#allocation3 + $0x38] sm:$0x1]
      %v3032 = vsel %vm1786, 0, %v3031
      %3033 = vst [vmem:[#allocation3 + $0x38] sm:$0x1] %v3032
      %v3034 = vld [vmem:[#allocation3 + $0x40] sm:$0x1]
      %v3035 = vsel %vm1786, 0, %v3034
      %3036 = vst [vmem:[#allocation3 + $0x40] sm:$0x1] %v3035
      %v3037 = vld [vmem:[#allocation3 + $0x48] sm:$0x1]
      %v3038 = vsel %vm1786, 0, %v3037
      %3039 = vst [vmem:[#allocation3 + $0x48] sm:$0x1] %v3038
      %v3040 = vld [vmem:[#allocation3 + $0x4] sm:$0x8]
      %v3041 = vsel %vm1825, 0, %v3040
      %3042 = vst [vmem:[#allocation3 + $0x4] sm:$0x8] %v3041
      %v3043 = vld [vmem:[#allocation3 + $0xc] sm:$0x8]
      %v3044 = vsel %vm1825, 0, %v3043
      %3045 = vst [vmem:[#allocation3 + $0xc] sm:$0x8] %v3044
      %v3046 = vld [vmem:[#allocation3 + $0x14] sm:$0x8]
      %v3047 = vsel %vm1825, 0, %v3046
      %3048 = vst [vmem:[#allocation3 + $0x14] sm:$0x8] %v3047
      %v3049 = vld [vmem:[#allocation3 + $0x1c] sm:$0x8]
      %v3050 = vsel %vm1825, 0, %v3049
      %3051 = vst [vmem:[#allocation3 + $0x1c] sm:$0x8] %v3050
      %v3052 = vld [vmem:[#allocation3 + $0x24] sm:$0x8]
      %v3053 = vsel %vm1825, 0, %v3052
      %3054 = vst [vmem:[#allocation3 + $0x24] sm:$0x8] %v3053
      %v3055 = vld [vmem:[#allocation3 + $0x2c] sm:$0x8]
      %v3056 = vsel %vm1825, 0, %v3055
      %3057 = vst [vmem:[#allocation3 + $0x2c] sm:$0x8] %v3056
      %v3058 = vld [vmem:[#allocation3 + $0x34] sm:$0x8]
      %v3059 = vsel %vm1825, 0, %v3058
      %3060 = vst [vmem:[#allocation3 + $0x34] sm:$0x8] %v3059
      %v3061 = vld [vmem:[#allocation3 + $0x3c] sm:$0x8]
      %v3062 = vsel %vm1825, 0, %v3061
      %3063 = vst [vmem:[#allocation3 + $0x3c] sm:$0x8] %v3062
      %v3064 = vld [vmem:[#allocation3 + $0x44] sm:$0x8]
      %v3065 = vsel %vm1825, 0, %v3064
      %3066 = vst [vmem:[#allocation3 + $0x44] sm:$0x8] %v3065
      %v3067 = vld [vmem:[#allocation3 + $0x4c] sm:$0x8]
      %v3068 = vsel %vm1825, 0, %v3067
      %3069 = vst [vmem:[#allocation3 + $0x4c] sm:$0x8] %v3068
      // Predicated region
      $region69: #{decoder_block_forward.1} parent=59 // pred_check
        %p3070 = pneg %p1862
      $region70: #{decoder_block_forward.1} parent=59 // pred_check_branch
        %3072 = sbr.rel (%p3070) target = $region72
      $region71: #{decoder_block_forward.1} parent=59 // pred_region
        %vm3073 = vcmask 191488
        %3074 = vst.msk [vmem:[#allocation3] sm:$0xf] %vm3073, 0
        %3075 = vst.msk [vmem:[#allocation3 + $0x4] sm:$0xf] %vm3073, 0
      $region72: #{decoder_block_forward.1} parent=59 // pred_fallthru
        _
      // Predicated region
      $region73: #{decoder_block_forward.1} parent=59 // pred_check
        %p3076 = pneg %p1871
      $region74: #{decoder_block_forward.1} parent=59 // pred_check_branch
        %3078 = sbr.rel (%p3076) target = $region76
      $region75: #{decoder_block_forward.1} parent=59 // pred_region
        %s3079 = scalar_lea.vmem [#allocation3], 72
        %vm3080 = vcmask 191488
        %3081 = vst.msk [vmem:[%s3079] sm:$0xf] %vm3080, 0
        %3082 = vst.msk [vmem:[%s3079 + $0x4] sm:$0xf] %vm3080, 0
      $region76: #{decoder_block_forward.1} parent=59 // pred_fallthru
        _
      %v3083 = vld [vmem:[#allocation3] sm:$0xf]
      %v3084 = vld [vmem:[#allocation3 + $0x4] sm:$0xf]
      %v3085 = vld [vmem:[#allocation3 + $0x8] sm:$0xf]
      %v3086 = vld [vmem:[#allocation3 + $0xc] sm:$0xf]
      %v3087 = vld [vmem:[#allocation3 + $0x10] sm:$0xf]
      %v3088 = vld [vmem:[#allocation3 + $0x14] sm:$0xf]
      %v3089 = vld [vmem:[#allocation3 + $0x18] sm:$0xf]
      %v3090 = vld [vmem:[#allocation3 + $0x1c] sm:$0xf]
      %v3091 = vld [vmem:[#allocation3 + $0x20] sm:$0xf]
      %v3092 = vld [vmem:[#allocation3 + $0x24] sm:$0xf]
      %v3093 = vld [vmem:[#allocation3 + $0x28] sm:$0xf]
      %v3094 = vld [vmem:[#allocation3 + $0x2c] sm:$0xf]
      %v3095 = vld [vmem:[#allocation3 + $0x30] sm:$0xf]
      %v3096 = vld [vmem:[#allocation3 + $0x34] sm:$0xf]
      %v3097 = vld [vmem:[#allocation3 + $0x38] sm:$0xf]
      %v3098 = vld [vmem:[#allocation3 + $0x3c] sm:$0xf]
      %v3099 = vld [vmem:[%s8] sm:$0xf]
      %v3100 = vld [vmem:[%s8 + $0x4] sm:$0xf]
      %v3101 = vld [vmem:[%s8 + $0x8] sm:$0xf]
      %s3102 = scalar_lea.vmem [#allocation3], 8
      %v3103 = vld [vmem:[%s3102] sm:$0xf]
      %v3104 = vld [vmem:[%s3102 + $0x4] sm:$0xf]
      %v3105 = vld [vmem:[%s3102 + $0x8] sm:$0xf]
      %v3106 = vld [vmem:[%s3102 + $0xc] sm:$0xf]
      %v3107 = vld [vmem:[%s3102 + $0x10] sm:$0xf]
      %v3108 = vld [vmem:[%s3102 + $0x14] sm:$0xf]
      %v3109 = vld [vmem:[%s3102 + $0x18] sm:$0xf]
      %v3110 = vld [vmem:[%s3102 + $0x1c] sm:$0xf]
      %v3111 = vld [vmem:[%s3102 + $0x20] sm:$0xf]
      %v3112 = vld [vmem:[%s3102 + $0x24] sm:$0xf]
      %v3113 = vld [vmem:[%s3102 + $0x28] sm:$0xf]
      %v3114 = vld [vmem:[%s3102 + $0x2c] sm:$0xf]
      %v3115 = vld [vmem:[%s3102 + $0x30] sm:$0xf]
      %v3116 = vld [vmem:[%s3102 + $0x34] sm:$0xf]
      %v3117 = vld [vmem:[%s3102 + $0x38] sm:$0xf]
      %v3118 = vld [vmem:[%s3102 + $0x3c] sm:$0xf]
      %s3119 = scalar_lea.vmem %s8, 12
      %v3120 = vld [vmem:[%s3119] sm:$0xf]
      %v3121 = vld [vmem:[%s3119 + $0x4] sm:$0xf]
      %v3122 = vld [vmem:[%s3119 + $0x8] sm:$0xf]
      %v3139 = vunpack.c.l.b16 %v3103
      %v3140 = vunpack.c.l.b16 %v3104
      %v3141 = vunpack.c.l.b16 %v3105
      %v3142 = vunpack.c.l.b16 %v3106
      %v3143 = vunpack.c.l.b16 %v3107
      %v3144 = vunpack.c.l.b16 %v3108
      %v3145 = vunpack.c.l.b16 %v3109
      %v3146 = vunpack.c.l.b16 %v3110
      %v3147 = vunpack.c.l.b16 %v3111
      %v3148 = vunpack.c.l.b16 %v3112
      %v3149 = vunpack.c.l.b16 %v3113
      %v3150 = vunpack.c.l.b16 %v3114
      %v3151 = vunpack.c.l.b16 %v3115
      %v3152 = vunpack.c.l.b16 %v3116
      %v3153 = vunpack.c.l.b16 %v3117
      %v3154 = vunpack.c.l.b16 %v3118
      %v3155 = vpack.c.b16 %v3140, %v3139
      %v3156 = vpack.c.b16 %v3142, %v3141
      %v3157 = vpack.c.b16 %v3144, %v3143
      %v3158 = vpack.c.b16 %v3146, %v3145
      %v3159 = vpack.c.b16 %v3148, %v3147
      %v3160 = vpack.c.b16 %v3150, %v3149
      %v3161 = vpack.c.b16 %v3152, %v3151
      %v3162 = vpack.c.b16 %v3154, %v3153
      %v3166 = vunpack.c.l.b16 %v3120
      %v3167 = vunpack.c.l.b16 %v3121
      %v3168 = vunpack.c.l.b16 %v3122
      %v3169 = vpack.c.b16 %v3167, %v3166
      %v3170 = vpack.c.b16 %v3168, %v3168
      %v3173 = vsel %vm1988, %v3155, 0
      %v3176 = vsel %vm1988, %v3156, 0
      %v3179 = vsel %vm1988, %v3157, 0
      %v3182 = vsel %vm1988, %v3158, 0
      %v3185 = vsel %vm1988, %v3159, 0
      %v3188 = vsel %vm1988, %v3160, 0
      %v3191 = vsel %vm1988, %v3161, 0
      %v3194 = vsel %vm1988, %v3162, 0
      %v3197 = vsel %vm2019, %v3170, 0
      %3199 = vmatpush.bf16.msra.mxu0 0
      %3200 = vmatpush.bf16.msra.mxu0 0
      %3201 = vmatpush.bf16.msra.mxu0 0
      %3202 = vmatpush.bf16.msra.mxu0 0
      %3203 = vmatpush.bf16.msra.mxu0 0
      %3204 = vmatpush.bf16.msra.mxu0 0
      %3205 = vmatpush.bf16.msra.mxu0 %v3197
      %3206 = vmatpush.bf16.msra.mxu0 %v3169
      %3207 = vmatmul.bf16.gmra.mxu0 %v3173
      %v3208 = vpop.f32.mrf.mxu0
      %v3209 = vadd.f32 0.0, %v3208
      %v3210 = vpop.f32.mrf.mxu0
      %v3211 = vadd.f32 0.0, %v3210
      %3212 = vmatmul.bf16.gmra.mxu0 %v3176
      %v3213 = vpop.f32.mrf.mxu0
      %v3214 = vadd.f32 0.0, %v3213
      %v3215 = vpop.f32.mrf.mxu0
      %v3216 = vadd.f32 0.0, %v3215
      %3217 = vmatmul.bf16.gmra.mxu0 %v3179
      %v3218 = vpop.f32.mrf.mxu0
      %v3219 = vadd.f32 0.0, %v3218
      %v3220 = vpop.f32.mrf.mxu0
      %v3221 = vadd.f32 0.0, %v3220
      %3222 = vmatmul.bf16.gmra.mxu0 %v3182
      %v3223 = vpop.f32.mrf.mxu0
      %v3224 = vadd.f32 0.0, %v3223
      %v3225 = vpop.f32.mrf.mxu0
      %v3226 = vadd.f32 0.0, %v3225
      %3227 = vmatmul.bf16.gmra.mxu0 %v3185
      %v3228 = vpop.f32.mrf.mxu0
      %v3229 = vadd.f32 0.0, %v3228
      %v3230 = vpop.f32.mrf.mxu0
      %v3231 = vadd.f32 0.0, %v3230
      %3232 = vmatmul.bf16.gmra.mxu0 %v3188
      %v3233 = vpop.f32.mrf.mxu0
      %v3234 = vadd.f32 0.0, %v3233
      %v3235 = vpop.f32.mrf.mxu0
      %v3236 = vadd.f32 0.0, %v3235
      %3237 = vmatmul.bf16.gmra.mxu0 %v3191
      %v3238 = vpop.f32.mrf.mxu0
      %v3239 = vadd.f32 0.0, %v3238
      %v3240 = vpop.f32.mrf.mxu0
      %v3241 = vadd.f32 0.0, %v3240
      %3242 = vmatmul.bf16.gmra.mxu0 %v3194
      %v3243 = vpop.f32.mrf.mxu0
      %v3244 = vadd.f32 0.0, %v3243
      %v3245 = vpop.f32.mrf.mxu0
      %v3246 = vadd.f32 0.0, %v3245
      %3247 = vdwg.mxu0
      %v3264 = vunpack.c.l.b16 %v3083
      %v3265 = vunpack.c.l.b16 %v3084
      %v3266 = vunpack.c.l.b16 %v3085
      %v3267 = vunpack.c.l.b16 %v3086
      %v3268 = vunpack.c.l.b16 %v3087
      %v3269 = vunpack.c.l.b16 %v3088
      %v3270 = vunpack.c.l.b16 %v3089
      %v3271 = vunpack.c.l.b16 %v3090
      %v3272 = vunpack.c.l.b16 %v3091
      %v3273 = vunpack.c.l.b16 %v3092
      %v3274 = vunpack.c.l.b16 %v3093
      %v3275 = vunpack.c.l.b16 %v3094
      %v3276 = vunpack.c.l.b16 %v3095
      %v3277 = vunpack.c.l.b16 %v3096
      %v3278 = vunpack.c.l.b16 %v3097
      %v3279 = vunpack.c.l.b16 %v3098
      %v3280 = vpack.c.b16 %v3265, %v3264
      %v3281 = vpack.c.b16 %v3267, %v3266
      %v3282 = vpack.c.b16 %v3269, %v3268
      %v3283 = vpack.c.b16 %v3271, %v3270
      %v3284 = vpack.c.b16 %v3273, %v3272
      %v3285 = vpack.c.b16 %v3275, %v3274
      %v3286 = vpack.c.b16 %v3277, %v3276
      %v3287 = vpack.c.b16 %v3279, %v3278
      %v3291 = vunpack.c.l.b16 %v3099
      %v3292 = vunpack.c.l.b16 %v3100
      %v3293 = vunpack.c.l.b16 %v3101
      %v3294 = vpack.c.b16 %v3292, %v3291
      %v3295 = vpack.c.b16 %v3293, %v3293
      %v3298 = vsel %vm1988, %v3280, 0
      %v3301 = vsel %vm1988, %v3281, 0
      %v3304 = vsel %vm1988, %v3282, 0
      %v3307 = vsel %vm1988, %v3283, 0
      %v3310 = vsel %vm1988, %v3284, 0
      %v3313 = vsel %vm1988, %v3285, 0
      %v3316 = vsel %vm1988, %v3286, 0
      %v3319 = vsel %vm1988, %v3287, 0
      %v3322 = vsel %vm2019, %v3295, 0
      %3324 = vmatpush.bf16.msra.mxu0 0
      %3325 = vmatpush.bf16.msra.mxu0 0
      %3326 = vmatpush.bf16.msra.mxu0 0
      %3327 = vmatpush.bf16.msra.mxu0 0
      %3328 = vmatpush.bf16.msra.mxu0 0
      %3329 = vmatpush.bf16.msra.mxu0 0
      %3330 = vmatpush.bf16.msra.mxu0 %v3322
      %3331 = vmatpush.bf16.msra.mxu0 %v3294
      %3332 = vmatmul.bf16.gmra.mxu0 %v3298
      %v3333 = vpop.f32.mrf.mxu0
      %v3334 = vadd.f32 %v3209, %v3333
      %v3335 = vpop.f32.mrf.mxu0
      %v3336 = vadd.f32 %v3211, %v3335
      %3337 = vmatmul.bf16.gmra.mxu0 %v3301
      %v3338 = vpop.f32.mrf.mxu0
      %v3339 = vadd.f32 %v3214, %v3338
      %v3340 = vpop.f32.mrf.mxu0
      %v3341 = vadd.f32 %v3216, %v3340
      %3342 = vmatmul.bf16.gmra.mxu0 %v3304
      %v3343 = vpop.f32.mrf.mxu0
      %v3344 = vadd.f32 %v3219, %v3343
      %v3345 = vpop.f32.mrf.mxu0
      %v3346 = vadd.f32 %v3221, %v3345
      %3347 = vmatmul.bf16.gmra.mxu0 %v3307
      %v3348 = vpop.f32.mrf.mxu0
      %v3349 = vadd.f32 %v3224, %v3348
      %v3350 = vpop.f32.mrf.mxu0
      %v3351 = vadd.f32 %v3226, %v3350
      %3352 = vmatmul.bf16.gmra.mxu0 %v3310
      %v3353 = vpop.f32.mrf.mxu0
      %v3354 = vadd.f32 %v3229, %v3353
      %v3355 = vpop.f32.mrf.mxu0
      %v3356 = vadd.f32 %v3231, %v3355
      %3357 = vmatmul.bf16.gmra.mxu0 %v3313
      %v3358 = vpop.f32.mrf.mxu0
      %v3359 = vadd.f32 %v3234, %v3358
      %v3360 = vpop.f32.mrf.mxu0
      %v3361 = vadd.f32 %v3236, %v3360
      %3362 = vmatmul.bf16.gmra.mxu0 %v3316
      %v3363 = vpop.f32.mrf.mxu0
      %v3364 = vadd.f32 %v3239, %v3363
      %v3365 = vpop.f32.mrf.mxu0
      %v3366 = vadd.f32 %v3241, %v3365
      %3367 = vmatmul.bf16.gmra.mxu0 %v3319
      %v3368 = vpop.f32.mrf.mxu0
      %v3369 = vadd.f32 %v3244, %v3368
      %v3370 = vpop.f32.mrf.mxu0
      %v3371 = vadd.f32 %v3246, %v3370
      %3372 = vdwg.mxu0
      %s3373 = scalar_lea.vmem [#allocation3], 16
      %v3374 = vld [vmem:[%s3373] sm:$0xf]
      %v3375 = vld [vmem:[%s3373 + $0x4] sm:$0xf]
      %v3376 = vld [vmem:[%s3373 + $0x8] sm:$0xf]
      %v3377 = vld [vmem:[%s3373 + $0xc] sm:$0xf]
      %v3378 = vld [vmem:[%s3373 + $0x10] sm:$0xf]
      %v3379 = vld [vmem:[%s3373 + $0x14] sm:$0xf]
      %v3380 = vld [vmem:[%s3373 + $0x18] sm:$0xf]
      %v3381 = vld [vmem:[%s3373 + $0x1c] sm:$0xf]
      %v3382 = vld [vmem:[%s3373 + $0x20] sm:$0xf]
      %v3383 = vld [vmem:[%s3373 + $0x24] sm:$0xf]
      %v3384 = vld [vmem:[%s3373 + $0x28] sm:$0xf]
      %v3385 = vld [vmem:[%s3373 + $0x2c] sm:$0xf]
      %v3386 = vld [vmem:[%s3373 + $0x30] sm:$0xf]
      %v3387 = vld [vmem:[%s3373 + $0x34] sm:$0xf]
      %v3388 = vld [vmem:[%s3373 + $0x38] sm:$0xf]
      %v3389 = vld [vmem:[%s3373 + $0x3c] sm:$0xf]
      %s3390 = scalar_lea.vmem %s8, 24
      %v3391 = vld [vmem:[%s3390] sm:$0xf]
      %v3392 = vld [vmem:[%s3390 + $0x4] sm:$0xf]
      %v3393 = vld [vmem:[%s3390 + $0x8] sm:$0xf]
      %v3410 = vunpack.c.l.b16 %v3374
      %v3411 = vunpack.c.l.b16 %v3375
      %v3412 = vunpack.c.l.b16 %v3376
      %v3413 = vunpack.c.l.b16 %v3377
      %v3414 = vunpack.c.l.b16 %v3378
      %v3415 = vunpack.c.l.b16 %v3379
      %v3416 = vunpack.c.l.b16 %v3380
      %v3417 = vunpack.c.l.b16 %v3381
      %v3418 = vunpack.c.l.b16 %v3382
      %v3419 = vunpack.c.l.b16 %v3383
      %v3420 = vunpack.c.l.b16 %v3384
      %v3421 = vunpack.c.l.b16 %v3385
      %v3422 = vunpack.c.l.b16 %v3386
      %v3423 = vunpack.c.l.b16 %v3387
      %v3424 = vunpack.c.l.b16 %v3388
      %v3425 = vunpack.c.l.b16 %v3389
      %v3426 = vpack.c.b16 %v3411, %v3410
      %v3427 = vpack.c.b16 %v3413, %v3412
      %v3428 = vpack.c.b16 %v3415, %v3414
      %v3429 = vpack.c.b16 %v3417, %v3416
      %v3430 = vpack.c.b16 %v3419, %v3418
      %v3431 = vpack.c.b16 %v3421, %v3420
      %v3432 = vpack.c.b16 %v3423, %v3422
      %v3433 = vpack.c.b16 %v3425, %v3424
      %v3437 = vunpack.c.l.b16 %v3391
      %v3438 = vunpack.c.l.b16 %v3392
      %v3439 = vunpack.c.l.b16 %v3393
      %v3440 = vpack.c.b16 %v3438, %v3437
      %v3441 = vpack.c.b16 %v3439, %v3439
      %v3444 = vsel %vm1988, %v3426, 0
      %v3447 = vsel %vm1988, %v3427, 0
      %v3450 = vsel %vm1988, %v3428, 0
      %v3453 = vsel %vm1988, %v3429, 0
      %v3456 = vsel %vm1988, %v3430, 0
      %v3459 = vsel %vm1988, %v3431, 0
      %v3462 = vsel %vm1988, %v3432, 0
      %v3465 = vsel %vm1988, %v3433, 0
      %v3468 = vsel %vm2019, %v3441, 0
      %3470 = vmatpush.bf16.msra.mxu0 0
      %3471 = vmatpush.bf16.msra.mxu0 0
      %3472 = vmatpush.bf16.msra.mxu0 0
      %3473 = vmatpush.bf16.msra.mxu0 0
      %3474 = vmatpush.bf16.msra.mxu0 0
      %3475 = vmatpush.bf16.msra.mxu0 0
      %3476 = vmatpush.bf16.msra.mxu0 %v3468
      %3477 = vmatpush.bf16.msra.mxu0 %v3440
      %3478 = vmatmul.bf16.gmra.mxu0 %v3444
      %v3479 = vpop.f32.mrf.mxu0
      %v3480 = vadd.f32 0.0, %v3479
      %v3481 = vpop.f32.mrf.mxu0
      %v3482 = vadd.f32 0.0, %v3481
      %3483 = vmatmul.bf16.gmra.mxu0 %v3447
      %v3484 = vpop.f32.mrf.mxu0
      %v3485 = vadd.f32 0.0, %v3484
      %v3486 = vpop.f32.mrf.mxu0
      %v3487 = vadd.f32 0.0, %v3486
      %3488 = vmatmul.bf16.gmra.mxu0 %v3450
      %v3489 = vpop.f32.mrf.mxu0
      %v3490 = vadd.f32 0.0, %v3489
      %v3491 = vpop.f32.mrf.mxu0
      %v3492 = vadd.f32 0.0, %v3491
      %3493 = vmatmul.bf16.gmra.mxu0 %v3453
      %v3494 = vpop.f32.mrf.mxu0
      %v3495 = vadd.f32 0.0, %v3494
      %v3496 = vpop.f32.mrf.mxu0
      %v3497 = vadd.f32 0.0, %v3496
      %3498 = vmatmul.bf16.gmra.mxu0 %v3456
      %v3499 = vpop.f32.mrf.mxu0
      %v3500 = vadd.f32 0.0, %v3499
      %v3501 = vpop.f32.mrf.mxu0
      %v3502 = vadd.f32 0.0, %v3501
      %3503 = vmatmul.bf16.gmra.mxu0 %v3459
      %v3504 = vpop.f32.mrf.mxu0
      %v3505 = vadd.f32 0.0, %v3504
      %v3506 = vpop.f32.mrf.mxu0
      %v3507 = vadd.f32 0.0, %v3506
      %3508 = vmatmul.bf16.gmra.mxu0 %v3462
      %v3509 = vpop.f32.mrf.mxu0
      %v3510 = vadd.f32 0.0, %v3509
      %v3511 = vpop.f32.mrf.mxu0
      %v3512 = vadd.f32 0.0, %v3511
      %3513 = vmatmul.bf16.gmra.mxu0 %v3465
      %v3514 = vpop.f32.mrf.mxu0
      %v3515 = vadd.f32 0.0, %v3514
      %v3516 = vpop.f32.mrf.mxu0
      %v3517 = vadd.f32 0.0, %v3516
      %3518 = vdwg.mxu0
      %v3519 = vadd.f32 %v3334, %v3480
      %v3520 = vadd.f32 %v3336, %v3482
      %v3521 = vadd.f32 %v3339, %v3485
      %v3522 = vadd.f32 %v3341, %v3487
      %v3523 = vadd.f32 %v3344, %v3490
      %v3524 = vadd.f32 %v3346, %v3492
      %v3525 = vadd.f32 %v3349, %v3495
      %v3526 = vadd.f32 %v3351, %v3497
      %v3527 = vadd.f32 %v3354, %v3500
      %v3528 = vadd.f32 %v3356, %v3502
      %v3529 = vadd.f32 %v3359, %v3505
      %v3530 = vadd.f32 %v3361, %v3507
      %v3531 = vadd.f32 %v3364, %v3510
      %v3532 = vadd.f32 %v3366, %v3512
      %v3533 = vadd.f32 %v3369, %v3515
      %v3534 = vadd.f32 %v3371, %v3517
      %v3535 = vld [vmem:[%s9] sm:$0x1]
      %v3537 = vperm.slane %v3535, 0
      %v3539 = vadd.f32 %v3519, %v3537
      %v3540 = vadd.f32 %v3520, %v3537
      %v3541 = vadd.f32 %v3521, %v3537
      %v3542 = vadd.f32 %v3522, %v3537
      %v3543 = vadd.f32 %v3523, %v3537
      %v3544 = vadd.f32 %v3524, %v3537
      %v3545 = vadd.f32 %v3525, %v3537
      %v3546 = vadd.f32 %v3526, %v3537
      %v3547 = vadd.f32 %v3527, %v3537
      %v3548 = vadd.f32 %v3528, %v3537
      %v3549 = vadd.f32 %v3529, %v3537
      %v3550 = vadd.f32 %v3530, %v3537
      %v3551 = vadd.f32 %v3531, %v3537
      %v3552 = vadd.f32 %v3532, %v3537
      %v3553 = vadd.f32 %v3533, %v3537
      %v3554 = vadd.f32 %v3534, %v3537
      %v3555 = vmax.f32 %v3539, 0.0
      %v3556 = vmax.f32 %v3540, 0.0
      %v3557 = vmax.f32 %v3541, 0.0
      %v3558 = vmax.f32 %v3542, 0.0
      %v3559 = vmax.f32 %v3543, 0.0
      %v3560 = vmax.f32 %v3544, 0.0
      %v3561 = vmax.f32 %v3545, 0.0
      %v3562 = vmax.f32 %v3546, 0.0
      %v3563 = vmax.f32 %v3547, 0.0
      %v3564 = vmax.f32 %v3548, 0.0
      %v3565 = vmax.f32 %v3549, 0.0
      %v3566 = vmax.f32 %v3550, 0.0
      %v3567 = vmax.f32 %v3551, 0.0
      %v3568 = vmax.f32 %v3552, 0.0
      %v3569 = vmax.f32 %v3553, 0.0
      %v3570 = vmax.f32 %v3554, 0.0
      %vm3571 = vcmask 64512
      %3572 = vst.msk [vmem:[%s699] sm:$0xff] %vm3571, %v3555
      %3573 = vst.msk [vmem:[%s699 + $0x8] sm:$0xff] %vm3571, %v3556
      %3574 = vst.msk [vmem:[%s699 + $0x10] sm:$0xff] %vm3571, %v3557
      %3575 = vst.msk [vmem:[%s699 + $0x18] sm:$0xff] %vm3571, %v3558
      %3576 = vst.msk [vmem:[%s699 + $0x20] sm:$0xff] %vm3571, %v3559
      %3577 = vst.msk [vmem:[%s699 + $0x28] sm:$0xff] %vm3571, %v3560
      %3578 = vst.msk [vmem:[%s699 + $0x30] sm:$0xff] %vm3571, %v3561
      %3579 = vst.msk [vmem:[%s699 + $0x38] sm:$0xff] %vm3571, %v3562
      %3580 = vst.msk [vmem:[%s699 + $0x40] sm:$0xff] %vm3571, %v3563
      %3581 = vst.msk [vmem:[%s699 + $0x48] sm:$0xff] %vm3571, %v3564
      %3582 = vst.msk [vmem:[%s699 + $0x50] sm:$0xff] %vm3571, %v3565
      %3583 = vst.msk [vmem:[%s699 + $0x58] sm:$0xff] %vm3571, %v3566
      %3584 = vst.msk [vmem:[%s699 + $0x60] sm:$0xff] %vm3571, %v3567
      %3585 = vst.msk [vmem:[%s699 + $0x68] sm:$0xff] %vm3571, %v3568
      %3586 = vst.msk [vmem:[%s699 + $0x70] sm:$0xff] %vm3571, %v3569
      %3587 = vst.msk [vmem:[%s699 + $0x78] sm:$0xff] %vm3571, %v3570
      %s3588 = smul.u32 8, %s26
      %p3589 = scmp.lt.s32.totalorder %s25, 1
      %s3590 = scalar_select %p3589, %s25, 1
      %p3591 = scmp.lt.s32.totalorder %s3588, 15
      %s3592 = scalar_select %p3591, %s3588, 15
      %s3593 = smul.addr %s3592, 2
      %s3594 = smul.addr %s3590, 32
      %s3595 = sadd.s32 %s3593, %s3594
      %s3596 = smul.addr %s3595, 8
      %s3597 = scalar_lea.vmem %s10, %s3596
      // Predicated region
      $region77: #{decoder_block_forward.1} parent=59 // pred_check
        %p3598 = pneg %p337
      $region78: #{decoder_block_forward.1} parent=59 // pred_check_branch
        %3600 = sbr.rel (%p3598) target = $region80
      $region79: #{decoder_block_forward.1} parent=59 // pred_region
        %s3601 = smul.u32 8, %s26
      $region80: #{decoder_block_forward.1} parent=59 // pred_fallthru
        _
    $region60: #{decoder_block_forward.1} parent=5 // pred_fallthru
      _
    %p3602 = scmp.le.s32.totalorder 2, %s16
    // Predicated region
    $region81: #{decoder_block_forward.1} parent=5 // pred_check
      %p3603 = pneg %p3602
    $region82: #{decoder_block_forward.1} parent=5 // pred_check_branch
      %3605 = sbr.rel (%p3603) target = $region84
    $region83: #{decoder_block_forward.1} parent=5 // pred_region
      %s3606 = ssub.s32 %s16, 2
      // Predicated region
      $region85: #{decoder_block_forward.1} parent=83 // pred_check
        %p3607 = pneg %p343
      $region86: #{decoder_block_forward.1} parent=83 // pred_check_branch
        %3609 = sbr.rel (%p3607) target = $region88
      $region87: #{decoder_block_forward.1} parent=83 // pred_region
        %s3610 = smul.u32 8, %s28
        %p3611 = scmp.lt.s32.totalorder %s27, 1
        %s3612 = scalar_select %p3611, %s27, 1
        %p3613 = scmp.lt.s32.totalorder %s3610, 15
        %s3614 = scalar_select %p3613, %s3610, 15
        %s3615 = smul.addr %s3614, 2
        %s3616 = smul.addr %s3612, 32
        %s3617 = sadd.s32 %s3615, %s3616
        %s3618 = smul.addr %s3617, 8
        %s3619 = scalar_lea.vmem %s10, %s3618
      $region88: #{decoder_block_forward.1} parent=83 // pred_fallthru
        _
    $region84: #{decoder_block_forward.1} parent=5 // pred_fallthru
      _
  $region6: #{decoder_block_forward.1} parent=0 // loop_footer
    %s20 = sadd.s32 1, %s16
  $region7: #{decoder_block_forward.1} parent=0 // loop_footer_branch
    %15 = sbr.rel target = $region3
  $region8: #{decoder_block_forward.1} parent=0 // loop_exit
    _

</llo_original>
